<compile_context>
chip_gen: v7x
topology: tpu7x:2x2x1
jax: 0.10.0
libtpu: 0.0.40
codegen_flags: <defaults>
</compile_context>

<pallas_src>
import functools
import math

import jax
import jax.numpy as jnp
from jax import lax
from jax.experimental import pallas as pl
from jax.experimental.pallas import tpu as pltpu

EPS = 1e-5

# MXU operand precision: bf16 inputs with f32 accumulation (standard on TPU;
# required to approach peak on v5e, 2-4x MXU rate on v6e/v7x).  Set to
# jnp.float32 to recover full-precision matmuls.
_MXU_DTYPE = jnp.bfloat16

# Scoped VMEM cap: above the 16/32 MiB defaults so bigger tiles can be chosen
# on real SNGAN shapes, but well under v7x's 64 MiB physical VMEM.
_VMEM_LIMIT_BYTES = 48 * 1024 * 1024


def _compiler_params():
    # Batch tiles are fully independent -> shard the grid across TensorCores.
    return pltpu.CompilerParams(
        dimension_semantics=("parallel",),
        vmem_limit_bytes=_VMEM_LIMIT_BYTES)


# ---------------------------------------------------------------------------
# Kernel A: per-tile (sum, sum of squares) for CondBN1 batch statistics
# ---------------------------------------------------------------------------
def _stats_partial_kernel(x_ref, st_ref):
    x = x_ref[...]                                         # (TN, H, W, C) f32
    tn, h, w, c = x.shape
    x2 = x.reshape(tn * h * w, c)                          # major-dim collapse
    s = jnp.sum(x2, axis=0, keepdims=True)                 # (1, C)
    ss = jnp.sum(x2 * x2, axis=0, keepdims=True)           # (1, C)
    st_ref[...] = jnp.concatenate([s, ss], axis=0)[None]   # (1, 2, C)


def batch_stats_partials(x, n_tile):
    n, h, w, c = x.shape
    assert n % n_tile == 0, "batch must be divisible by the batch tile"
    nt = n // n_tile
    return pl.pallas_call(
        _stats_partial_kernel,
        out_shape=jax.ShapeDtypeStruct((nt, 2, c), jnp.float32),
        grid=(nt,),
        in_specs=[pl.BlockSpec((n_tile, h, w, c), lambda i: (i, 0, 0, 0))],
        out_specs=pl.BlockSpec((1, 2, c), lambda i: (i, 0, 0)),
        compiler_params=_compiler_params(),
    )(x)


# ---------------------------------------------------------------------------
# Kernel B: fused BN1-affine + ReLU + zero-pad + conv3x3(c1)
#           (also emits per-tile stats of its output for CondBN2)
# ---------------------------------------------------------------------------
def _bn_relu_conv3x3_kernel(x_ref, scale_ref, shift_ref, w_ref, b_ref,
                            h_ref, st_ref, pad_ref, *, ksize):
    x = x_ref[...]                                         # (TN, H, W, Cin) f32
    tn, h, w, cin = x.shape
    p = (ksize - 1) // 2

    # Conditional BN (precomputed per-sample scale/shift) + ReLU.
    a = jnp.maximum(x * scale_ref[...] + shift_ref[...], 0.0)

    # Zero-pad into VMEM scratch — no extra HBM pass for padding.
    pad_ref[...] = jnp.zeros(pad_ref.shape, pad_ref.dtype)
    pad_ref[:, p:p + h, p:p + w, :] = a

    # im2col: one (rows, KH*KW*Cin) x (KH*KW*Cin, Ch) MXU contraction.
    cols = [pad_ref[:, dy:dy + h, dx:dx + w, :]
            for dy in range(ksize) for dx in range(ksize)]
    xcol = jnp.concatenate(cols, axis=-1).reshape(tn * h * w, ksize * ksize * cin)
    acc = jnp.dot(xcol.astype(w_ref.dtype), w_ref[...],
                  preferred_element_type=jnp.float32)
    acc = acc + b_ref[...]                                 # bias epilogue (1, Ch)
    ch = acc.shape[-1]
    h_ref[...] = acc.reshape(tn, h, w, ch)

    # One-pass partial statistics of the conv output (for CondBN2).
    s = jnp.sum(acc, axis=0, keepdims=True)
    ss = jnp.sum(acc * acc, axis=0, keepdims=True)
    st_ref[...] = jnp.concatenate([s, ss], axis=0)[None]


def bn_relu_conv3x3(x, scale, shift, w_flat, bias, *, ksize, n_tile):
    n, h, w, cin = x.shape
    kk_cin, ch = w_flat.shape
    assert kk_cin == ksize * ksize * cin
    assert n % n_tile == 0
    nt = n // n_tile
    p = (ksize - 1) // 2
    kern = functools.partial(_bn_relu_conv3x3_kernel, ksize=ksize)
    return pl.pallas_call(
        kern,
        out_shape=(jax.ShapeDtypeStruct((n, h, w, ch), jnp.float32),
                   jax.ShapeDtypeStruct((nt, 2, ch), jnp.float32)),
        grid=(nt,),
        in_specs=[
            pl.BlockSpec((n_tile, h, w, cin), lambda i: (i, 0, 0, 0)),
            pl.BlockSpec((n_tile, 1, 1, cin), lambda i: (i, 0, 0, 0)),
            pl.BlockSpec((n_tile, 1, 1, cin), lambda i: (i, 0, 0, 0)),
            pl.BlockSpec((kk_cin, ch), lambda i: (0, 0)),
            pl.BlockSpec((1, ch), lambda i: (0, 0)),
        ],
        out_specs=(
            pl.BlockSpec((n_tile, h, w, ch), lambda i: (i, 0, 0, 0)),
            pl.BlockSpec((1, 2, ch), lambda i: (i, 0, 0)),
        ),
        scratch_shapes=[pltpu.VMEM((n_tile, h + 2 * p, w + 2 * p, cin),
                                   jnp.float32)],
        compiler_params=_compiler_params(),
    )(x, scale, shift, w_flat, bias)


# ---------------------------------------------------------------------------
# Kernel C: fused BN2-affine + ReLU + zero-pad + conv3x3(c2)
#           + (1x1 shortcut conv | identity shortcut) + residual add
# ---------------------------------------------------------------------------
def _bn_relu_conv3x3_sc_add_kernel(h_ref, sc_ref, scale_ref, shift_ref,
                                   w_ref, b_ref, wsc_ref, bsc_ref,
                                   o_ref, pad_ref, *, ksize, learnable_sc):
    hin = h_ref[...]                                       # (TN, H, W, Ch) f32
    tn, h, w, ch = hin.shape
    p = (ksize - 1) // 2

    a = jnp.maximum(hin * scale_ref[...] + shift_ref[...], 0.0)

    pad_ref[...] = jnp.zeros(pad_ref.shape, pad_ref.dtype)
    pad_ref[:, p:p + h, p:p + w, :] = a

    cols = [pad_ref[:, dy:dy + h, dx:dx + w, :]
            for dy in range(ksize) for dx in range(ksize)]
    xcol = jnp.concatenate(cols, axis=-1).reshape(tn * h * w, ksize * ksize * ch)
    acc = jnp.dot(xcol.astype(w_ref.dtype), w_ref[...],
                  preferred_element_type=jnp.float32)
    acc = acc + b_ref[...]                                 # (1, Co)
    co = acc.shape[-1]

    if learnable_sc:
        sc = sc_ref[...]                                   # (TN, H, W, Cin)
        cin = sc.shape[-1]
        sc2d = sc.reshape(tn * h * w, cin)
        acc = acc + (jnp.dot(sc2d.astype(wsc_ref.dtype), wsc_ref[...],
                             preferred_element_type=jnp.float32) + bsc_ref[...])
        o_ref[...] = acc.reshape(tn, h, w, co)
    else:
        # identity shortcut (in_channels == out_channels, no upsample)
        o_ref[...] = acc.reshape(tn, h, w, co) + sc_ref[...]


def bn_relu_conv3x3_sc_add(h1, sc, scale, shift, w_flat, bias, wsc, bsc, *,
                           ksize, learnable_sc, n_tile):
    n, h, w, ch = h1.shape
    kk_ch, co = w_flat.shape
    csc = sc.shape[-1]
    assert kk_ch == ksize * ksize * ch
    assert n % n_tile == 0
    nt = n // n_tile
    p = (ksize - 1) // 2
    kern = functools.partial(_bn_relu_conv3x3_sc_add_kernel, ksize=ksize,
                             learnable_sc=learnable_sc)
    return pl.pallas_call(
        kern,
        out_shape=jax.ShapeDtypeStruct((n, h, w, co), jnp.float32),
        grid=(nt,),
        in_specs=[
            pl.BlockSpec((n_tile, h, w, ch), lambda i: (i, 0, 0, 0)),
            pl.BlockSpec((n_tile, h, w, csc), lambda i: (i, 0, 0, 0)),
            pl.BlockSpec((n_tile, 1, 1, ch), lambda i: (i, 0, 0, 0)),
            pl.BlockSpec((n_tile, 1, 1, ch), lambda i: (i, 0, 0, 0)),
            pl.BlockSpec((kk_ch, co), lambda i: (0, 0)),
            pl.BlockSpec((1, co), lambda i: (0, 0)),
            pl.BlockSpec((csc, co), lambda i: (0, 0)),
            pl.BlockSpec((1, co), lambda i: (0, 0)),
        ],
        out_specs=pl.BlockSpec((n_tile, h, w, co), lambda i: (i, 0, 0, 0)),
        scratch_shapes=[pltpu.VMEM((n_tile, h + 2 * p, w + 2 * p, ch),
                                   jnp.float32)],
        compiler_params=_compiler_params(),
    )(h1, sc, scale, shift, w_flat, bias, wsc, bsc)


# ---------------------------------------------------------------------------
# Wrapper-side glue (tiny XLA ops only)
# ---------------------------------------------------------------------------
def upsample2x_nhwc(x):
    # F.interpolate(..., size=(2H, 2W)) default mode = 'nearest'
    return jnp.repeat(jnp.repeat(x, 2, axis=1), 2, axis=2)


def _flatten_conv_w(w_oihw, dtype):
    # (OC, IC, KH, KW) -> (KH*KW*IC, OC); row order matches the kernels' im2col.
    oc, ic, kh, kw = w_oihw.shape
    return jnp.transpose(w_oihw, (2, 3, 1, 0)).reshape(kh * kw * ic, oc).astype(dtype)


def _finalize_stats(partials, count):
    sums = jnp.sum(partials, axis=0)                       # (2, C)
    mean = sums[0] / count
    var = jnp.maximum(sums[1] / count - mean * mean, 0.0)  # biased variance
    inv = lax.rsqrt(var + EPS)
    return mean, inv


def _affine_from_stats(mean, inv, gamma, beta):
    # gamma * (x - mean) * inv + beta == x * scale + shift
    n, c = gamma.shape
    scale = gamma * inv[None, :]
    shift = beta - gamma * mean[None, :] * inv[None, :]
    return scale.reshape(n, 1, 1, c), shift.reshape(n, 1, 1, c)


def gen_block_forward(params, x_nchw, y, *, upsample=False, first=False,
                      ksize=3, n_tile=1):
    n, cin, hh, ww = x_nchw.shape
    ch = params["c1_b"].shape[0]            # hidden channels
    co = params["c2_b"].shape[0]            # out channels
    learnable_sc = (cin != co) or upsample
    # The PyTorch module declares b2 with in_channels features, so it only runs
    # when hidden_channels == in_channels; keep the same constraint here.
    assert params["b2_gamma"].shape[1] == ch, \
        "b2 embeddings (sized in_channels) must match c1's output channels"

    x = jnp.transpose(x_nchw, (0, 2, 3, 1)).astype(jnp.float32)   # NCHW -> NHWC

    # ---- CondBN1 affine (exact global training-mode batch statistics) ----
    if first:
        scale1 = jnp.ones((n, 1, 1, cin), jnp.float32)
        shift1 = jnp.zeros((n, 1, 1, cin), jnp.float32)
    else:
        part1 = batch_stats_partials(x, n_tile)
        mean1, inv1 = _finalize_stats(part1, n * hh * ww)
        scale1, shift1 = _affine_from_stats(mean1, inv1,
                                            params["b1_gamma"][y],
                                            params["b1_beta"][y])

    # Nearest-2x upsample commutes exactly with the pointwise BN/ReLU, so it is
    # done once here and consumed by both the residual and shortcut kernels.
    xu = upsample2x_nhwc(x) if upsample else x
    hu, wu = xu.shape[1], xu.shape[2]

    # ---- residual: BN1 + ReLU + conv3x3(c1); also returns stats for BN2 ----
    w1 = _flatten_conv_w(params["c1_w"], _MXU_DTYPE)
    h1, part2 = bn_relu_conv3x3(xu, scale1, shift1, w1,
                                params["c1_b"].reshape(1, ch),
                                ksize=ksize, n_tile=n_tile)

    # ---- CondBN2 affine (global batch statistics over h1) ----
    mean2, inv2 = _finalize_stats(part2, n * hu * wu)
    scale2, shift2 = _affine_from_stats(mean2, inv2,
                                        params["b2_gamma"][y],
                                        params["b2_beta"][y])

    # ---- BN2 + ReLU + conv3x3(c2) fused with shortcut + residual add ----
    w2 = _flatten_conv_w(params["c2_w"], _MXU_DTYPE)
    if learnable_sc:
        sc_in = xu
        wsc = _flatten_conv_w(params["csc_w"], _MXU_DTYPE)        # (Cin, Co)
        bsc = params["csc_b"].reshape(1, co)
    else:
        sc_in = x                                # identity shortcut (Cin == Co)
        wsc = jnp.zeros((co, co), _MXU_DTYPE)    # unused dummies
        bsc = jnp.zeros((1, co), jnp.float32)
    out = bn_relu_conv3x3_sc_add(h1, sc_in, scale2, shift2, w2,
                                 params["c2_b"].reshape(1, co), wsc, bsc,
                                 ksize=ksize, learnable_sc=learnable_sc,
                                 n_tile=n_tile)
    return jnp.transpose(out, (0, 3, 1, 2))                        # NHWC -> NCHW


# ---------------------------------------------------------------------------
# Parameter construction (deterministic, mirrors nn.Module.__init__)
# ---------------------------------------------------------------------------
def _xavier_uniform(key, shape_oihw, gain):
    oc, ic, kh, kw = shape_oihw
    fan_in, fan_out = ic * kh * kw, oc * kh * kw
    bound = gain * math.sqrt(6.0 / (fan_in + fan_out))
    return jax.random.uniform(key, shape_oihw, jnp.float32, -bound, bound)


def _conv_bias(key, oc, fan_in):
    bound = 1.0 / math.sqrt(fan_in)
    return jax.random.uniform(key, (oc,), jnp.float32, -bound, bound)


def init_genblock_params(key, in_ch, out_ch, hidden_ch=None, ksize=3,
                         num_classes=10):
    hidden_ch = out_ch if hidden_ch is None else hidden_ch
    k1, k2, k3, k4, k5, k6 = jax.random.split(key, 6)
    return {
        "c1_w": _xavier_uniform(k1, (hidden_ch, in_ch, ksize, ksize),
                                math.sqrt(2.0)),
        "c1_b": _conv_bias(k2, hidden_ch, in_ch * ksize * ksize),
        "c2_w": _xavier_uniform(k3, (out_ch, hidden_ch, ksize, ksize),
                                math.sqrt(2.0)),
        "c2_b": _conv_bias(k4, out_ch, hidden_ch * ksize * ksize),
        "csc_w": _xavier_uniform(k5, (out_ch, in_ch, 1, 1), 1.0),
        "csc_b": _conv_bias(k6, out_ch, in_ch),
        # CategoricalConditionalBatchNorm2d embeddings: ones / zeros
        "b1_gamma": jnp.ones((num_classes, in_ch), jnp.float32),
        "b1_beta": jnp.zeros((num_classes, in_ch), jnp.float32),
        "b2_gamma": jnp.ones((num_classes, in_ch), jnp.float32),
        "b2_beta": jnp.zeros((num_classes, in_ch), jnp.float32),
    }


# ---------------------------------------------------------------------------
# Pure-XLA reference (same bf16 matmul-operand precision) for a self-check
# ---------------------------------------------------------------------------
def _ref_forward(params, x_nchw, y, *, upsample, first):
    x = jnp.transpose(x_nchw, (0, 2, 3, 1)).astype(jnp.float32)
    cin = x.shape[-1]
    co = params["c2_b"].shape[0]
    learnable_sc = (cin != co) or upsample

    def bn(h, gamma, beta):
        mean = jnp.mean(h, axis=(0, 1, 2))
        var = jnp.mean(jnp.square(h - mean), axis=(0, 1, 2))
        inv = lax.rsqrt(var + EPS)
        return gamma[:, None, None, :] * ((h - mean) * inv) + beta[:, None, None, :]

    def conv(h, w_oihw, b, pad):
        w_hwio = jnp.transpose(w_oihw, (2, 3, 1, 0)).astype(_MXU_DTYPE)
        out = lax.conv_general_dilated(
            h.astype(_MXU_DTYPE), w_hwio, (1, 1), [(pad, pad), (pad, pad)],
            dimension_numbers=("NHWC", "HWIO", "NHWC"),
            preferred_element_type=jnp.float32)
        return out + b.reshape(1, 1, 1, -1)

    def up(h):
        return jnp.repeat(jnp.repeat(h, 2, axis=1), 2, axis=2)

    hcur = x
    if not first:
        hcur = bn(hcur, params["b1_gamma"][y], params["b1_beta"][y])
    hcur = jnp.maximum(hcur, 0.0)
    if upsample:
        hcur = up(hcur)
    hcur = conv(hcur, params["c1_w"], params["c1_b"], 1)
    hcur = bn(hcur, params["b2_gamma"][y], params["b2_beta"][y])
    hcur = jnp.maximum(hcur, 0.0)
    hcur = conv(hcur, params["c2_w"], params["c2_b"], 1)

    sc = x
    if learnable_sc:
        if upsample:
            sc = up(sc)
        sc = conv(sc, params["csc_w"], params["csc_b"], 0)
    return jnp.transpose(hcur + sc, (0, 3, 1, 2))


# ---------------------------------------------------------------------------
if __name__ == "__main__":
    key = jax.random.PRNGKey(0)
    kx, ky, kp = jax.random.split(key, 3)

    N, C, H, W = 2, 4, 8, 8
    in_ch = out_ch = C
    x = jax.random.normal(kx, (N, C, H, W), jnp.float32)
    y = jax.random.randint(ky, (N,), 0, 10)
    params = init_genblock_params(kp, in_ch, out_ch)

    # Config 1: upsample + conditional BN1 + learnable (1x1 conv) shortcut.
    fwd1 = jax.jit(functools.partial(gen_block_forward, upsample=True, first=False))
    out1 = jax.block_until_ready(fwd1(params, x, y))
    assert out1.shape == (N, out_ch, 2 * H, 2 * W), out1.shape
    assert bool(jnp.all(jnp.isfinite(out1)))
    ref1 = _ref_forward(params, x, y, upsample=True, first=False)
    assert float(jnp.max(jnp.abs(out1 - ref1))) < 1e-1  # bf16 matmul tolerance

    # Config 2: no upsample, first block (no BN1), identity shortcut.
    fwd2 = jax.jit(functools.partial(gen_block_forward, upsample=False, first=True))
    out2 = jax.block_until_ready(fwd2(params, x, y))
    assert out2.shape == (N, out_ch, H, W), out2.shape
    assert bool(jnp.all(jnp.isfinite(out2)))
    ref2 = _ref_forward(params, x, y, upsample=False, first=True)
    assert float(jnp.max(jnp.abs(out2 - ref2))) < 1e-1

    print("KERNEL_OK")
</pallas_src>

<mosaic_0001>
module attributes {stable_mosaic.version = 11 : i64} {
  func.func @_stats_partial_kernel(%arg0: i32, %arg1: memref<1x8x8x4xf32, #tpu.memory_space<vmem>>, %arg2: memref<1x2x4xf32, #tpu.memory_space<vmem>>) attributes {dimension_semantics = [#tpu.dimension_semantics<parallel>], iteration_bounds = array<i64: 2>, scalar_prefetch = 0 : i64, scratch_operands = 0 : i64, tpu.core_type = #tpu.core_type<tc>, window_params = [{transform_indices = @transform_0, window_bounds = array<i64: 1, 8, 8, 4>}, {transform_indices = @transform_1, window_bounds = array<i64: 1, 2, 4>}]} {
    %c0 = arith.constant 0 : index
    %c0_0 = arith.constant 0 : index
    %c0_1 = arith.constant 0 : index
    %c0_2 = arith.constant 0 : index
    %0 = vector.load %arg1[%c0, %c0_0, %c0_1, %c0_2] : memref<1x8x8x4xf32, #tpu.memory_space<vmem>>, vector<1x8x8x4xf32>
    %1 = vector.shape_cast %0 : vector<1x8x8x4xf32> to vector<64x4xf32>
    %cst = arith.constant dense<0.000000e+00> : vector<4xf32>
    %2 = vector.multi_reduction <add>, %1, %cst [0] : vector<64x4xf32> to vector<4xf32>
    %3 = vector.shape_cast %2 : vector<4xf32> to vector<1x4xf32>
    %4 = arith.mulf %1, %1 : vector<64x4xf32>
    %cst_3 = arith.constant dense<0.000000e+00> : vector<4xf32>
    %5 = vector.multi_reduction <add>, %4, %cst_3 [0] : vector<64x4xf32> to vector<4xf32>
    %6 = vector.shape_cast %5 : vector<4xf32> to vector<1x4xf32>
    %7 = tpu.concatenate %3, %6 in 0 : vector<1x4xf32>, vector<1x4xf32> -> vector<2x4xf32>
    %8 = vector.shape_cast %7 : vector<2x4xf32> to vector<1x2x4xf32>
    %c0_4 = arith.constant 0 : index
    %c0_5 = arith.constant 0 : index
    %c0_6 = arith.constant 0 : index
    %9 = vector.load %arg2[%c0_4, %c0_5, %c0_6] : memref<1x2x4xf32, #tpu.memory_space<vmem>>, vector<1x2x4xf32>
    tpu.vector_store %arg2[%c0_4, %c0_5, %c0_6], %8 {strides = array<i32>} : memref<1x2x4xf32, #tpu.memory_space<vmem>>, vector<1x2x4xf32>,
    return
  }
  func.func @transform_0(%arg0: i32) -> (i32, i32, i32, i32) {
    %c0_i32 = arith.constant 0 : i32
    %c0_i32_0 = arith.constant 0 : i32
    %c0_i32_1 = arith.constant 0 : i32
    %c0_i32_2 = arith.constant 0 : i32
    return %arg0, %c0_i32, %c0_i32_0, %c0_i32_1 : i32, i32, i32, i32
  }
  func.func @transform_1(%arg0: i32) -> (i32, i32, i32) {
    %c0_i32 = arith.constant 0 : i32
    %c0_i32_0 = arith.constant 0 : i32
    %c0_i32_1 = arith.constant 0 : i32
    return %arg0, %c0_i32, %c0_i32_0 : i32, i32, i32
  }
}

module attributes {stable_mosaic.version = 11 : i64} {
  func.func @_bn_relu_conv3x3_sc_add_kernel(%arg0: i32, %arg1: memref<1x16x16x4xf32, #tpu.memory_space<vmem>>, %arg2: memref<1x16x16x4xf32, #tpu.memory_space<vmem>>, %arg3: memref<1x1x1x4xf32, #tpu.memory_space<vmem>>, %arg4: memref<1x1x1x4xf32, #tpu.memory_space<vmem>>, %arg5: memref<36x4xbf16, #tpu.memory_space<vmem>>, %arg6: memref<1x4xf32, #tpu.memory_space<vmem>>, %arg7: memref<4x4xbf16, #tpu.memory_space<vmem>>, %arg8: memref<1x4xf32, #tpu.memory_space<vmem>>, %arg9: memref<1x16x16x4xf32, #tpu.memory_space<vmem>>, %arg10: memref<1x18x18x4xf32, #tpu.memory_space<vmem>>) attributes {dimension_semantics = [#tpu.dimension_semantics<parallel>], iteration_bounds = array<i64: 2>, scalar_prefetch = 0 : i64, scratch_operands = 1 : i64, tpu.core_type = #tpu.core_type<tc>, window_params = [{transform_indices = @transform_0, window_bounds = array<i64: 1, 16, 16, 4>}, {transform_indices = @transform_1, window_bounds = array<i64: 1, 16, 16, 4>}, {transform_indices = @transform_2, window_bounds = array<i64: 1, 1, 1, 4>}, {transform_indices = @transform_3, window_bounds = array<i64: 1, 1, 1, 4>}, {pipeline_mode = #tpu.pipeline_mode<synchronous>, transform_indices = @transform_4, window_bounds = array<i64: 36, 4>}, {pipeline_mode = #tpu.pipeline_mode<synchronous>, transform_indices = @transform_5, window_bounds = array<i64: 1, 4>}, {pipeline_mode = #tpu.pipeline_mode<synchronous>, transform_indices = @transform_6, window_bounds = array<i64: 4, 4>}, {pipeline_mode = #tpu.pipeline_mode<synchronous>, transform_indices = @transform_7, window_bounds = array<i64: 1, 4>}, {transform_indices = @transform_8, window_bounds = array<i64: 1, 16, 16, 4>}]} {
    %c0 = arith.constant 0 : index
    %c0_0 = arith.constant 0 : index
    %c0_1 = arith.constant 0 : index
    %c0_2 = arith.constant 0 : index
    %0 = vector.load %arg1[%c0, %c0_0, %c0_1, %c0_2] : memref<1x16x16x4xf32, #tpu.memory_space<vmem>>, vector<1x16x16x4xf32>
    %c0_3 = arith.constant 0 : index
    %c0_4 = arith.constant 0 : index
    %c0_5 = arith.constant 0 : index
    %c0_6 = arith.constant 0 : index
    %1 = vector.load %arg3[%c0_3, %c0_4, %c0_5, %c0_6] : memref<1x1x1x4xf32, #tpu.memory_space<vmem>>, vector<1x1x1x4xf32>
    %2 = vector.broadcast %1 : vector<1x1x1x4xf32> to vector<1x16x16x4xf32>
    %3 = arith.mulf %0, %2 : vector<1x16x16x4xf32>
    %c0_7 = arith.constant 0 : index
    %c0_8 = arith.constant 0 : index
    %c0_9 = arith.constant 0 : index
    %c0_10 = arith.constant 0 : index
    %4 = vector.load %arg4[%c0_7, %c0_8, %c0_9, %c0_10] : memref<1x1x1x4xf32, #tpu.memory_space<vmem>>, vector<1x1x1x4xf32>
    %5 = vector.broadcast %4 : vector<1x1x1x4xf32> to vector<1x16x16x4xf32>
    %6 = arith.addf %3, %5 : vector<1x16x16x4xf32>
    %cst = arith.constant 0.000000e+00 : f32
    %7 = vector.broadcast %cst : f32 to vector<1x16x16x4xf32>
    %8 = arith.maximumf %6, %7 : vector<1x16x16x4xf32>
    %cst_11 = arith.constant 0.000000e+00 : f32
    %9 = vector.broadcast %cst_11 : f32 to vector<1x18x18x4xf32>
    %c0_12 = arith.constant 0 : index
    %c0_13 = arith.constant 0 : index
    %c0_14 = arith.constant 0 : index
    %c0_15 = arith.constant 0 : index
    %10 = vector.load %arg10[%c0_12, %c0_13, %c0_14, %c0_15] : memref<1x18x18x4xf32, #tpu.memory_space<vmem>>, vector<1x18x18x4xf32>
    tpu.vector_store %arg10[%c0_12, %c0_13, %c0_14, %c0_15], %9 {strides = array<i32>} : memref<1x18x18x4xf32, #tpu.memory_space<vmem>>, vector<1x18x18x4xf32>,
    %c0_16 = arith.constant 0 : index
    %c1 = arith.constant 1 : index
    %c1_17 = arith.constant 1 : index
    %c0_18 = arith.constant 0 : index
    %11 = vector.load %arg10[%c0_16, %c1, %c1_17, %c0_18] : memref<1x18x18x4xf32, #tpu.memory_space<vmem>>, vector<1x16x16x4xf32>
    tpu.vector_store %arg10[%c0_16, %c1, %c1_17, %c0_18], %8 {strides = array<i32>} : memref<1x18x18x4xf32, #tpu.memory_space<vmem>>, vector<1x16x16x4xf32>,
    %c0_19 = arith.constant 0 : index
    %c0_20 = arith.constant 0 : index
    %c0_21 = arith.constant 0 : index
    %c0_22 = arith.constant 0 : index
    %12 = vector.load %arg10[%c0_19, %c0_20, %c0_21, %c0_22] : memref<1x18x18x4xf32, #tpu.memory_space<vmem>>, vector<1x16x16x4xf32>
    %c0_23 = arith.constant 0 : index
    %c0_24 = arith.constant 0 : index
    %c1_25 = arith.constant 1 : index
    %c0_26 = arith.constant 0 : index
    %13 = vector.load %arg10[%c0_23, %c0_24, %c1_25, %c0_26] : memref<1x18x18x4xf32, #tpu.memory_space<vmem>>, vector<1x16x16x4xf32>
    %c0_27 = arith.constant 0 : index
    %c0_28 = arith.constant 0 : index
    %c2 = arith.constant 2 : index
    %c0_29 = arith.constant 0 : index
    %14 = vector.load %arg10[%c0_27, %c0_28, %c2, %c0_29] : memref<1x18x18x4xf32, #tpu.memory_space<vmem>>, vector<1x16x16x4xf32>
    %c0_30 = arith.constant 0 : index
    %c1_31 = arith.constant 1 : index
    %c0_32 = arith.constant 0 : index
    %c0_33 = arith.constant 0 : index
    %15 = vector.load %arg10[%c0_30, %c1_31, %c0_32, %c0_33] : memref<1x18x18x4xf32, #tpu.memory_space<vmem>>, vector<1x16x16x4xf32>
    %c0_34 = arith.constant 0 : index
    %c1_35 = arith.constant 1 : index
    %c1_36 = arith.constant 1 : index
    %c0_37 = arith.constant 0 : index
    %16 = vector.load %arg10[%c0_34, %c1_35, %c1_36, %c0_37] : memref<1x18x18x4xf32, #tpu.memory_space<vmem>>, vector<1x16x16x4xf32>
    %c0_38 = arith.constant 0 : index
    %c1_39 = arith.constant 1 : index
    %c2_40 = arith.constant 2 : index
    %c0_41 = arith.constant 0 : index
    %17 = vector.load %arg10[%c0_38, %c1_39, %c2_40, %c0_41] : memref<1x18x18x4xf32, #tpu.memory_space<vmem>>, vector<1x16x16x4xf32>
    %c0_42 = arith.constant 0 : index
    %c2_43 = arith.constant 2 : index
    %c0_44 = arith.constant 0 : index
    %c0_45 = arith.constant 0 : index
    %18 = vector.load %arg10[%c0_42, %c2_43, %c0_44, %c0_45] : memref<1x18x18x4xf32, #tpu.memory_space<vmem>>, vector<1x16x16x4xf32>
    %c0_46 = arith.constant 0 : index
    %c2_47 = arith.constant 2 : index
    %c1_48 = arith.constant 1 : index
    %c0_49 = arith.constant 0 : index
    %19 = vector.load %arg10[%c0_46, %c2_47, %c1_48, %c0_49] : memref<1x18x18x4xf32, #tpu.memory_space<vmem>>, vector<1x16x16x4xf32>
    %c0_50 = arith.constant 0 : index
    %c2_51 = arith.constant 2 : index
    %c2_52 = arith.constant 2 : index
    %c0_53 = arith.constant 0 : index
    %20 = vector.load %arg10[%c0_50, %c2_51, %c2_52, %c0_53] : memref<1x18x18x4xf32, #tpu.memory_space<vmem>>, vector<1x16x16x4xf32>
    %21 = tpu.concatenate %12, %13, %14, %15, %16, %17, %18, %19, %20 in 3 : vector<1x16x16x4xf32>, vector<1x16x16x4xf32>, vector<1x16x16x4xf32>, vector<1x16x16x4xf32>, vector<1x16x16x4xf32>, vector<1x16x16x4xf32>, vector<1x16x16x4xf32>, vector<1x16x16x4xf32>, vector<1x16x16x4xf32> -> vector<1x16x16x36xf32>
    %22 = vector.shape_cast %21 : vector<1x16x16x36xf32> to vector<256x36xf32>
    %23 = arith.truncf %22 : vector<256x36xf32> to vector<256x36xbf16>
    %c0_54 = arith.constant 0 : index
    %c0_55 = arith.constant 0 : index
    %24 = vector.load %arg5[%c0_54, %c0_55] : memref<36x4xbf16, #tpu.memory_space<vmem>>, vector<36x4xbf16>
    %cst_56 = arith.constant dense<0.000000e+00> : vector<256x4xf32>
    %25 = tpu.matmul %23, %24, %cst_56 {dimension_numbers = #tpu.dot_dimension_numbers<[1], [0], [0], [1], [0, 0, 1, 1], [], []>} : vector<256x36xbf16>, vector<36x4xbf16>, vector<256x4xf32> -> vector<256x4xf32>
    %c0_57 = arith.constant 0 : index
    %c0_58 = arith.constant 0 : index
    %26 = vector.load %arg6[%c0_57, %c0_58] : memref<1x4xf32, #tpu.memory_space<vmem>>, vector<1x4xf32>
    %27 = vector.broadcast %26 : vector<1x4xf32> to vector<256x4xf32>
    %28 = arith.addf %25, %27 : vector<256x4xf32>
    %c0_59 = arith.constant 0 : index
    %c0_60 = arith.constant 0 : index
    %c0_61 = arith.constant 0 : index
    %c0_62 = arith.constant 0 : index
    %29 = vector.load %arg2[%c0_59, %c0_60, %c0_61, %c0_62] : memref<1x16x16x4xf32, #tpu.memory_space<vmem>>, vector<1x16x16x4xf32>
    %30 = vector.shape_cast %29 : vector<1x16x16x4xf32> to vector<256x4xf32>
    %31 = arith.truncf %30 : vector<256x4xf32> to vector<256x4xbf16>
    %c0_63 = arith.constant 0 : index
    %c0_64 = arith.constant 0 : index
    %32 = vector.load %arg7[%c0_63, %c0_64] : memref<4x4xbf16, #tpu.memory_space<vmem>>, vector<4x4xbf16>
    %cst_65 = arith.constant dense<0.000000e+00> : vector<256x4xf32>
    %33 = tpu.matmul %31, %32, %cst_65 {dimension_numbers = #tpu.dot_dimension_numbers<[1], [0], [0], [1], [0, 0, 1, 1], [], []>} : vector<256x4xbf16>, vector<4x4xbf16>, vector<256x4xf32> -> vector<256x4xf32>
    %c0_66 = arith.constant 0 : index
    %c0_67 = arith.constant 0 : index
    %34 = vector.load %arg8[%c0_66, %c0_67] : memref<1x4xf32, #tpu.memory_space<vmem>>, vector<1x4xf32>
    %35 = vector.broadcast %34 : vector<1x4xf32> to vector<256x4xf32>
    %36 = arith.addf %33, %35 : vector<256x4xf32>
    %37 = arith.addf %28, %36 : vector<256x4xf32>
    %38 = vector.shape_cast %37 : vector<256x4xf32> to vector<1x16x16x4xf32>
    %c0_68 = arith.constant 0 : index
    %c0_69 = arith.constant 0 : index
    %c0_70 = arith.constant 0 : index
    %c0_71 = arith.constant 0 : index
    %39 = vector.load %arg9[%c0_68, %c0_69, %c0_70, %c0_71] : memref<1x16x16x4xf32, #tpu.memory_space<vmem>>, vector<1x16x16x4xf32>
    tpu.vector_store %arg9[%c0_68, %c0_69, %c0_70, %c0_71], %38 {strides = array<i32>} : memref<1x16x16x4xf32, #tpu.memory_space<vmem>>, vector<1x16x16x4xf32>,
    return
  }
  func.func @transform_0(%arg0: i32) -> (i32, i32, i32, i32) {
    %c0_i32 = arith.constant 0 : i32
    %c0_i32_0 = arith.constant 0 : i32
    %c0_i32_1 = arith.constant 0 : i32
    %c0_i32_2 = arith.constant 0 : i32
    return %arg0, %c0_i32, %c0_i32_0, %c0_i32_1 : i32, i32, i32, i32
  }
  func.func @transform_1(%arg0: i32) -> (i32, i32, i32, i32) {
    %c0_i32 = arith.constant 0 : i32
    %c0_i32_0 = arith.constant 0 : i32
    %c0_i32_1 = arith.constant 0 : i32
    %c0_i32_2 = arith.constant 0 : i32
    return %arg0, %c0_i32, %c0_i32_0, %c0_i32_1 : i32, i32, i32, i32
  }
  func.func @transform_2(%arg0: i32) -> (i32, i32, i32, i32) {
    %c0_i32 = arith.constant 0 : i32
    %c0_i32_0 = arith.constant 0 : i32
    %c0_i32_1 = arith.constant 0 : i32
    %c0_i32_2 = arith.constant 0 : i32
    return %arg0, %c0_i32, %c0_i32_0, %c0_i32_1 : i32, i32, i32, i32
  }
  func.func @transform_3(%arg0: i32) -> (i32, i32, i32, i32) {
    %c0_i32 = arith.constant 0 : i32
    %c0_i32_0 = arith.constant 0 : i32
    %c0_i32_1 = arith.constant 0 : i32
    %c0_i32_2 = arith.constant 0 : i32
    return %arg0, %c0_i32, %c0_i32_0, %c0_i32_1 : i32, i32, i32, i32
  }
  func.func @transform_4(%arg0: i32) -> (i32, i32) {
    %c0_i32 = arith.constant 0 : i32
    %c0_i32_0 = arith.constant 0 : i32
    %c0_i32_1 = arith.constant 0 : i32
    return %c0_i32, %c0_i32_0 : i32, i32
  }
  func.func @transform_5(%arg0: i32) -> (i32, i32) {
    %c0_i32 = arith.constant 0 : i32
    %c0_i32_0 = arith.constant 0 : i32
    %c0_i32_1 = arith.constant 0 : i32
    return %c0_i32, %c0_i32_0 : i32, i32
  }
  func.func @transform_6(%arg0: i32) -> (i32, i32) {
    %c0_i32 = arith.constant 0 : i32
    %c0_i32_0 = arith.constant 0 : i32
    %c0_i32_1 = arith.constant 0 : i32
    return %c0_i32, %c0_i32_0 : i32, i32
  }
  func.func @transform_7(%arg0: i32) -> (i32, i32) {
    %c0_i32 = arith.constant 0 : i32
    %c0_i32_0 = arith.constant 0 : i32
    %c0_i32_1 = arith.constant 0 : i32
    return %c0_i32, %c0_i32_0 : i32, i32
  }
  func.func @transform_8(%arg0: i32) -> (i32, i32, i32, i32) {
    %c0_i32 = arith.constant 0 : i32
    %c0_i32_0 = arith.constant 0 : i32
    %c0_i32_1 = arith.constant 0 : i32
    %c0_i32_2 = arith.constant 0 : i32
    return %arg0, %c0_i32, %c0_i32_0, %c0_i32_1 : i32, i32, i32, i32
  }
}

module attributes {stable_mosaic.version = 11 : i64} {
  func.func @_bn_relu_conv3x3_kernel(%arg0: i32, %arg1: memref<1x16x16x4xf32, #tpu.memory_space<vmem>>, %arg2: memref<1x1x1x4xf32, #tpu.memory_space<vmem>>, %arg3: memref<1x1x1x4xf32, #tpu.memory_space<vmem>>, %arg4: memref<36x4xbf16, #tpu.memory_space<vmem>>, %arg5: memref<1x4xf32, #tpu.memory_space<vmem>>, %arg6: memref<1x16x16x4xf32, #tpu.memory_space<vmem>>, %arg7: memref<1x2x4xf32, #tpu.memory_space<vmem>>, %arg8: memref<1x18x18x4xf32, #tpu.memory_space<vmem>>) attributes {dimension_semantics = [#tpu.dimension_semantics<parallel>], iteration_bounds = array<i64: 2>, scalar_prefetch = 0 : i64, scratch_operands = 1 : i64, tpu.core_type = #tpu.core_type<tc>, window_params = [{transform_indices = @transform_0, window_bounds = array<i64: 1, 16, 16, 4>}, {transform_indices = @transform_1, window_bounds = array<i64: 1, 1, 1, 4>}, {transform_indices = @transform_2, window_bounds = array<i64: 1, 1, 1, 4>}, {pipeline_mode = #tpu.pipeline_mode<synchronous>, transform_indices = @transform_3, window_bounds = array<i64: 36, 4>}, {pipeline_mode = #tpu.pipeline_mode<synchronous>, transform_indices = @transform_4, window_bounds = array<i64: 1, 4>}, {transform_indices = @transform_5, window_bounds = array<i64: 1, 16, 16, 4>}, {transform_indices = @transform_6, window_bounds = array<i64: 1, 2, 4>}]} {
    %c0 = arith.constant 0 : index
    %c0_0 = arith.constant 0 : index
    %c0_1 = arith.constant 0 : index
    %c0_2 = arith.constant 0 : index
    %0 = vector.load %arg1[%c0, %c0_0, %c0_1, %c0_2] : memref<1x16x16x4xf32, #tpu.memory_space<vmem>>, vector<1x16x16x4xf32>
    %c0_3 = arith.constant 0 : index
    %c0_4 = arith.constant 0 : index
    %c0_5 = arith.constant 0 : index
    %c0_6 = arith.constant 0 : index
    %1 = vector.load %arg2[%c0_3, %c0_4, %c0_5, %c0_6] : memref<1x1x1x4xf32, #tpu.memory_space<vmem>>, vector<1x1x1x4xf32>
    %2 = vector.broadcast %1 : vector<1x1x1x4xf32> to vector<1x16x16x4xf32>
    %3 = arith.mulf %0, %2 : vector<1x16x16x4xf32>
    %c0_7 = arith.constant 0 : index
    %c0_8 = arith.constant 0 : index
    %c0_9 = arith.constant 0 : index
    %c0_10 = arith.constant 0 : index
    %4 = vector.load %arg3[%c0_7, %c0_8, %c0_9, %c0_10] : memref<1x1x1x4xf32, #tpu.memory_space<vmem>>, vector<1x1x1x4xf32>
    %5 = vector.broadcast %4 : vector<1x1x1x4xf32> to vector<1x16x16x4xf32>
    %6 = arith.addf %3, %5 : vector<1x16x16x4xf32>
    %cst = arith.constant 0.000000e+00 : f32
    %7 = vector.broadcast %cst : f32 to vector<1x16x16x4xf32>
    %8 = arith.maximumf %6, %7 : vector<1x16x16x4xf32>
    %cst_11 = arith.constant 0.000000e+00 : f32
    %9 = vector.broadcast %cst_11 : f32 to vector<1x18x18x4xf32>
    %c0_12 = arith.constant 0 : index
    %c0_13 = arith.constant 0 : index
    %c0_14 = arith.constant 0 : index
    %c0_15 = arith.constant 0 : index
    %10 = vector.load %arg8[%c0_12, %c0_13, %c0_14, %c0_15] : memref<1x18x18x4xf32, #tpu.memory_space<vmem>>, vector<1x18x18x4xf32>
    tpu.vector_store %arg8[%c0_12, %c0_13, %c0_14, %c0_15], %9 {strides = array<i32>} : memref<1x18x18x4xf32, #tpu.memory_space<vmem>>, vector<1x18x18x4xf32>,
    %c0_16 = arith.constant 0 : index
    %c1 = arith.constant 1 : index
    %c1_17 = arith.constant 1 : index
    %c0_18 = arith.constant 0 : index
    %11 = vector.load %arg8[%c0_16, %c1, %c1_17, %c0_18] : memref<1x18x18x4xf32, #tpu.memory_space<vmem>>, vector<1x16x16x4xf32>
    tpu.vector_store %arg8[%c0_16, %c1, %c1_17, %c0_18], %8 {strides = array<i32>} : memref<1x18x18x4xf32, #tpu.memory_space<vmem>>, vector<1x16x16x4xf32>,
    %c0_19 = arith.constant 0 : index
    %c0_20 = arith.constant 0 : index
    %c0_21 = arith.constant 0 : index
    %c0_22 = arith.constant 0 : index
    %12 = vector.load %arg8[%c0_19, %c0_20, %c0_21, %c0_22] : memref<1x18x18x4xf32, #tpu.memory_space<vmem>>, vector<1x16x16x4xf32>
    %c0_23 = arith.constant 0 : index
    %c0_24 = arith.constant 0 : index
    %c1_25 = arith.constant 1 : index
    %c0_26 = arith.constant 0 : index
    %13 = vector.load %arg8[%c0_23, %c0_24, %c1_25, %c0_26] : memref<1x18x18x4xf32, #tpu.memory_space<vmem>>, vector<1x16x16x4xf32>
    %c0_27 = arith.constant 0 : index
    %c0_28 = arith.constant 0 : index
    %c2 = arith.constant 2 : index
    %c0_29 = arith.constant 0 : index
    %14 = vector.load %arg8[%c0_27, %c0_28, %c2, %c0_29] : memref<1x18x18x4xf32, #tpu.memory_space<vmem>>, vector<1x16x16x4xf32>
    %c0_30 = arith.constant 0 : index
    %c1_31 = arith.constant 1 : index
    %c0_32 = arith.constant 0 : index
    %c0_33 = arith.constant 0 : index
    %15 = vector.load %arg8[%c0_30, %c1_31, %c0_32, %c0_33] : memref<1x18x18x4xf32, #tpu.memory_space<vmem>>, vector<1x16x16x4xf32>
    %c0_34 = arith.constant 0 : index
    %c1_35 = arith.constant 1 : index
    %c1_36 = arith.constant 1 : index
    %c0_37 = arith.constant 0 : index
    %16 = vector.load %arg8[%c0_34, %c1_35, %c1_36, %c0_37] : memref<1x18x18x4xf32, #tpu.memory_space<vmem>>, vector<1x16x16x4xf32>
    %c0_38 = arith.constant 0 : index
    %c1_39 = arith.constant 1 : index
    %c2_40 = arith.constant 2 : index
    %c0_41 = arith.constant 0 : index
    %17 = vector.load %arg8[%c0_38, %c1_39, %c2_40, %c0_41] : memref<1x18x18x4xf32, #tpu.memory_space<vmem>>, vector<1x16x16x4xf32>
    %c0_42 = arith.constant 0 : index
    %c2_43 = arith.constant 2 : index
    %c0_44 = arith.constant 0 : index
    %c0_45 = arith.constant 0 : index
    %18 = vector.load %arg8[%c0_42, %c2_43, %c0_44, %c0_45] : memref<1x18x18x4xf32, #tpu.memory_space<vmem>>, vector<1x16x16x4xf32>
    %c0_46 = arith.constant 0 : index
    %c2_47 = arith.constant 2 : index
    %c1_48 = arith.constant 1 : index
    %c0_49 = arith.constant 0 : index
    %19 = vector.load %arg8[%c0_46, %c2_47, %c1_48, %c0_49] : memref<1x18x18x4xf32, #tpu.memory_space<vmem>>, vector<1x16x16x4xf32>
    %c0_50 = arith.constant 0 : index
    %c2_51 = arith.constant 2 : index
    %c2_52 = arith.constant 2 : index
    %c0_53 = arith.constant 0 : index
    %20 = vector.load %arg8[%c0_50, %c2_51, %c2_52, %c0_53] : memref<1x18x18x4xf32, #tpu.memory_space<vmem>>, vector<1x16x16x4xf32>
    %21 = tpu.concatenate %12, %13, %14, %15, %16, %17, %18, %19, %20 in 3 : vector<1x16x16x4xf32>, vector<1x16x16x4xf32>, vector<1x16x16x4xf32>, vector<1x16x16x4xf32>, vector<1x16x16x4xf32>, vector<1x16x16x4xf32>, vector<1x16x16x4xf32>, vector<1x16x16x4xf32>, vector<1x16x16x4xf32> -> vector<1x16x16x36xf32>
    %22 = vector.shape_cast %21 : vector<1x16x16x36xf32> to vector<256x36xf32>
    %23 = arith.truncf %22 : vector<256x36xf32> to vector<256x36xbf16>
    %c0_54 = arith.constant 0 : index
    %c0_55 = arith.constant 0 : index
    %24 = vector.load %arg4[%c0_54, %c0_55] : memref<36x4xbf16, #tpu.memory_space<vmem>>, vector<36x4xbf16>
    %cst_56 = arith.constant dense<0.000000e+00> : vector<256x4xf32>
    %25 = tpu.matmul %23, %24, %cst_56 {dimension_numbers = #tpu.dot_dimension_numbers<[1], [0], [0], [1], [0, 0, 1, 1], [], []>} : vector<256x36xbf16>, vector<36x4xbf16>, vector<256x4xf32> -> vector<256x4xf32>
    %c0_57 = arith.constant 0 : index
    %c0_58 = arith.constant 0 : index
    %26 = vector.load %arg5[%c0_57, %c0_58] : memref<1x4xf32, #tpu.memory_space<vmem>>, vector<1x4xf32>
    %27 = vector.broadcast %26 : vector<1x4xf32> to vector<256x4xf32>
    %28 = arith.addf %25, %27 : vector<256x4xf32>
    %29 = vector.shape_cast %28 : vector<256x4xf32> to vector<1x16x16x4xf32>
    %c0_59 = arith.constant 0 : index
    %c0_60 = arith.constant 0 : index
    %c0_61 = arith.constant 0 : index
    %c0_62 = arith.constant 0 : index
    %30 = vector.load %arg6[%c0_59, %c0_60, %c0_61, %c0_62] : memref<1x16x16x4xf32, #tpu.memory_space<vmem>>, vector<1x16x16x4xf32>
    tpu.vector_store %arg6[%c0_59, %c0_60, %c0_61, %c0_62], %29 {strides = array<i32>} : memref<1x16x16x4xf32, #tpu.memory_space<vmem>>, vector<1x16x16x4xf32>,
    %cst_63 = arith.constant dense<0.000000e+00> : vector<4xf32>
    %31 = vector.multi_reduction <add>, %28, %cst_63 [0] : vector<256x4xf32> to vector<4xf32>
    %32 = vector.shape_cast %31 : vector<4xf32> to vector<1x4xf32>
    %33 = arith.mulf %28, %28 : vector<256x4xf32>
    %cst_64 = arith.constant dense<0.000000e+00> : vector<4xf32>
    %34 = vector.multi_reduction <add>, %33, %cst_64 [0] : vector<256x4xf32> to vector<4xf32>
    %35 = vector.shape_cast %34 : vector<4xf32> to vector<1x4xf32>
    %36 = tpu.concatenate %32, %35 in 0 : vector<1x4xf32>, vector<1x4xf32> -> vector<2x4xf32>
    %37 = vector.shape_cast %36 : vector<2x4xf32> to vector<1x2x4xf32>
    %c0_65 = arith.constant 0 : index
    %c0_66 = arith.constant 0 : index
    %c0_67 = arith.constant 0 : index
    %38 = vector.load %arg7[%c0_65, %c0_66, %c0_67] : memref<1x2x4xf32, #tpu.memory_space<vmem>>, vector<1x2x4xf32>
    tpu.vector_store %arg7[%c0_65, %c0_66, %c0_67], %37 {strides = array<i32>} : memref<1x2x4xf32, #tpu.memory_space<vmem>>, vector<1x2x4xf32>,
    return
  }
  func.func @transform_0(%arg0: i32) -> (i32, i32, i32, i32) {
    %c0_i32 = arith.constant 0 : i32
    %c0_i32_0 = arith.constant 0 : i32
    %c0_i32_1 = arith.constant 0 : i32
    %c0_i32_2 = arith.constant 0 : i32
    return %arg0, %c0_i32, %c0_i32_0, %c0_i32_1 : i32, i32, i32, i32
  }
  func.func @transform_1(%arg0: i32) -> (i32, i32, i32, i32) {
    %c0_i32 = arith.constant 0 : i32
    %c0_i32_0 = arith.constant 0 : i32
    %c0_i32_1 = arith.constant 0 : i32
    %c0_i32_2 = arith.constant 0 : i32
    return %arg0, %c0_i32, %c0_i32_0, %c0_i32_1 : i32, i32, i32, i32
  }
  func.func @transform_2(%arg0: i32) -> (i32, i32, i32, i32) {
    %c0_i32 = arith.constant 0 : i32
    %c0_i32_0 = arith.constant 0 : i32
    %c0_i32_1 = arith.constant 0 : i32
    %c0_i32_2 = arith.constant 0 : i32
    return %arg0, %c0_i32, %c0_i32_0, %c0_i32_1 : i32, i32, i32, i32
  }
  func.func @transform_3(%arg0: i32) -> (i32, i32) {
    %c0_i32 = arith.constant 0 : i32
    %c0_i32_0 = arith.constant 0 : i32
    %c0_i32_1 = arith.constant 0 : i32
    return %c0_i32, %c0_i32_0 : i32, i32
  }
  func.func @transform_4(%arg0: i32) -> (i32, i32) {
    %c0_i32 = arith.constant 0 : i32
    %c0_i32_0 = arith.constant 0 : i32
    %c0_i32_1 = arith.constant 0 : i32
    return %c0_i32, %c0_i32_0 : i32, i32
  }
  func.func @transform_5(%arg0: i32) -> (i32, i32, i32, i32) {
    %c0_i32 = arith.constant 0 : i32
    %c0_i32_0 = arith.constant 0 : i32
    %c0_i32_1 = arith.constant 0 : i32
    %c0_i32_2 = arith.constant 0 : i32
    return %arg0, %c0_i32, %c0_i32_0, %c0_i32_1 : i32, i32, i32, i32
  }
  func.func @transform_6(%arg0: i32) -> (i32, i32, i32) {
    %c0_i32 = arith.constant 0 : i32
    %c0_i32_0 = arith.constant 0 : i32
    %c0_i32_1 = arith.constant 0 : i32
    return %arg0, %c0_i32, %c0_i32_0 : i32, i32, i32
  }
}

</mosaic_0001>

<llo_original>
// kernel: gen_block_forward.3
$region0: #{gen_block_forward.3}
  #allocation0 [shape = 'u32[]', space=smem, size = 0x4, offset = 0x4, fixed_abs, tag = 'smem constant byte address 0x4 - core index']
  #allocation1 [shape = 'u32[144,128]{1,0:T(1,128)}', space=vmem, size = 0x12000, scoped, tag = 'internal scratch']
  %s0 = inlined_call_operand.vmem [shape: f32[2,8,8,4], index: 0, kind: input, shape index: {}]
  %s1 = inlined_call_operand.vmem [shape: f32[2,2,4], index: 1, kind: output, shape index: {}]
  %s2 = sld [smem:[#allocation0]]
  $region37: #{gen_block_forward.3} parent=0
    _
  %s4 = ssub.s32 1, %s2
  %s5 = scalar_select 0, %s4, %s2
  loop: start=0, step=1, limit=4
  $region2: #{gen_block_forward.3} parent=0 // loop_pre_header
    _
  $region3: #{gen_block_forward.3} parent=0 // loop_header
    %s7 = sphi 0, %s11
    %p8 = scmp.ge.s32.totalorder %s7, 4
    %s17 = sphi 0, %s19
    %s20 = sphi 0, %s17
    %s21 = sphi 0, %s20
    %s37 = sphi 0, %s21
    %s43 = sphi 0, %s45
    %s46 = sphi 0, %s43
    %s47 = sphi 0, %s46
    %s63 = sphi 0, %s47
  $region4: #{gen_block_forward.3} parent=0 // loop_header_branch
    %10 = sbr.rel (%p8) target = $region8
  $region5: #{gen_block_forward.3} parent=0 // loop_body
    %s12 = ssub.s32 %s7, 1
    %s13 = ssub.s32 %s7, 2
    %s14 = sadd.s32 %s7, 1
    %s15 = ssub.s32 %s7, %s14
    %p16 = scmp.eq.s32.totalorder %s15, 0
    %s18 = sadd.s32 %s17, 1
    %s19 = scalar_select %p16, %s17, %s18
    %p22 = pneg %p16
    %p23 = scmp.eq.s32.totalorder %s7, 1
    %p24 = por %p22, %p23
    %p25 = scmp.ne.s32.totalorder %s17, %s20
    %p26 = scmp.eq.s32.totalorder %s7, 0
    %p27 = por %p25, %p26
    %p28 = scmp.ne.s32.totalorder %s17, %s20
    %p29 = scmp.eq.s32.totalorder %s12, 1
    %p30 = por %p28, %p29
    %p31 = scmp.ne.s32.totalorder %s20, %s21
    %p32 = scmp.eq.s32.totalorder %s12, 0
    %p33 = por %p31, %p32
    %p34 = scmp.ne.s32.totalorder %s20, %s21
    %p35 = scmp.eq.s32.totalorder %s13, 1
    %p36 = por %p34, %p35
    %p38 = scmp.ne.s32.totalorder %s21, %s37
    %p39 = scmp.eq.s32.totalorder %s13, 0
    %p40 = por %p38, %p39
    %s41 = ssub.s32 %s7, %s14
    %p42 = scmp.eq.s32.totalorder %s41, 0
    %s44 = sadd.s32 %s43, 1
    %s45 = scalar_select %p42, %s43, %s44
    %p48 = pneg %p42
    %p49 = scmp.eq.s32.totalorder %s7, 1
    %p50 = por %p48, %p49
    %p51 = scmp.ne.s32.totalorder %s43, %s46
    %p52 = scmp.eq.s32.totalorder %s7, 0
    %p53 = por %p51, %p52
    %p54 = scmp.ne.s32.totalorder %s43, %s46
    %p55 = scmp.eq.s32.totalorder %s12, 1
    %p56 = por %p54, %p55
    %p57 = scmp.ne.s32.totalorder %s46, %s47
    %p58 = scmp.eq.s32.totalorder %s12, 0
    %p59 = por %p57, %p58
    %p60 = scmp.ne.s32.totalorder %s46, %s47
    %p61 = scmp.eq.s32.totalorder %s13, 1
    %p62 = por %p60, %p61
    %p64 = scmp.ne.s32.totalorder %s47, %s63
    %p65 = scmp.eq.s32.totalorder %s13, 0
    %p66 = por %p64, %p65
    %p67 = scmp.le.s32.totalorder 1, %s7
    %p68 = scmp.lt.s32.totalorder %s7, 3
    %p69 = pnand %p67, %p68
    %p70 = pneg %p69
    // Predicated region
    $region9: #{gen_block_forward.3} parent=5 // pred_check
      _
    $region10: #{gen_block_forward.3} parent=5 // pred_check_branch
      %72 = sbr.rel (%p69) target = $region12
    $region11: #{gen_block_forward.3} parent=5 // pred_region
      %s73 = ssub.s32 %s7, 1
    $region12: #{gen_block_forward.3} parent=5 // pred_fallthru
      _
    %p74 = scmp.lt.s32.totalorder %s7, 2
    // Predicated region
    $region13: #{gen_block_forward.3} parent=5 // pred_check
      %p75 = pneg %p74
    $region14: #{gen_block_forward.3} parent=5 // pred_check_branch
      %77 = sbr.rel (%p75) target = $region16
    $region15: #{gen_block_forward.3} parent=5 // pred_region
      // Predicated region
      $region17: #{gen_block_forward.3} parent=15 // pred_check
        %p78 = pneg %p27
      $region18: #{gen_block_forward.3} parent=15 // pred_check_branch
        %80 = sbr.rel (%p78) target = $region20
      $region19: #{gen_block_forward.3} parent=15 // pred_region
        %p81 = scmp.lt.s32.totalorder %s7, 1
        %s82 = scalar_select %p81, %s7, 1
        %s83 = smul.addr %s82, 8
        %s84 = smul.addr %s83, 8
        %s85 = scalar_lea.vmem %s0, %s84
      $region20: #{gen_block_forward.3} parent=15 // pred_fallthru
        _
    $region16: #{gen_block_forward.3} parent=5 // pred_fallthru
      _
    %p86 = scmp.le.s32.totalorder 1, %s7
    %p87 = scmp.lt.s32.totalorder %s7, 3
    %p88 = pnand %p86, %p87
    %p89 = pneg %p88
    // Predicated region
    $region21: #{gen_block_forward.3} parent=5 // pred_check
      _
    $region22: #{gen_block_forward.3} parent=5 // pred_check_branch
      %91 = sbr.rel (%p88) target = $region24
    $region23: #{gen_block_forward.3} parent=5 // pred_region
      %s92 = ssub.s32 %s7, 1
      %p93 = scmp.lt.s32.totalorder %s12, 1
      %s94 = scalar_select %p93, %s12, 1
      %s95 = smul.addr %s94, 8
      %s96 = smul.addr %s95, 8
      %s97 = scalar_lea.vmem %s0, %s96
      %p98 = pneg %p33
      %p99 = pneg %p30
      %p100 = pneg %p59
      %p101 = pneg %p56
      %p102 = scmp.lt.s32.totalorder %s12, 1
      %s103 = scalar_select %p102, %s12, 1
      %s104 = smul.addr %s103, 2
      %s105 = scalar_lea.vmem %s1, %s104
      %p106 = scmp.lt.s32.totalorder %s12, 1
      %s107 = scalar_select %p106, %s12, 1
      %s108 = smul.addr %s107, 8
      %s109 = smul.addr %s108, 8
      %s110 = scalar_lea.vmem %s0, %s109
      %p111 = scmp.lt.s32.totalorder %s12, 1
      %s112 = scalar_select %p111, %s12, 1
      %s113 = smul.addr %s112, 2
      %s114 = scalar_lea.vmem %s1, %s113
      %v115 = vld [vmem:[%s110] sm:$0xff]
      %v116 = vld [vmem:[%s110 + $0x8] sm:$0xff]
      %v117 = vld [vmem:[%s110 + $0x10] sm:$0xff]
      %v118 = vld [vmem:[%s110 + $0x18] sm:$0xff]
      %v119 = vld [vmem:[%s110 + $0x20] sm:$0xff]
      %v120 = vld [vmem:[%s110 + $0x28] sm:$0xff]
      %v121 = vld [vmem:[%s110 + $0x30] sm:$0xff]
      %v122 = vld [vmem:[%s110 + $0x38] sm:$0xff]
      %vm123 = vcmask 31744
      %v124 = vsel %vm123, %v115, 0.0
      %v125 = vsel %vm123, %v116, 0.0
      %v126 = vadd.f32 %v124, %v125
      %v127 = vsel %vm123, %v117, 0.0
      %v128 = vadd.f32 %v126, %v127
      %v129 = vsel %vm123, %v118, 0.0
      %v130 = vadd.f32 %v128, %v129
      %v131 = vsel %vm123, %v119, 0.0
      %v132 = vadd.f32 %v130, %v131
      %v133 = vsel %vm123, %v120, 0.0
      %v134 = vadd.f32 %v132, %v133
      %v135 = vsel %vm123, %v121, 0.0
      %v136 = vadd.f32 %v134, %v135
      %v137 = vsel %vm123, %v122, 0.0
      %v138 = vadd.f32 %v136, %v137
      %v139 = vrot.slane %v138, 4
      %v140 = vadd.f32 %v138, %v139
      %v141 = vrot.slane %v140, 2
      %v142 = vadd.f32 %v140, %v141
      %v143 = vrot.slane %v142, 1
      %v144 = vadd.f32 %v142, %v143
      %v145 = vmul.f32 %v115, %v115
      %v146 = vmul.f32 %v116, %v116
      %v147 = vmul.f32 %v117, %v117
      %v148 = vmul.f32 %v118, %v118
      %v149 = vmul.f32 %v119, %v119
      %v150 = vmul.f32 %v120, %v120
      %v151 = vmul.f32 %v121, %v121
      %v152 = vmul.f32 %v122, %v122
      %v153 = vsel %vm123, %v145, 0.0
      %v154 = vsel %vm123, %v146, 0.0
      %v155 = vadd.f32 %v153, %v154
      %v156 = vsel %vm123, %v147, 0.0
      %v157 = vadd.f32 %v155, %v156
      %v158 = vsel %vm123, %v148, 0.0
      %v159 = vadd.f32 %v157, %v158
      %v160 = vsel %vm123, %v149, 0.0
      %v161 = vadd.f32 %v159, %v160
      %v162 = vsel %vm123, %v150, 0.0
      %v163 = vadd.f32 %v161, %v162
      %v164 = vsel %vm123, %v151, 0.0
      %v165 = vadd.f32 %v163, %v164
      %v166 = vsel %vm123, %v152, 0.0
      %v167 = vadd.f32 %v165, %v166
      %v168 = vrot.slane %v167, 4
      %v169 = vadd.f32 %v167, %v168
      %v170 = vrot.slane %v169, 2
      %v171 = vadd.f32 %v169, %v170
      %v172 = vrot.slane %v171, 1
      %v173 = vadd.f32 %v171, %v172
      %vm174 = vcmask 1040384
      %v175 = vsel %vm174, %v144, %v173
      %vm176 = vcmask 25600
      %177 = vst.msk [vmem:[%s114] sm:$0x3] %vm176, %v175
      %p178 = scmp.lt.s32.totalorder %s12, 1
      %s179 = scalar_select %p178, %s12, 1
      %s180 = smul.addr %s179, 2
      %s181 = scalar_lea.vmem %s1, %s180
      // Predicated region
      $region25: #{gen_block_forward.3} parent=23 // pred_check
        %p182 = pneg %p56
      $region26: #{gen_block_forward.3} parent=23 // pred_check_branch
        %184 = sbr.rel (%p182) target = $region28
      $region27: #{gen_block_forward.3} parent=23 // pred_region
        _
      $region28: #{gen_block_forward.3} parent=23 // pred_fallthru
        _
    $region24: #{gen_block_forward.3} parent=5 // pred_fallthru
      _
    %p185 = scmp.le.s32.totalorder 2, %s7
    // Predicated region
    $region29: #{gen_block_forward.3} parent=5 // pred_check
      %p186 = pneg %p185
    $region30: #{gen_block_forward.3} parent=5 // pred_check_branch
      %188 = sbr.rel (%p186) target = $region32
    $region31: #{gen_block_forward.3} parent=5 // pred_region
      %s189 = ssub.s32 %s7, 2
      // Predicated region
      $region33: #{gen_block_forward.3} parent=31 // pred_check
        %p190 = pneg %p62
      $region34: #{gen_block_forward.3} parent=31 // pred_check_branch
        %192 = sbr.rel (%p190) target = $region36
      $region35: #{gen_block_forward.3} parent=31 // pred_region
        %p193 = scmp.lt.s32.totalorder %s13, 1
        %s194 = scalar_select %p193, %s13, 1
        %s195 = smul.addr %s194, 2
        %s196 = scalar_lea.vmem %s1, %s195
      $region36: #{gen_block_forward.3} parent=31 // pred_fallthru
        _
    $region32: #{gen_block_forward.3} parent=5 // pred_fallthru
      _
  $region6: #{gen_block_forward.3} parent=0 // loop_footer
    %s11 = sadd.s32 1, %s7
  $region7: #{gen_block_forward.3} parent=0 // loop_footer_branch
    %6 = sbr.rel target = $region3
  $region8: #{gen_block_forward.3} parent=0 // loop_exit
    _

// kernel: gen_block_forward.4
$region0: #{gen_block_forward.4}
  #allocation0 [shape = 'u32[]', space=smem, size = 0x4, offset = 0x4, fixed_abs, tag = 'smem constant byte address 0x4 - core index']
  #allocation1 [shape = 'u32[144,128]{1,0:T(1,128)}', space=vmem, size = 0x12000, scoped, tag = 'internal scratch']
  #allocation2 [shape = 'f32[1,18,18,4]{3,2,1,0:T(8,128)}', space=vmem, size = 0x36000, scoped, tag = 'scratch operand']
  %s0 = inlined_call_operand.vmem [shape: f32[2,16,16,4], index: 0, kind: input, shape index: {}]
  %s1 = inlined_call_operand.vmem [shape: f32[2,1,1,4], index: 1, kind: input, shape index: {}]
  %s2 = inlined_call_operand.vmem [shape: f32[2,1,1,4], index: 2, kind: input, shape index: {}]
  %s3 = inlined_call_operand.vmem [shape: bf16[36,4], index: 3, kind: input, shape index: {}]
  %s4 = inlined_call_operand.vmem [shape: f32[1,4], index: 4, kind: input, shape index: {}]
  %s5 = inlined_call_operand.vmem [shape: f32[2,16,16,4], index: 5, kind: output, shape index: {0}]
  %s6 = inlined_call_operand.vmem [shape: f32[2,2,4], index: 6, kind: output, shape index: {1}]
  %7 = xla_tuple %s5, %s6
  %s8 = sld [smem:[#allocation0]]
  $region61: #{gen_block_forward.4} parent=0
    _
  %s10 = ssub.s32 1, %s8
  %s11 = scalar_select 0, %s10, %s8
  loop: start=0, step=1, limit=4
  $region2: #{gen_block_forward.4} parent=0 // loop_pre_header
    _
  $region3: #{gen_block_forward.4} parent=0 // loop_header
    %s13 = sphi 0, %s17
    %p14 = scmp.ge.s32.totalorder %s13, 4
    %s23 = sphi 0, %s25
    %s26 = sphi 0, %s23
    %s27 = sphi 0, %s26
    %s43 = sphi 0, %s27
    %s49 = sphi 0, %s51
    %s52 = sphi 0, %s49
    %s53 = sphi 0, %s52
    %s69 = sphi 0, %s53
    %s75 = sphi 0, %s77
    %s78 = sphi 0, %s75
    %s79 = sphi 0, %s78
    %s95 = sphi 0, %s79
    %s99 = sphi 0, %s99
    %s101 = sphi 0, %s99
    %s102 = sphi 0, %s101
    %s116 = sphi 0, %s102
    %s120 = sphi 0, %s120
    %s122 = sphi 0, %s120
    %s123 = sphi 0, %s122
    %s137 = sphi 0, %s123
    %s143 = sphi 0, %s145
    %s146 = sphi 0, %s143
    %s147 = sphi 0, %s146
    %s163 = sphi 0, %s147
    %s169 = sphi 0, %s171
    %s172 = sphi 0, %s169
    %s173 = sphi 0, %s172
    %s189 = sphi 0, %s173
  $region4: #{gen_block_forward.4} parent=0 // loop_header_branch
    %16 = sbr.rel (%p14) target = $region8
  $region5: #{gen_block_forward.4} parent=0 // loop_body
    %s18 = ssub.s32 %s13, 1
    %s19 = ssub.s32 %s13, 2
    %s20 = sadd.s32 %s13, 1
    %s21 = ssub.s32 %s13, %s20
    %p22 = scmp.eq.s32.totalorder %s21, 0
    %s24 = sadd.s32 %s23, 1
    %s25 = scalar_select %p22, %s23, %s24
    %p28 = pneg %p22
    %p29 = scmp.eq.s32.totalorder %s13, 1
    %p30 = por %p28, %p29
    %p31 = scmp.ne.s32.totalorder %s23, %s26
    %p32 = scmp.eq.s32.totalorder %s13, 0
    %p33 = por %p31, %p32
    %p34 = scmp.ne.s32.totalorder %s23, %s26
    %p35 = scmp.eq.s32.totalorder %s18, 1
    %p36 = por %p34, %p35
    %p37 = scmp.ne.s32.totalorder %s26, %s27
    %p38 = scmp.eq.s32.totalorder %s18, 0
    %p39 = por %p37, %p38
    %p40 = scmp.ne.s32.totalorder %s26, %s27
    %p41 = scmp.eq.s32.totalorder %s19, 1
    %p42 = por %p40, %p41
    %p44 = scmp.ne.s32.totalorder %s27, %s43
    %p45 = scmp.eq.s32.totalorder %s19, 0
    %p46 = por %p44, %p45
    %s47 = ssub.s32 %s13, %s20
    %p48 = scmp.eq.s32.totalorder %s47, 0
    %s50 = sadd.s32 %s49, 1
    %s51 = scalar_select %p48, %s49, %s50
    %p54 = pneg %p48
    %p55 = scmp.eq.s32.totalorder %s13, 1
    %p56 = por %p54, %p55
    %p57 = scmp.ne.s32.totalorder %s49, %s52
    %p58 = scmp.eq.s32.totalorder %s13, 0
    %p59 = por %p57, %p58
    %p60 = scmp.ne.s32.totalorder %s49, %s52
    %p61 = scmp.eq.s32.totalorder %s18, 1
    %p62 = por %p60, %p61
    %p63 = scmp.ne.s32.totalorder %s52, %s53
    %p64 = scmp.eq.s32.totalorder %s18, 0
    %p65 = por %p63, %p64
    %p66 = scmp.ne.s32.totalorder %s52, %s53
    %p67 = scmp.eq.s32.totalorder %s19, 1
    %p68 = por %p66, %p67
    %p70 = scmp.ne.s32.totalorder %s53, %s69
    %p71 = scmp.eq.s32.totalorder %s19, 0
    %p72 = por %p70, %p71
    %s73 = ssub.s32 %s13, %s20
    %p74 = scmp.eq.s32.totalorder %s73, 0
    %s76 = sadd.s32 %s75, 1
    %s77 = scalar_select %p74, %s75, %s76
    %p80 = pneg %p74
    %p81 = scmp.eq.s32.totalorder %s13, 1
    %p82 = por %p80, %p81
    %p83 = scmp.ne.s32.totalorder %s75, %s78
    %p84 = scmp.eq.s32.totalorder %s13, 0
    %p85 = por %p83, %p84
    %p86 = scmp.ne.s32.totalorder %s75, %s78
    %p87 = scmp.eq.s32.totalorder %s18, 1
    %p88 = por %p86, %p87
    %p89 = scmp.ne.s32.totalorder %s78, %s79
    %p90 = scmp.eq.s32.totalorder %s18, 0
    %p91 = por %p89, %p90
    %p92 = scmp.ne.s32.totalorder %s78, %s79
    %p93 = scmp.eq.s32.totalorder %s19, 1
    %p94 = por %p92, %p93
    %p96 = scmp.ne.s32.totalorder %s79, %s95
    %p97 = scmp.eq.s32.totalorder %s19, 0
    %p98 = por %p96, %p97
    %s100 = sadd.s32 %s99, 1
    %p103 = scmp.eq.s32.totalorder %s13, 1
    %p104 = scmp.ne.s32.totalorder %s99, %s101
    %p105 = scmp.eq.s32.totalorder %s13, 0
    %p106 = por %p104, %p105
    %p107 = scmp.ne.s32.totalorder %s99, %s101
    %p108 = scmp.eq.s32.totalorder %s18, 1
    %p109 = por %p107, %p108
    %p110 = scmp.ne.s32.totalorder %s101, %s102
    %p111 = scmp.eq.s32.totalorder %s18, 0
    %p112 = por %p110, %p111
    %p113 = scmp.ne.s32.totalorder %s101, %s102
    %p114 = scmp.eq.s32.totalorder %s19, 1
    %p115 = por %p113, %p114
    %p117 = scmp.ne.s32.totalorder %s102, %s116
    %p118 = scmp.eq.s32.totalorder %s19, 0
    %p119 = por %p117, %p118
    %s121 = sadd.s32 %s120, 1
    %p124 = scmp.eq.s32.totalorder %s13, 1
    %p125 = scmp.ne.s32.totalorder %s120, %s122
    %p126 = scmp.eq.s32.totalorder %s13, 0
    %p127 = por %p125, %p126
    %p128 = scmp.ne.s32.totalorder %s120, %s122
    %p129 = scmp.eq.s32.totalorder %s18, 1
    %p130 = por %p128, %p129
    %p131 = scmp.ne.s32.totalorder %s122, %s123
    %p132 = scmp.eq.s32.totalorder %s18, 0
    %p133 = por %p131, %p132
    %p134 = scmp.ne.s32.totalorder %s122, %s123
    %p135 = scmp.eq.s32.totalorder %s19, 1
    %p136 = por %p134, %p135
    %p138 = scmp.ne.s32.totalorder %s123, %s137
    %p139 = scmp.eq.s32.totalorder %s19, 0
    %p140 = por %p138, %p139
    %s141 = ssub.s32 %s13, %s20
    %p142 = scmp.eq.s32.totalorder %s141, 0
    %s144 = sadd.s32 %s143, 1
    %s145 = scalar_select %p142, %s143, %s144
    %p148 = pneg %p142
    %p149 = scmp.eq.s32.totalorder %s13, 1
    %p150 = por %p148, %p149
    %p151 = scmp.ne.s32.totalorder %s143, %s146
    %p152 = scmp.eq.s32.totalorder %s13, 0
    %p153 = por %p151, %p152
    %p154 = scmp.ne.s32.totalorder %s143, %s146
    %p155 = scmp.eq.s32.totalorder %s18, 1
    %p156 = por %p154, %p155
    %p157 = scmp.ne.s32.totalorder %s146, %s147
    %p158 = scmp.eq.s32.totalorder %s18, 0
    %p159 = por %p157, %p158
    %p160 = scmp.ne.s32.totalorder %s146, %s147
    %p161 = scmp.eq.s32.totalorder %s19, 1
    %p162 = por %p160, %p161
    %p164 = scmp.ne.s32.totalorder %s147, %s163
    %p165 = scmp.eq.s32.totalorder %s19, 0
    %p166 = por %p164, %p165
    %s167 = ssub.s32 %s13, %s20
    %p168 = scmp.eq.s32.totalorder %s167, 0
    %s170 = sadd.s32 %s169, 1
    %s171 = scalar_select %p168, %s169, %s170
    %p174 = pneg %p168
    %p175 = scmp.eq.s32.totalorder %s13, 1
    %p176 = por %p174, %p175
    %p177 = scmp.ne.s32.totalorder %s169, %s172
    %p178 = scmp.eq.s32.totalorder %s13, 0
    %p179 = por %p177, %p178
    %p180 = scmp.ne.s32.totalorder %s169, %s172
    %p181 = scmp.eq.s32.totalorder %s18, 1
    %p182 = por %p180, %p181
    %p183 = scmp.ne.s32.totalorder %s172, %s173
    %p184 = scmp.eq.s32.totalorder %s18, 0
    %p185 = por %p183, %p184
    %p186 = scmp.ne.s32.totalorder %s172, %s173
    %p187 = scmp.eq.s32.totalorder %s19, 1
    %p188 = por %p186, %p187
    %p190 = scmp.ne.s32.totalorder %s173, %s189
    %p191 = scmp.eq.s32.totalorder %s19, 0
    %p192 = por %p190, %p191
    %p193 = scmp.le.s32.totalorder 1, %s13
    %p194 = scmp.lt.s32.totalorder %s13, 3
    %p195 = pnand %p193, %p194
    %p196 = pneg %p195
    // Predicated region
    $region9: #{gen_block_forward.4} parent=5 // pred_check
      _
    $region10: #{gen_block_forward.4} parent=5 // pred_check_branch
      %198 = sbr.rel (%p195) target = $region12
    $region11: #{gen_block_forward.4} parent=5 // pred_region
      %s199 = ssub.s32 %s13, 1
      // Predicated region
      $region13: #{gen_block_forward.4} parent=11 // pred_check
        %p200 = pneg %p112
      $region14: #{gen_block_forward.4} parent=11 // pred_check_branch
        %202 = sbr.rel (%p200) target = $region16
      $region15: #{gen_block_forward.4} parent=11 // pred_region
        _
      $region16: #{gen_block_forward.4} parent=11 // pred_fallthru
        _
      // Predicated region
      $region17: #{gen_block_forward.4} parent=11 // pred_check
        %p203 = pneg %p133
      $region18: #{gen_block_forward.4} parent=11 // pred_check_branch
        %205 = sbr.rel (%p203) target = $region20
      $region19: #{gen_block_forward.4} parent=11 // pred_region
        _
      $region20: #{gen_block_forward.4} parent=11 // pred_fallthru
        _
    $region12: #{gen_block_forward.4} parent=5 // pred_fallthru
      _
    %p206 = scmp.lt.s32.totalorder %s13, 2
    // Predicated region
    $region21: #{gen_block_forward.4} parent=5 // pred_check
      %p207 = pneg %p206
    $region22: #{gen_block_forward.4} parent=5 // pred_check_branch
      %209 = sbr.rel (%p207) target = $region24
    $region23: #{gen_block_forward.4} parent=5 // pred_region
      // Predicated region
      $region25: #{gen_block_forward.4} parent=23 // pred_check
        %p210 = pneg %p33
      $region26: #{gen_block_forward.4} parent=23 // pred_check_branch
        %212 = sbr.rel (%p210) target = $region28
      $region27: #{gen_block_forward.4} parent=23 // pred_region
        %p213 = scmp.lt.s32.totalorder %s13, 1
        %s214 = scalar_select %p213, %s13, 1
        %s215 = smul.addr %s214, 32
        %s216 = smul.addr %s215, 8
        %s217 = scalar_lea.vmem %s0, %s216
      $region28: #{gen_block_forward.4} parent=23 // pred_fallthru
        _
      // Predicated region
      $region29: #{gen_block_forward.4} parent=23 // pred_check
        %p218 = pneg %p59
      $region30: #{gen_block_forward.4} parent=23 // pred_check_branch
        %220 = sbr.rel (%p218) target = $region32
      $region31: #{gen_block_forward.4} parent=23 // pred_region
        %p221 = scmp.lt.s32.totalorder %s13, 1
        %s222 = scalar_select %p221, %s13, 1
        %s223 = scalar_lea.vmem %s1, %s222
      $region32: #{gen_block_forward.4} parent=23 // pred_fallthru
        _
      // Predicated region
      $region33: #{gen_block_forward.4} parent=23 // pred_check
        %p224 = pneg %p85
      $region34: #{gen_block_forward.4} parent=23 // pred_check_branch
        %226 = sbr.rel (%p224) target = $region36
      $region35: #{gen_block_forward.4} parent=23 // pred_region
        %p227 = scmp.lt.s32.totalorder %s13, 1
        %s228 = scalar_select %p227, %s13, 1
        %s229 = scalar_lea.vmem %s2, %s228
      $region36: #{gen_block_forward.4} parent=23 // pred_fallthru
        _
    $region24: #{gen_block_forward.4} parent=5 // pred_fallthru
      _
    %p230 = scmp.le.s32.totalorder 1, %s13
    %p231 = scmp.lt.s32.totalorder %s13, 3
    %p232 = pnand %p230, %p231
    %p233 = pneg %p232
    // Predicated region
    $region37: #{gen_block_forward.4} parent=5 // pred_check
      _
    $region38: #{gen_block_forward.4} parent=5 // pred_check_branch
      %235 = sbr.rel (%p232) target = $region40
    $region39: #{gen_block_forward.4} parent=5 // pred_region
      %s236 = ssub.s32 %s13, 1
      %p237 = scmp.lt.s32.totalorder %s18, 1
      %s238 = scalar_select %p237, %s18, 1
      %s239 = smul.addr %s238, 32
      %s240 = smul.addr %s239, 8
      %s241 = scalar_lea.vmem %s0, %s240
      %p242 = pneg %p39
      %p243 = pneg %p36
      %p244 = scmp.lt.s32.totalorder %s18, 1
      %s245 = scalar_select %p244, %s18, 1
      %s246 = scalar_lea.vmem %s1, %s245
      %p247 = pneg %p65
      %p248 = pneg %p62
      %p249 = scmp.lt.s32.totalorder %s18, 1
      %s250 = scalar_select %p249, %s18, 1
      %s251 = scalar_lea.vmem %s2, %s250
      %p252 = pneg %p91
      %p253 = pneg %p88
      %p254 = pneg %p112
      %p255 = pneg %p109
      %p256 = pneg %p133
      %p257 = pneg %p130
      %p258 = pneg %p159
      %p259 = pneg %p156
      %p260 = scmp.lt.s32.totalorder %s18, 1
      %s261 = scalar_select %p260, %s18, 1
      %s262 = smul.addr %s261, 32
      %s263 = smul.addr %s262, 8
      %s264 = scalar_lea.vmem %s5, %s263
      %p265 = pneg %p185
      %p266 = pneg %p182
      %p267 = scmp.lt.s32.totalorder %s18, 1
      %s268 = scalar_select %p267, %s18, 1
      %s269 = smul.addr %s268, 2
      %s270 = scalar_lea.vmem %s6, %s269
      %p271 = scmp.lt.s32.totalorder %s18, 1
      %s272 = scalar_select %p271, %s18, 1
      %s273 = smul.addr %s272, 32
      %s274 = smul.addr %s273, 8
      %s275 = scalar_lea.vmem %s0, %s274
      %p276 = scmp.lt.s32.totalorder %s18, 1
      %s277 = scalar_select %p276, %s18, 1
      %s278 = scalar_lea.vmem %s1, %s277
      %p279 = scmp.lt.s32.totalorder %s18, 1
      %s280 = scalar_select %p279, %s18, 1
      %s281 = scalar_lea.vmem %s2, %s280
      %p282 = scmp.lt.s32.totalorder %s18, 1
      %s283 = scalar_select %p282, %s18, 1
      %s284 = smul.addr %s283, 32
      %s285 = smul.addr %s284, 8
      %s286 = scalar_lea.vmem %s5, %s285
      %p287 = scmp.lt.s32.totalorder %s18, 1
      %s288 = scalar_select %p287, %s18, 1
      %s289 = smul.addr %s288, 2
      %s290 = scalar_lea.vmem %s6, %s289
      %v292 = vld [vmem:[%s275] sm:$0xff]
      %v293 = vld [vmem:[%s275 + $0x8] sm:$0xff]
      %v294 = vld [vmem:[%s275 + $0x10] sm:$0xff]
      %v295 = vld [vmem:[%s275 + $0x18] sm:$0xff]
      %v296 = vld [vmem:[%s275 + $0x20] sm:$0xff]
      %v297 = vld [vmem:[%s275 + $0x28] sm:$0xff]
      %v298 = vld [vmem:[%s275 + $0x30] sm:$0xff]
      %v299 = vld [vmem:[%s275 + $0x38] sm:$0xff]
      %v300 = vld [vmem:[%s275 + $0x40] sm:$0xff]
      %v301 = vld [vmem:[%s275 + $0x48] sm:$0xff]
      %v302 = vld [vmem:[%s275 + $0x50] sm:$0xff]
      %v303 = vld [vmem:[%s275 + $0x58] sm:$0xff]
      %v304 = vld [vmem:[%s275 + $0x60] sm:$0xff]
      %v305 = vld [vmem:[%s275 + $0x68] sm:$0xff]
      %v306 = vld [vmem:[%s275 + $0x70] sm:$0xff]
      %v307 = vld [vmem:[%s275 + $0x78] sm:$0xff]
      %v308 = vld [vmem:[%s275 + $0x80] sm:$0xff]
      %v309 = vld [vmem:[%s275 + $0x88] sm:$0xff]
      %v310 = vld [vmem:[%s275 + $0x90] sm:$0xff]
      %v311 = vld [vmem:[%s275 + $0x98] sm:$0xff]
      %v312 = vld [vmem:[%s275 + $0xa0] sm:$0xff]
      %v313 = vld [vmem:[%s275 + $0xa8] sm:$0xff]
      %v314 = vld [vmem:[%s275 + $0xb0] sm:$0xff]
      %v315 = vld [vmem:[%s275 + $0xb8] sm:$0xff]
      %v316 = vld [vmem:[%s275 + $0xc0] sm:$0xff]
      %v317 = vld [vmem:[%s275 + $0xc8] sm:$0xff]
      %v318 = vld [vmem:[%s275 + $0xd0] sm:$0xff]
      %v319 = vld [vmem:[%s275 + $0xd8] sm:$0xff]
      %v320 = vld [vmem:[%s275 + $0xe0] sm:$0xff]
      %v321 = vld [vmem:[%s275 + $0xe8] sm:$0xff]
      %v322 = vld [vmem:[%s275 + $0xf0] sm:$0xff]
      %v323 = vld [vmem:[%s275 + $0xf8] sm:$0xff]
      %v324 = vld [vmem:[%s278] sm:$0x1]
      %v326 = vlaneseq
      %v327 = vshrl.u32 %v326, 7
      %v328 = vsub.s32 0, %v327
      %v329 = vrot.slane %v324, %v328
      %v331 = vmul.f32 %v292, %v329
      %v332 = vmul.f32 %v293, %v329
      %v333 = vmul.f32 %v294, %v329
      %v334 = vmul.f32 %v295, %v329
      %v335 = vmul.f32 %v296, %v329
      %v336 = vmul.f32 %v297, %v329
      %v337 = vmul.f32 %v298, %v329
      %v338 = vmul.f32 %v299, %v329
      %v339 = vmul.f32 %v300, %v329
      %v340 = vmul.f32 %v301, %v329
      %v341 = vmul.f32 %v302, %v329
      %v342 = vmul.f32 %v303, %v329
      %v343 = vmul.f32 %v304, %v329
      %v344 = vmul.f32 %v305, %v329
      %v345 = vmul.f32 %v306, %v329
      %v346 = vmul.f32 %v307, %v329
      %v347 = vmul.f32 %v308, %v329
      %v348 = vmul.f32 %v309, %v329
      %v349 = vmul.f32 %v310, %v329
      %v350 = vmul.f32 %v311, %v329
      %v351 = vmul.f32 %v312, %v329
      %v352 = vmul.f32 %v313, %v329
      %v353 = vmul.f32 %v314, %v329
      %v354 = vmul.f32 %v315, %v329
      %v355 = vmul.f32 %v316, %v329
      %v356 = vmul.f32 %v317, %v329
      %v357 = vmul.f32 %v318, %v329
      %v358 = vmul.f32 %v319, %v329
      %v359 = vmul.f32 %v320, %v329
      %v360 = vmul.f32 %v321, %v329
      %v361 = vmul.f32 %v322, %v329
      %v362 = vmul.f32 %v323, %v329
      %v363 = vld [vmem:[%s281] sm:$0x1]
      %v365 = vlaneseq
      %v366 = vshrl.u32 %v365, 7
      %v367 = vsub.s32 0, %v366
      %v368 = vrot.slane %v363, %v367
      %v370 = vadd.f32 %v331, %v368
      %v371 = vadd.f32 %v332, %v368
      %v372 = vadd.f32 %v333, %v368
      %v373 = vadd.f32 %v334, %v368
      %v374 = vadd.f32 %v335, %v368
      %v375 = vadd.f32 %v336, %v368
      %v376 = vadd.f32 %v337, %v368
      %v377 = vadd.f32 %v338, %v368
      %v378 = vadd.f32 %v339, %v368
      %v379 = vadd.f32 %v340, %v368
      %v380 = vadd.f32 %v341, %v368
      %v381 = vadd.f32 %v342, %v368
      %v382 = vadd.f32 %v343, %v368
      %v383 = vadd.f32 %v344, %v368
      %v384 = vadd.f32 %v345, %v368
      %v385 = vadd.f32 %v346, %v368
      %v386 = vadd.f32 %v347, %v368
      %v387 = vadd.f32 %v348, %v368
      %v388 = vadd.f32 %v349, %v368
      %v389 = vadd.f32 %v350, %v368
      %v390 = vadd.f32 %v351, %v368
      %v391 = vadd.f32 %v352, %v368
      %v392 = vadd.f32 %v353, %v368
      %v393 = vadd.f32 %v354, %v368
      %v394 = vadd.f32 %v355, %v368
      %v395 = vadd.f32 %v356, %v368
      %v396 = vadd.f32 %v357, %v368
      %v397 = vadd.f32 %v358, %v368
      %v398 = vadd.f32 %v359, %v368
      %v399 = vadd.f32 %v360, %v368
      %v400 = vadd.f32 %v361, %v368
      %v401 = vadd.f32 %v362, %v368
      %v402 = vmax.f32 %v370, 0.0
      %v403 = vmax.f32 %v371, 0.0
      %v404 = vmax.f32 %v372, 0.0
      %v405 = vmax.f32 %v373, 0.0
      %v406 = vmax.f32 %v374, 0.0
      %v407 = vmax.f32 %v375, 0.0
      %v408 = vmax.f32 %v376, 0.0
      %v409 = vmax.f32 %v377, 0.0
      %v410 = vmax.f32 %v378, 0.0
      %v411 = vmax.f32 %v379, 0.0
      %v412 = vmax.f32 %v380, 0.0
      %v413 = vmax.f32 %v381, 0.0
      %v414 = vmax.f32 %v382, 0.0
      %v415 = vmax.f32 %v383, 0.0
      %v416 = vmax.f32 %v384, 0.0
      %v417 = vmax.f32 %v385, 0.0
      %v418 = vmax.f32 %v386, 0.0
      %v419 = vmax.f32 %v387, 0.0
      %v420 = vmax.f32 %v388, 0.0
      %v421 = vmax.f32 %v389, 0.0
      %v422 = vmax.f32 %v390, 0.0
      %v423 = vmax.f32 %v391, 0.0
      %v424 = vmax.f32 %v392, 0.0
      %v425 = vmax.f32 %v393, 0.0
      %v426 = vmax.f32 %v394, 0.0
      %v427 = vmax.f32 %v395, 0.0
      %v428 = vmax.f32 %v396, 0.0
      %v429 = vmax.f32 %v397, 0.0
      %v430 = vmax.f32 %v398, 0.0
      %v431 = vmax.f32 %v399, 0.0
      %v432 = vmax.f32 %v400, 0.0
      %v433 = vmax.f32 %v401, 0.0
      %vm434 = vcmask 31744
      %435 = vst.msk [vmem:[#allocation2] sm:$0xff] %vm434, 0.0
      %436 = vst.msk [vmem:[#allocation2 + $0x8] sm:$0xff] %vm434, 0.0
      %vm437 = vcmask 25600
      %438 = vst.msk [vmem:[#allocation2 + $0x10] sm:$0x3] %vm437, 0.0
      %439 = vst.msk [vmem:[#allocation2 + $0x18] sm:$0xff] %vm434, 0.0
      %440 = vst.msk [vmem:[#allocation2 + $0x20] sm:$0xff] %vm434, 0.0
      %441 = vst.msk [vmem:[#allocation2 + $0x28] sm:$0x3] %vm437, 0.0
      %442 = vst.msk [vmem:[#allocation2 + $0x30] sm:$0xff] %vm434, 0.0
      %443 = vst.msk [vmem:[#allocation2 + $0x38] sm:$0xff] %vm434, 0.0
      %444 = vst.msk [vmem:[#allocation2 + $0x40] sm:$0x3] %vm437, 0.0
      %445 = vst.msk [vmem:[#allocation2 + $0x48] sm:$0xff] %vm434, 0.0
      %446 = vst.msk [vmem:[#allocation2 + $0x50] sm:$0xff] %vm434, 0.0
      %447 = vst.msk [vmem:[#allocation2 + $0x58] sm:$0x3] %vm437, 0.0
      %448 = vst.msk [vmem:[#allocation2 + $0x60] sm:$0xff] %vm434, 0.0
      %449 = vst.msk [vmem:[#allocation2 + $0x68] sm:$0xff] %vm434, 0.0
      %450 = vst.msk [vmem:[#allocation2 + $0x70] sm:$0x3] %vm437, 0.0
      %451 = vst.msk [vmem:[#allocation2 + $0x78] sm:$0xff] %vm434, 0.0
      %452 = vst.msk [vmem:[#allocation2 + $0x80] sm:$0xff] %vm434, 0.0
      %453 = vst.msk [vmem:[#allocation2 + $0x88] sm:$0x3] %vm437, 0.0
      %454 = vst.msk [vmem:[#allocation2 + $0x90] sm:$0xff] %vm434, 0.0
      %455 = vst.msk [vmem:[#allocation2 + $0x98] sm:$0xff] %vm434, 0.0
      %456 = vst.msk [vmem:[#allocation2 + $0xa0] sm:$0x3] %vm437, 0.0
      %457 = vst.msk [vmem:[#allocation2 + $0xa8] sm:$0xff] %vm434, 0.0
      %458 = vst.msk [vmem:[#allocation2 + $0xb0] sm:$0xff] %vm434, 0.0
      %459 = vst.msk [vmem:[#allocation2 + $0xb8] sm:$0x3] %vm437, 0.0
      %460 = vst.msk [vmem:[#allocation2 + $0xc0] sm:$0xff] %vm434, 0.0
      %461 = vst.msk [vmem:[#allocation2 + $0xc8] sm:$0xff] %vm434, 0.0
      %462 = vst.msk [vmem:[#allocation2 + $0xd0] sm:$0x3] %vm437, 0.0
      %463 = vst.msk [vmem:[#allocation2 + $0xd8] sm:$0xff] %vm434, 0.0
      %464 = vst.msk [vmem:[#allocation2 + $0xe0] sm:$0xff] %vm434, 0.0
      %465 = vst.msk [vmem:[#allocation2 + $0xe8] sm:$0x3] %vm437, 0.0
      %466 = vst.msk [vmem:[#allocation2 + $0xf0] sm:$0xff] %vm434, 0.0
      %467 = vst.msk [vmem:[#allocation2 + $0xf8] sm:$0xff] %vm434, 0.0
      %468 = vst.msk [vmem:[#allocation2 + $0x100] sm:$0x3] %vm437, 0.0
      %469 = vst.msk [vmem:[#allocation2 + $0x108] sm:$0xff] %vm434, 0.0
      %470 = vst.msk [vmem:[#allocation2 + $0x110] sm:$0xff] %vm434, 0.0
      %471 = vst.msk [vmem:[#allocation2 + $0x118] sm:$0x3] %vm437, 0.0
      %472 = vst.msk [vmem:[#allocation2 + $0x120] sm:$0xff] %vm434, 0.0
      %473 = vst.msk [vmem:[#allocation2 + $0x128] sm:$0xff] %vm434, 0.0
      %474 = vst.msk [vmem:[#allocation2 + $0x130] sm:$0x3] %vm437, 0.0
      %475 = vst.msk [vmem:[#allocation2 + $0x138] sm:$0xff] %vm434, 0.0
      %476 = vst.msk [vmem:[#allocation2 + $0x140] sm:$0xff] %vm434, 0.0
      %477 = vst.msk [vmem:[#allocation2 + $0x148] sm:$0x3] %vm437, 0.0
      %478 = vst.msk [vmem:[#allocation2 + $0x150] sm:$0xff] %vm434, 0.0
      %479 = vst.msk [vmem:[#allocation2 + $0x158] sm:$0xff] %vm434, 0.0
      %480 = vst.msk [vmem:[#allocation2 + $0x160] sm:$0x3] %vm437, 0.0
      %481 = vst.msk [vmem:[#allocation2 + $0x168] sm:$0xff] %vm434, 0.0
      %482 = vst.msk [vmem:[#allocation2 + $0x170] sm:$0xff] %vm434, 0.0
      %483 = vst.msk [vmem:[#allocation2 + $0x178] sm:$0x3] %vm437, 0.0
      %484 = vst.msk [vmem:[#allocation2 + $0x180] sm:$0xff] %vm434, 0.0
      %485 = vst.msk [vmem:[#allocation2 + $0x188] sm:$0xff] %vm434, 0.0
      %486 = vst.msk [vmem:[#allocation2 + $0x190] sm:$0x3] %vm437, 0.0
      %487 = vst.msk [vmem:[#allocation2 + $0x198] sm:$0xff] %vm434, 0.0
      %488 = vst.msk [vmem:[#allocation2 + $0x1a0] sm:$0xff] %vm434, 0.0
      %489 = vst.msk [vmem:[#allocation2 + $0x1a8] sm:$0x3] %vm437, 0.0
      %s490 = scalar_lea.vmem [#allocation2], 24
      %491 = vst.msk [vmem:[%s490 + $0x1] sm:$0xff] %vm434, %v402
      %492 = vst.msk [vmem:[%s490 + $0x9] sm:$0xff] %vm434, %v403
      %493 = vst.msk [vmem:[%s490 + $0x19] sm:$0xff] %vm434, %v404
      %494 = vst.msk [vmem:[%s490 + $0x21] sm:$0xff] %vm434, %v405
      %495 = vst.msk [vmem:[%s490 + $0x31] sm:$0xff] %vm434, %v406
      %496 = vst.msk [vmem:[%s490 + $0x39] sm:$0xff] %vm434, %v407
      %497 = vst.msk [vmem:[%s490 + $0x49] sm:$0xff] %vm434, %v408
      %498 = vst.msk [vmem:[%s490 + $0x51] sm:$0xff] %vm434, %v409
      %499 = vst.msk [vmem:[%s490 + $0x61] sm:$0xff] %vm434, %v410
      %500 = vst.msk [vmem:[%s490 + $0x69] sm:$0xff] %vm434, %v411
      %501 = vst.msk [vmem:[%s490 + $0x79] sm:$0xff] %vm434, %v412
      %502 = vst.msk [vmem:[%s490 + $0x81] sm:$0xff] %vm434, %v413
      %503 = vst.msk [vmem:[%s490 + $0x91] sm:$0xff] %vm434, %v414
      %504 = vst.msk [vmem:[%s490 + $0x99] sm:$0xff] %vm434, %v415
      %505 = vst.msk [vmem:[%s490 + $0xa9] sm:$0xff] %vm434, %v416
      %506 = vst.msk [vmem:[%s490 + $0xb1] sm:$0xff] %vm434, %v417
      %507 = vst.msk [vmem:[%s490 + $0xc1] sm:$0xff] %vm434, %v418
      %508 = vst.msk [vmem:[%s490 + $0xc9] sm:$0xff] %vm434, %v419
      %509 = vst.msk [vmem:[%s490 + $0xd9] sm:$0xff] %vm434, %v420
      %510 = vst.msk [vmem:[%s490 + $0xe1] sm:$0xff] %vm434, %v421
      %511 = vst.msk [vmem:[%s490 + $0xf1] sm:$0xff] %vm434, %v422
      %512 = vst.msk [vmem:[%s490 + $0xf9] sm:$0xff] %vm434, %v423
      %513 = vst.msk [vmem:[%s490 + $0x109] sm:$0xff] %vm434, %v424
      %514 = vst.msk [vmem:[%s490 + $0x111] sm:$0xff] %vm434, %v425
      %515 = vst.msk [vmem:[%s490 + $0x121] sm:$0xff] %vm434, %v426
      %516 = vst.msk [vmem:[%s490 + $0x129] sm:$0xff] %vm434, %v427
      %517 = vst.msk [vmem:[%s490 + $0x139] sm:$0xff] %vm434, %v428
      %518 = vst.msk [vmem:[%s490 + $0x141] sm:$0xff] %vm434, %v429
      %519 = vst.msk [vmem:[%s490 + $0x151] sm:$0xff] %vm434, %v430
      %520 = vst.msk [vmem:[%s490 + $0x159] sm:$0xff] %vm434, %v431
      %521 = vst.msk [vmem:[%s490 + $0x169] sm:$0xff] %vm434, %v432
      %522 = vst.msk [vmem:[%s490 + $0x171] sm:$0xff] %vm434, %v433
      %v523 = vld [vmem:[#allocation2] sm:$0xff]
      %v524 = vld [vmem:[#allocation2 + $0x8] sm:$0xff]
      %v525 = vld [vmem:[#allocation2 + $0x18] sm:$0xff]
      %v526 = vld [vmem:[#allocation2 + $0x20] sm:$0xff]
      %v527 = vld [vmem:[#allocation2 + $0x30] sm:$0xff]
      %v528 = vld [vmem:[#allocation2 + $0x38] sm:$0xff]
      %v529 = vld [vmem:[#allocation2 + $0x48] sm:$0xff]
      %v530 = vld [vmem:[#allocation2 + $0x50] sm:$0xff]
      %v531 = vld [vmem:[#allocation2 + $0x60] sm:$0xff]
      %v532 = vld [vmem:[#allocation2 + $0x68] sm:$0xff]
      %v533 = vld [vmem:[#allocation2 + $0x78] sm:$0xff]
      %v534 = vld [vmem:[#allocation2 + $0x80] sm:$0xff]
      %v535 = vld [vmem:[#allocation2 + $0x90] sm:$0xff]
      %v536 = vld [vmem:[#allocation2 + $0x98] sm:$0xff]
      %v537 = vld [vmem:[#allocation2 + $0xa8] sm:$0xff]
      %v538 = vld [vmem:[#allocation2 + $0xb0] sm:$0xff]
      %v539 = vld [vmem:[#allocation2 + $0xc0] sm:$0xff]
      %v540 = vld [vmem:[#allocation2 + $0xc8] sm:$0xff]
      %v541 = vld [vmem:[#allocation2 + $0xd8] sm:$0xff]
      %v542 = vld [vmem:[#allocation2 + $0xe0] sm:$0xff]
      %v543 = vld [vmem:[#allocation2 + $0xf0] sm:$0xff]
      %v544 = vld [vmem:[#allocation2 + $0xf8] sm:$0xff]
      %v545 = vld [vmem:[#allocation2 + $0x108] sm:$0xff]
      %v546 = vld [vmem:[#allocation2 + $0x110] sm:$0xff]
      %v547 = vld [vmem:[#allocation2 + $0x120] sm:$0xff]
      %v548 = vld [vmem:[#allocation2 + $0x128] sm:$0xff]
      %v549 = vld [vmem:[#allocation2 + $0x138] sm:$0xff]
      %v550 = vld [vmem:[#allocation2 + $0x140] sm:$0xff]
      %v551 = vld [vmem:[#allocation2 + $0x150] sm:$0xff]
      %v552 = vld [vmem:[#allocation2 + $0x158] sm:$0xff]
      %v553 = vld [vmem:[#allocation2 + $0x168] sm:$0xff]
      %v554 = vld [vmem:[#allocation2 + $0x170] sm:$0xff]
      %v555 = vld [vmem:[#allocation2 + $0x1] sm:$0xff]
      %v556 = vld [vmem:[#allocation2 + $0x9] sm:$0xff]
      %v557 = vld [vmem:[#allocation2 + $0x19] sm:$0xff]
      %v558 = vld [vmem:[#allocation2 + $0x21] sm:$0xff]
      %v559 = vld [vmem:[#allocation2 + $0x31] sm:$0xff]
      %v560 = vld [vmem:[#allocation2 + $0x39] sm:$0xff]
      %v561 = vld [vmem:[#allocation2 + $0x49] sm:$0xff]
      %v562 = vld [vmem:[#allocation2 + $0x51] sm:$0xff]
      %v563 = vld [vmem:[#allocation2 + $0x61] sm:$0xff]
      %v564 = vld [vmem:[#allocation2 + $0x69] sm:$0xff]
      %v565 = vld [vmem:[#allocation2 + $0x79] sm:$0xff]
      %v566 = vld [vmem:[#allocation2 + $0x81] sm:$0xff]
      %v567 = vld [vmem:[#allocation2 + $0x91] sm:$0xff]
      %v568 = vld [vmem:[#allocation2 + $0x99] sm:$0xff]
      %v569 = vld [vmem:[#allocation2 + $0xa9] sm:$0xff]
      %v570 = vld [vmem:[#allocation2 + $0xb1] sm:$0xff]
      %v571 = vld [vmem:[#allocation2 + $0xc1] sm:$0xff]
      %v572 = vld [vmem:[#allocation2 + $0xc9] sm:$0xff]
      %v573 = vld [vmem:[#allocation2 + $0xd9] sm:$0xff]
      %v574 = vld [vmem:[#allocation2 + $0xe1] sm:$0xff]
      %v575 = vld [vmem:[#allocation2 + $0xf1] sm:$0xff]
      %v576 = vld [vmem:[#allocation2 + $0xf9] sm:$0xff]
      %v577 = vld [vmem:[#allocation2 + $0x109] sm:$0xff]
      %v578 = vld [vmem:[#allocation2 + $0x111] sm:$0xff]
      %v579 = vld [vmem:[#allocation2 + $0x121] sm:$0xff]
      %v580 = vld [vmem:[#allocation2 + $0x129] sm:$0xff]
      %v581 = vld [vmem:[#allocation2 + $0x139] sm:$0xff]
      %v582 = vld [vmem:[#allocation2 + $0x141] sm:$0xff]
      %v583 = vld [vmem:[#allocation2 + $0x151] sm:$0xff]
      %v584 = vld [vmem:[#allocation2 + $0x159] sm:$0xff]
      %v585 = vld [vmem:[#allocation2 + $0x169] sm:$0xff]
      %v586 = vld [vmem:[#allocation2 + $0x171] sm:$0xff]
      %v587 = vld [vmem:[#allocation2 + $0x2] sm:$0xff]
      %v588 = vld [vmem:[#allocation2 + $0xa] sm:$0xff]
      %v589 = vld [vmem:[#allocation2 + $0x1a] sm:$0xff]
      %v590 = vld [vmem:[#allocation2 + $0x22] sm:$0xff]
      %v591 = vld [vmem:[#allocation2 + $0x32] sm:$0xff]
      %v592 = vld [vmem:[#allocation2 + $0x3a] sm:$0xff]
      %v593 = vld [vmem:[#allocation2 + $0x4a] sm:$0xff]
      %v594 = vld [vmem:[#allocation2 + $0x52] sm:$0xff]
      %v595 = vld [vmem:[#allocation2 + $0x62] sm:$0xff]
      %v596 = vld [vmem:[#allocation2 + $0x6a] sm:$0xff]
      %v597 = vld [vmem:[#allocation2 + $0x7a] sm:$0xff]
      %v598 = vld [vmem:[#allocation2 + $0x82] sm:$0xff]
      %v599 = vld [vmem:[#allocation2 + $0x92] sm:$0xff]
      %v600 = vld [vmem:[#allocation2 + $0x9a] sm:$0xff]
      %v601 = vld [vmem:[#allocation2 + $0xaa] sm:$0xff]
      %v602 = vld [vmem:[#allocation2 + $0xb2] sm:$0xff]
      %v603 = vld [vmem:[#allocation2 + $0xc2] sm:$0xff]
      %v604 = vld [vmem:[#allocation2 + $0xca] sm:$0xff]
      %v605 = vld [vmem:[#allocation2 + $0xda] sm:$0xff]
      %v606 = vld [vmem:[#allocation2 + $0xe2] sm:$0xff]
      %v607 = vld [vmem:[#allocation2 + $0xf2] sm:$0xff]
      %v608 = vld [vmem:[#allocation2 + $0xfa] sm:$0xff]
      %v609 = vld [vmem:[#allocation2 + $0x10a] sm:$0xff]
      %v610 = vld [vmem:[#allocation2 + $0x112] sm:$0xff]
      %v611 = vld [vmem:[#allocation2 + $0x122] sm:$0xff]
      %v612 = vld [vmem:[#allocation2 + $0x12a] sm:$0xff]
      %v613 = vld [vmem:[#allocation2 + $0x13a] sm:$0xff]
      %v614 = vld [vmem:[#allocation2 + $0x142] sm:$0xff]
      %v615 = vld [vmem:[#allocation2 + $0x152] sm:$0xff]
      %v616 = vld [vmem:[#allocation2 + $0x15a] sm:$0xff]
      %v617 = vld [vmem:[#allocation2 + $0x16a] sm:$0xff]
      %v618 = vld [vmem:[#allocation2 + $0x172] sm:$0xff]
      %v619 = vld [vmem:[%s490] sm:$0xff]
      %v620 = vld [vmem:[%s490 + $0x8] sm:$0xff]
      %v621 = vld [vmem:[%s490 + $0x18] sm:$0xff]
      %v622 = vld [vmem:[%s490 + $0x20] sm:$0xff]
      %v623 = vld [vmem:[%s490 + $0x30] sm:$0xff]
      %v624 = vld [vmem:[%s490 + $0x38] sm:$0xff]
      %v625 = vld [vmem:[%s490 + $0x48] sm:$0xff]
      %v626 = vld [vmem:[%s490 + $0x50] sm:$0xff]
      %v627 = vld [vmem:[%s490 + $0x60] sm:$0xff]
      %v628 = vld [vmem:[%s490 + $0x68] sm:$0xff]
      %v629 = vld [vmem:[%s490 + $0x78] sm:$0xff]
      %v630 = vld [vmem:[%s490 + $0x80] sm:$0xff]
      %v631 = vld [vmem:[%s490 + $0x90] sm:$0xff]
      %v632 = vld [vmem:[%s490 + $0x98] sm:$0xff]
      %v633 = vld [vmem:[%s490 + $0xa8] sm:$0xff]
      %v634 = vld [vmem:[%s490 + $0xb0] sm:$0xff]
      %v635 = vld [vmem:[%s490 + $0xc0] sm:$0xff]
      %v636 = vld [vmem:[%s490 + $0xc8] sm:$0xff]
      %v637 = vld [vmem:[%s490 + $0xd8] sm:$0xff]
      %v638 = vld [vmem:[%s490 + $0xe0] sm:$0xff]
      %v639 = vld [vmem:[%s490 + $0xf0] sm:$0xff]
      %v640 = vld [vmem:[%s490 + $0xf8] sm:$0xff]
      %v641 = vld [vmem:[%s490 + $0x108] sm:$0xff]
      %v642 = vld [vmem:[%s490 + $0x110] sm:$0xff]
      %v643 = vld [vmem:[%s490 + $0x120] sm:$0xff]
      %v644 = vld [vmem:[%s490 + $0x128] sm:$0xff]
      %v645 = vld [vmem:[%s490 + $0x138] sm:$0xff]
      %v646 = vld [vmem:[%s490 + $0x140] sm:$0xff]
      %v647 = vld [vmem:[%s490 + $0x150] sm:$0xff]
      %v648 = vld [vmem:[%s490 + $0x158] sm:$0xff]
      %v649 = vld [vmem:[%s490 + $0x168] sm:$0xff]
      %v650 = vld [vmem:[%s490 + $0x170] sm:$0xff]
      %v651 = vld [vmem:[%s490 + $0x1] sm:$0xff]
      %v652 = vld [vmem:[%s490 + $0x9] sm:$0xff]
      %v653 = vld [vmem:[%s490 + $0x19] sm:$0xff]
      %v654 = vld [vmem:[%s490 + $0x21] sm:$0xff]
      %v655 = vld [vmem:[%s490 + $0x31] sm:$0xff]
      %v656 = vld [vmem:[%s490 + $0x39] sm:$0xff]
      %v657 = vld [vmem:[%s490 + $0x49] sm:$0xff]
      %v658 = vld [vmem:[%s490 + $0x51] sm:$0xff]
      %v659 = vld [vmem:[%s490 + $0x61] sm:$0xff]
      %v660 = vld [vmem:[%s490 + $0x69] sm:$0xff]
      %v661 = vld [vmem:[%s490 + $0x79] sm:$0xff]
      %v662 = vld [vmem:[%s490 + $0x81] sm:$0xff]
      %v663 = vld [vmem:[%s490 + $0x91] sm:$0xff]
      %v664 = vld [vmem:[%s490 + $0x99] sm:$0xff]
      %v665 = vld [vmem:[%s490 + $0xa9] sm:$0xff]
      %v666 = vld [vmem:[%s490 + $0xb1] sm:$0xff]
      %v667 = vld [vmem:[%s490 + $0xc1] sm:$0xff]
      %v668 = vld [vmem:[%s490 + $0xc9] sm:$0xff]
      %v669 = vld [vmem:[%s490 + $0xd9] sm:$0xff]
      %v670 = vld [vmem:[%s490 + $0xe1] sm:$0xff]
      %v671 = vld [vmem:[%s490 + $0xf1] sm:$0xff]
      %v672 = vld [vmem:[%s490 + $0xf9] sm:$0xff]
      %v673 = vld [vmem:[%s490 + $0x109] sm:$0xff]
      %v674 = vld [vmem:[%s490 + $0x111] sm:$0xff]
      %v675 = vld [vmem:[%s490 + $0x121] sm:$0xff]
      %v676 = vld [vmem:[%s490 + $0x129] sm:$0xff]
      %v677 = vld [vmem:[%s490 + $0x139] sm:$0xff]
      %v678 = vld [vmem:[%s490 + $0x141] sm:$0xff]
      %v679 = vld [vmem:[%s490 + $0x151] sm:$0xff]
      %v680 = vld [vmem:[%s490 + $0x159] sm:$0xff]
      %v681 = vld [vmem:[%s490 + $0x169] sm:$0xff]
      %v682 = vld [vmem:[%s490 + $0x171] sm:$0xff]
      %v683 = vld [vmem:[%s490 + $0x2] sm:$0xff]
      %v684 = vld [vmem:[%s490 + $0xa] sm:$0xff]
      %v685 = vld [vmem:[%s490 + $0x1a] sm:$0xff]
      %v686 = vld [vmem:[%s490 + $0x22] sm:$0xff]
      %v687 = vld [vmem:[%s490 + $0x32] sm:$0xff]
      %v688 = vld [vmem:[%s490 + $0x3a] sm:$0xff]
      %v689 = vld [vmem:[%s490 + $0x4a] sm:$0xff]
      %v690 = vld [vmem:[%s490 + $0x52] sm:$0xff]
      %v691 = vld [vmem:[%s490 + $0x62] sm:$0xff]
      %v692 = vld [vmem:[%s490 + $0x6a] sm:$0xff]
      %v693 = vld [vmem:[%s490 + $0x7a] sm:$0xff]
      %v694 = vld [vmem:[%s490 + $0x82] sm:$0xff]
      %v695 = vld [vmem:[%s490 + $0x92] sm:$0xff]
      %v696 = vld [vmem:[%s490 + $0x9a] sm:$0xff]
      %v697 = vld [vmem:[%s490 + $0xaa] sm:$0xff]
      %v698 = vld [vmem:[%s490 + $0xb2] sm:$0xff]
      %v699 = vld [vmem:[%s490 + $0xc2] sm:$0xff]
      %v700 = vld [vmem:[%s490 + $0xca] sm:$0xff]
      %v701 = vld [vmem:[%s490 + $0xda] sm:$0xff]
      %v702 = vld [vmem:[%s490 + $0xe2] sm:$0xff]
      %v703 = vld [vmem:[%s490 + $0xf2] sm:$0xff]
      %v704 = vld [vmem:[%s490 + $0xfa] sm:$0xff]
      %v705 = vld [vmem:[%s490 + $0x10a] sm:$0xff]
      %v706 = vld [vmem:[%s490 + $0x112] sm:$0xff]
      %v707 = vld [vmem:[%s490 + $0x122] sm:$0xff]
      %v708 = vld [vmem:[%s490 + $0x12a] sm:$0xff]
      %v709 = vld [vmem:[%s490 + $0x13a] sm:$0xff]
      %v710 = vld [vmem:[%s490 + $0x142] sm:$0xff]
      %v711 = vld [vmem:[%s490 + $0x152] sm:$0xff]
      %v712 = vld [vmem:[%s490 + $0x15a] sm:$0xff]
      %v713 = vld [vmem:[%s490 + $0x16a] sm:$0xff]
      %v714 = vld [vmem:[%s490 + $0x172] sm:$0xff]
      %s715 = scalar_lea.vmem [#allocation2], 48
      %v716 = vld [vmem:[%s715] sm:$0xff]
      %v717 = vld [vmem:[%s715 + $0x8] sm:$0xff]
      %v718 = vld [vmem:[%s715 + $0x18] sm:$0xff]
      %v719 = vld [vmem:[%s715 + $0x20] sm:$0xff]
      %v720 = vld [vmem:[%s715 + $0x30] sm:$0xff]
      %v721 = vld [vmem:[%s715 + $0x38] sm:$0xff]
      %v722 = vld [vmem:[%s715 + $0x48] sm:$0xff]
      %v723 = vld [vmem:[%s715 + $0x50] sm:$0xff]
      %v724 = vld [vmem:[%s715 + $0x60] sm:$0xff]
      %v725 = vld [vmem:[%s715 + $0x68] sm:$0xff]
      %v726 = vld [vmem:[%s715 + $0x78] sm:$0xff]
      %v727 = vld [vmem:[%s715 + $0x80] sm:$0xff]
      %v728 = vld [vmem:[%s715 + $0x90] sm:$0xff]
      %v729 = vld [vmem:[%s715 + $0x98] sm:$0xff]
      %v730 = vld [vmem:[%s715 + $0xa8] sm:$0xff]
      %v731 = vld [vmem:[%s715 + $0xb0] sm:$0xff]
      %v732 = vld [vmem:[%s715 + $0xc0] sm:$0xff]
      %v733 = vld [vmem:[%s715 + $0xc8] sm:$0xff]
      %v734 = vld [vmem:[%s715 + $0xd8] sm:$0xff]
      %v735 = vld [vmem:[%s715 + $0xe0] sm:$0xff]
      %v736 = vld [vmem:[%s715 + $0xf0] sm:$0xff]
      %v737 = vld [vmem:[%s715 + $0xf8] sm:$0xff]
      %v738 = vld [vmem:[%s715 + $0x108] sm:$0xff]
      %v739 = vld [vmem:[%s715 + $0x110] sm:$0xff]
      %v740 = vld [vmem:[%s715 + $0x120] sm:$0xff]
      %v741 = vld [vmem:[%s715 + $0x128] sm:$0xff]
      %v742 = vld [vmem:[%s715 + $0x138] sm:$0xff]
      %v743 = vld [vmem:[%s715 + $0x140] sm:$0xff]
      %v744 = vld [vmem:[%s715 + $0x150] sm:$0xff]
      %v745 = vld [vmem:[%s715 + $0x158] sm:$0xff]
      %v746 = vld [vmem:[%s715 + $0x168] sm:$0xff]
      %v747 = vld [vmem:[%s715 + $0x170] sm:$0xff]
      %v748 = vld [vmem:[%s715 + $0x1] sm:$0xff]
      %v749 = vld [vmem:[%s715 + $0x9] sm:$0xff]
      %v750 = vld [vmem:[%s715 + $0x19] sm:$0xff]
      %v751 = vld [vmem:[%s715 + $0x21] sm:$0xff]
      %v752 = vld [vmem:[%s715 + $0x31] sm:$0xff]
      %v753 = vld [vmem:[%s715 + $0x39] sm:$0xff]
      %v754 = vld [vmem:[%s715 + $0x49] sm:$0xff]
      %v755 = vld [vmem:[%s715 + $0x51] sm:$0xff]
      %v756 = vld [vmem:[%s715 + $0x61] sm:$0xff]
      %v757 = vld [vmem:[%s715 + $0x69] sm:$0xff]
      %v758 = vld [vmem:[%s715 + $0x79] sm:$0xff]
      %v759 = vld [vmem:[%s715 + $0x81] sm:$0xff]
      %v760 = vld [vmem:[%s715 + $0x91] sm:$0xff]
      %v761 = vld [vmem:[%s715 + $0x99] sm:$0xff]
      %v762 = vld [vmem:[%s715 + $0xa9] sm:$0xff]
      %v763 = vld [vmem:[%s715 + $0xb1] sm:$0xff]
      %v764 = vld [vmem:[%s715 + $0xc1] sm:$0xff]
      %v765 = vld [vmem:[%s715 + $0xc9] sm:$0xff]
      %v766 = vld [vmem:[%s715 + $0xd9] sm:$0xff]
      %v767 = vld [vmem:[%s715 + $0xe1] sm:$0xff]
      %v768 = vld [vmem:[%s715 + $0xf1] sm:$0xff]
      %v769 = vld [vmem:[%s715 + $0xf9] sm:$0xff]
      %v770 = vld [vmem:[%s715 + $0x109] sm:$0xff]
      %v771 = vld [vmem:[%s715 + $0x111] sm:$0xff]
      %v772 = vld [vmem:[%s715 + $0x121] sm:$0xff]
      %v773 = vld [vmem:[%s715 + $0x129] sm:$0xff]
      %v774 = vld [vmem:[%s715 + $0x139] sm:$0xff]
      %v775 = vld [vmem:[%s715 + $0x141] sm:$0xff]
      %v776 = vld [vmem:[%s715 + $0x151] sm:$0xff]
      %v777 = vld [vmem:[%s715 + $0x159] sm:$0xff]
      %v778 = vld [vmem:[%s715 + $0x169] sm:$0xff]
      %v779 = vld [vmem:[%s715 + $0x171] sm:$0xff]
      %v780 = vld [vmem:[%s715 + $0x2] sm:$0xff]
      %v781 = vld [vmem:[%s715 + $0xa] sm:$0xff]
      %v782 = vld [vmem:[%s715 + $0x1a] sm:$0xff]
      %v783 = vld [vmem:[%s715 + $0x22] sm:$0xff]
      %v784 = vld [vmem:[%s715 + $0x32] sm:$0xff]
      %v785 = vld [vmem:[%s715 + $0x3a] sm:$0xff]
      %v786 = vld [vmem:[%s715 + $0x4a] sm:$0xff]
      %v787 = vld [vmem:[%s715 + $0x52] sm:$0xff]
      %v788 = vld [vmem:[%s715 + $0x62] sm:$0xff]
      %v789 = vld [vmem:[%s715 + $0x6a] sm:$0xff]
      %v790 = vld [vmem:[%s715 + $0x7a] sm:$0xff]
      %v791 = vld [vmem:[%s715 + $0x82] sm:$0xff]
      %v792 = vld [vmem:[%s715 + $0x92] sm:$0xff]
      %v793 = vld [vmem:[%s715 + $0x9a] sm:$0xff]
      %v794 = vld [vmem:[%s715 + $0xaa] sm:$0xff]
      %v795 = vld [vmem:[%s715 + $0xb2] sm:$0xff]
      %v796 = vld [vmem:[%s715 + $0xc2] sm:$0xff]
      %v797 = vld [vmem:[%s715 + $0xca] sm:$0xff]
      %v798 = vld [vmem:[%s715 + $0xda] sm:$0xff]
      %v799 = vld [vmem:[%s715 + $0xe2] sm:$0xff]
      %v800 = vld [vmem:[%s715 + $0xf2] sm:$0xff]
      %v801 = vld [vmem:[%s715 + $0xfa] sm:$0xff]
      %v802 = vld [vmem:[%s715 + $0x10a] sm:$0xff]
      %v803 = vld [vmem:[%s715 + $0x112] sm:$0xff]
      %v804 = vld [vmem:[%s715 + $0x122] sm:$0xff]
      %v805 = vld [vmem:[%s715 + $0x12a] sm:$0xff]
      %v806 = vld [vmem:[%s715 + $0x13a] sm:$0xff]
      %v807 = vld [vmem:[%s715 + $0x142] sm:$0xff]
      %v808 = vld [vmem:[%s715 + $0x152] sm:$0xff]
      %v809 = vld [vmem:[%s715 + $0x15a] sm:$0xff]
      %v810 = vld [vmem:[%s715 + $0x16a] sm:$0xff]
      %v811 = vld [vmem:[%s715 + $0x172] sm:$0xff]
      %844 = vrot.lane.b32.xlu0 %v555, 4
      %v845 = vpop.permute.xlu0 %844
      %846 = vrot.lane.b32.xlu0 %v556, 4
      %v847 = vpop.permute.xlu0 %846
      %848 = vrot.lane.b32.xlu0 %v557, 4
      %v849 = vpop.permute.xlu0 %848
      %850 = vrot.lane.b32.xlu0 %v558, 4
      %v851 = vpop.permute.xlu0 %850
      %852 = vrot.lane.b32.xlu0 %v559, 4
      %v853 = vpop.permute.xlu0 %852
      %854 = vrot.lane.b32.xlu0 %v560, 4
      %v855 = vpop.permute.xlu0 %854
      %856 = vrot.lane.b32.xlu0 %v561, 4
      %v857 = vpop.permute.xlu0 %856
      %858 = vrot.lane.b32.xlu0 %v562, 4
      %v859 = vpop.permute.xlu0 %858
      %860 = vrot.lane.b32.xlu0 %v563, 4
      %v861 = vpop.permute.xlu0 %860
      %862 = vrot.lane.b32.xlu0 %v564, 4
      %v863 = vpop.permute.xlu0 %862
      %864 = vrot.lane.b32.xlu0 %v565, 4
      %v865 = vpop.permute.xlu0 %864
      %866 = vrot.lane.b32.xlu0 %v566, 4
      %v867 = vpop.permute.xlu0 %866
      %868 = vrot.lane.b32.xlu0 %v567, 4
      %v869 = vpop.permute.xlu0 %868
      %870 = vrot.lane.b32.xlu0 %v568, 4
      %v871 = vpop.permute.xlu0 %870
      %872 = vrot.lane.b32.xlu0 %v569, 4
      %v873 = vpop.permute.xlu0 %872
      %874 = vrot.lane.b32.xlu0 %v570, 4
      %v875 = vpop.permute.xlu0 %874
      %876 = vrot.lane.b32.xlu0 %v571, 4
      %v877 = vpop.permute.xlu0 %876
      %878 = vrot.lane.b32.xlu0 %v572, 4
      %v879 = vpop.permute.xlu0 %878
      %880 = vrot.lane.b32.xlu0 %v573, 4
      %v881 = vpop.permute.xlu0 %880
      %882 = vrot.lane.b32.xlu0 %v574, 4
      %v883 = vpop.permute.xlu0 %882
      %884 = vrot.lane.b32.xlu0 %v575, 4
      %v885 = vpop.permute.xlu0 %884
      %886 = vrot.lane.b32.xlu0 %v576, 4
      %v887 = vpop.permute.xlu0 %886
      %888 = vrot.lane.b32.xlu0 %v577, 4
      %v889 = vpop.permute.xlu0 %888
      %890 = vrot.lane.b32.xlu0 %v578, 4
      %v891 = vpop.permute.xlu0 %890
      %892 = vrot.lane.b32.xlu0 %v579, 4
      %v893 = vpop.permute.xlu0 %892
      %894 = vrot.lane.b32.xlu0 %v580, 4
      %v895 = vpop.permute.xlu0 %894
      %896 = vrot.lane.b32.xlu0 %v581, 4
      %v897 = vpop.permute.xlu0 %896
      %898 = vrot.lane.b32.xlu0 %v582, 4
      %v899 = vpop.permute.xlu0 %898
      %900 = vrot.lane.b32.xlu0 %v583, 4
      %v901 = vpop.permute.xlu0 %900
      %902 = vrot.lane.b32.xlu0 %v584, 4
      %v903 = vpop.permute.xlu0 %902
      %904 = vrot.lane.b32.xlu0 %v585, 4
      %v905 = vpop.permute.xlu0 %904
      %906 = vrot.lane.b32.xlu0 %v586, 4
      %v907 = vpop.permute.xlu0 %906
      %972 = vrot.lane.b32.xlu0 %v587, 8
      %v973 = vpop.permute.xlu0 %972
      %974 = vrot.lane.b32.xlu0 %v588, 8
      %v975 = vpop.permute.xlu0 %974
      %976 = vrot.lane.b32.xlu0 %v589, 8
      %v977 = vpop.permute.xlu0 %976
      %978 = vrot.lane.b32.xlu0 %v590, 8
      %v979 = vpop.permute.xlu0 %978
      %980 = vrot.lane.b32.xlu0 %v591, 8
      %v981 = vpop.permute.xlu0 %980
      %982 = vrot.lane.b32.xlu0 %v592, 8
      %v983 = vpop.permute.xlu0 %982
      %984 = vrot.lane.b32.xlu0 %v593, 8
      %v985 = vpop.permute.xlu0 %984
      %986 = vrot.lane.b32.xlu0 %v594, 8
      %v987 = vpop.permute.xlu0 %986
      %988 = vrot.lane.b32.xlu0 %v595, 8
      %v989 = vpop.permute.xlu0 %988
      %990 = vrot.lane.b32.xlu0 %v596, 8
      %v991 = vpop.permute.xlu0 %990
      %992 = vrot.lane.b32.xlu0 %v597, 8
      %v993 = vpop.permute.xlu0 %992
      %994 = vrot.lane.b32.xlu0 %v598, 8
      %v995 = vpop.permute.xlu0 %994
      %996 = vrot.lane.b32.xlu0 %v599, 8
      %v997 = vpop.permute.xlu0 %996
      %998 = vrot.lane.b32.xlu0 %v600, 8
      %v999 = vpop.permute.xlu0 %998
      %1000 = vrot.lane.b32.xlu0 %v601, 8
      %v1001 = vpop.permute.xlu0 %1000
      %1002 = vrot.lane.b32.xlu0 %v602, 8
      %v1003 = vpop.permute.xlu0 %1002
      %1004 = vrot.lane.b32.xlu0 %v603, 8
      %v1005 = vpop.permute.xlu0 %1004
      %1006 = vrot.lane.b32.xlu0 %v604, 8
      %v1007 = vpop.permute.xlu0 %1006
      %1008 = vrot.lane.b32.xlu0 %v605, 8
      %v1009 = vpop.permute.xlu0 %1008
      %1010 = vrot.lane.b32.xlu0 %v606, 8
      %v1011 = vpop.permute.xlu0 %1010
      %1012 = vrot.lane.b32.xlu0 %v607, 8
      %v1013 = vpop.permute.xlu0 %1012
      %1014 = vrot.lane.b32.xlu0 %v608, 8
      %v1015 = vpop.permute.xlu0 %1014
      %1016 = vrot.lane.b32.xlu0 %v609, 8
      %v1017 = vpop.permute.xlu0 %1016
      %1018 = vrot.lane.b32.xlu0 %v610, 8
      %v1019 = vpop.permute.xlu0 %1018
      %1020 = vrot.lane.b32.xlu0 %v611, 8
      %v1021 = vpop.permute.xlu0 %1020
      %1022 = vrot.lane.b32.xlu0 %v612, 8
      %v1023 = vpop.permute.xlu0 %1022
      %1024 = vrot.lane.b32.xlu0 %v613, 8
      %v1025 = vpop.permute.xlu0 %1024
      %1026 = vrot.lane.b32.xlu0 %v614, 8
      %v1027 = vpop.permute.xlu0 %1026
      %1028 = vrot.lane.b32.xlu0 %v615, 8
      %v1029 = vpop.permute.xlu0 %1028
      %1030 = vrot.lane.b32.xlu0 %v616, 8
      %v1031 = vpop.permute.xlu0 %1030
      %1032 = vrot.lane.b32.xlu0 %v617, 8
      %v1033 = vpop.permute.xlu0 %1032
      %1034 = vrot.lane.b32.xlu0 %v618, 8
      %v1035 = vpop.permute.xlu0 %1034
      %1100 = vrot.lane.b32.xlu0 %v619, 12
      %v1101 = vpop.permute.xlu0 %1100
      %1102 = vrot.lane.b32.xlu0 %v620, 12
      %v1103 = vpop.permute.xlu0 %1102
      %1104 = vrot.lane.b32.xlu0 %v621, 12
      %v1105 = vpop.permute.xlu0 %1104
      %1106 = vrot.lane.b32.xlu0 %v622, 12
      %v1107 = vpop.permute.xlu0 %1106
      %1108 = vrot.lane.b32.xlu0 %v623, 12
      %v1109 = vpop.permute.xlu0 %1108
      %1110 = vrot.lane.b32.xlu0 %v624, 12
      %v1111 = vpop.permute.xlu0 %1110
      %1112 = vrot.lane.b32.xlu0 %v625, 12
      %v1113 = vpop.permute.xlu0 %1112
      %1114 = vrot.lane.b32.xlu0 %v626, 12
      %v1115 = vpop.permute.xlu0 %1114
      %1116 = vrot.lane.b32.xlu0 %v627, 12
      %v1117 = vpop.permute.xlu0 %1116
      %1118 = vrot.lane.b32.xlu0 %v628, 12
      %v1119 = vpop.permute.xlu0 %1118
      %1120 = vrot.lane.b32.xlu0 %v629, 12
      %v1121 = vpop.permute.xlu0 %1120
      %1122 = vrot.lane.b32.xlu0 %v630, 12
      %v1123 = vpop.permute.xlu0 %1122
      %1124 = vrot.lane.b32.xlu0 %v631, 12
      %v1125 = vpop.permute.xlu0 %1124
      %1126 = vrot.lane.b32.xlu0 %v632, 12
      %v1127 = vpop.permute.xlu0 %1126
      %1128 = vrot.lane.b32.xlu0 %v633, 12
      %v1129 = vpop.permute.xlu0 %1128
      %1130 = vrot.lane.b32.xlu0 %v634, 12
      %v1131 = vpop.permute.xlu0 %1130
      %1132 = vrot.lane.b32.xlu0 %v635, 12
      %v1133 = vpop.permute.xlu0 %1132
      %1134 = vrot.lane.b32.xlu0 %v636, 12
      %v1135 = vpop.permute.xlu0 %1134
      %1136 = vrot.lane.b32.xlu0 %v637, 12
      %v1137 = vpop.permute.xlu0 %1136
      %1138 = vrot.lane.b32.xlu0 %v638, 12
      %v1139 = vpop.permute.xlu0 %1138
      %1140 = vrot.lane.b32.xlu0 %v639, 12
      %v1141 = vpop.permute.xlu0 %1140
      %1142 = vrot.lane.b32.xlu0 %v640, 12
      %v1143 = vpop.permute.xlu0 %1142
      %1144 = vrot.lane.b32.xlu0 %v641, 12
      %v1145 = vpop.permute.xlu0 %1144
      %1146 = vrot.lane.b32.xlu0 %v642, 12
      %v1147 = vpop.permute.xlu0 %1146
      %1148 = vrot.lane.b32.xlu0 %v643, 12
      %v1149 = vpop.permute.xlu0 %1148
      %1150 = vrot.lane.b32.xlu0 %v644, 12
      %v1151 = vpop.permute.xlu0 %1150
      %1152 = vrot.lane.b32.xlu0 %v645, 12
      %v1153 = vpop.permute.xlu0 %1152
      %1154 = vrot.lane.b32.xlu0 %v646, 12
      %v1155 = vpop.permute.xlu0 %1154
      %1156 = vrot.lane.b32.xlu0 %v647, 12
      %v1157 = vpop.permute.xlu0 %1156
      %1158 = vrot.lane.b32.xlu0 %v648, 12
      %v1159 = vpop.permute.xlu0 %1158
      %1160 = vrot.lane.b32.xlu0 %v649, 12
      %v1161 = vpop.permute.xlu0 %1160
      %1162 = vrot.lane.b32.xlu0 %v650, 12
      %v1163 = vpop.permute.xlu0 %1162
      %1228 = vrot.lane.b32.xlu0 %v651, 16
      %v1229 = vpop.permute.xlu0 %1228
      %1230 = vrot.lane.b32.xlu0 %v652, 16
      %v1231 = vpop.permute.xlu0 %1230
      %1232 = vrot.lane.b32.xlu0 %v653, 16
      %v1233 = vpop.permute.xlu0 %1232
      %1234 = vrot.lane.b32.xlu0 %v654, 16
      %v1235 = vpop.permute.xlu0 %1234
      %1236 = vrot.lane.b32.xlu0 %v655, 16
      %v1237 = vpop.permute.xlu0 %1236
      %1238 = vrot.lane.b32.xlu0 %v656, 16
      %v1239 = vpop.permute.xlu0 %1238
      %1240 = vrot.lane.b32.xlu0 %v657, 16
      %v1241 = vpop.permute.xlu0 %1240
      %1242 = vrot.lane.b32.xlu0 %v658, 16
      %v1243 = vpop.permute.xlu0 %1242
      %1244 = vrot.lane.b32.xlu0 %v659, 16
      %v1245 = vpop.permute.xlu0 %1244
      %1246 = vrot.lane.b32.xlu0 %v660, 16
      %v1247 = vpop.permute.xlu0 %1246
      %1248 = vrot.lane.b32.xlu0 %v661, 16
      %v1249 = vpop.permute.xlu0 %1248
      %1250 = vrot.lane.b32.xlu0 %v662, 16
      %v1251 = vpop.permute.xlu0 %1250
      %1252 = vrot.lane.b32.xlu0 %v663, 16
      %v1253 = vpop.permute.xlu0 %1252
      %1254 = vrot.lane.b32.xlu0 %v664, 16
      %v1255 = vpop.permute.xlu0 %1254
      %1256 = vrot.lane.b32.xlu0 %v665, 16
      %v1257 = vpop.permute.xlu0 %1256
      %1258 = vrot.lane.b32.xlu0 %v666, 16
      %v1259 = vpop.permute.xlu0 %1258
      %1260 = vrot.lane.b32.xlu0 %v667, 16
      %v1261 = vpop.permute.xlu0 %1260
      %1262 = vrot.lane.b32.xlu0 %v668, 16
      %v1263 = vpop.permute.xlu0 %1262
      %1264 = vrot.lane.b32.xlu0 %v669, 16
      %v1265 = vpop.permute.xlu0 %1264
      %1266 = vrot.lane.b32.xlu0 %v670, 16
      %v1267 = vpop.permute.xlu0 %1266
      %1268 = vrot.lane.b32.xlu0 %v671, 16
      %v1269 = vpop.permute.xlu0 %1268
      %1270 = vrot.lane.b32.xlu0 %v672, 16
      %v1271 = vpop.permute.xlu0 %1270
      %1272 = vrot.lane.b32.xlu0 %v673, 16
      %v1273 = vpop.permute.xlu0 %1272
      %1274 = vrot.lane.b32.xlu0 %v674, 16
      %v1275 = vpop.permute.xlu0 %1274
      %1276 = vrot.lane.b32.xlu0 %v675, 16
      %v1277 = vpop.permute.xlu0 %1276
      %1278 = vrot.lane.b32.xlu0 %v676, 16
      %v1279 = vpop.permute.xlu0 %1278
      %1280 = vrot.lane.b32.xlu0 %v677, 16
      %v1281 = vpop.permute.xlu0 %1280
      %1282 = vrot.lane.b32.xlu0 %v678, 16
      %v1283 = vpop.permute.xlu0 %1282
      %1284 = vrot.lane.b32.xlu0 %v679, 16
      %v1285 = vpop.permute.xlu0 %1284
      %1286 = vrot.lane.b32.xlu0 %v680, 16
      %v1287 = vpop.permute.xlu0 %1286
      %1288 = vrot.lane.b32.xlu0 %v681, 16
      %v1289 = vpop.permute.xlu0 %1288
      %1290 = vrot.lane.b32.xlu0 %v682, 16
      %v1291 = vpop.permute.xlu0 %1290
      %1356 = vrot.lane.b32.xlu0 %v683, 20
      %v1357 = vpop.permute.xlu0 %1356
      %1358 = vrot.lane.b32.xlu0 %v684, 20
      %v1359 = vpop.permute.xlu0 %1358
      %1360 = vrot.lane.b32.xlu0 %v685, 20
      %v1361 = vpop.permute.xlu0 %1360
      %1362 = vrot.lane.b32.xlu0 %v686, 20
      %v1363 = vpop.permute.xlu0 %1362
      %1364 = vrot.lane.b32.xlu0 %v687, 20
      %v1365 = vpop.permute.xlu0 %1364
      %1366 = vrot.lane.b32.xlu0 %v688, 20
      %v1367 = vpop.permute.xlu0 %1366
      %1368 = vrot.lane.b32.xlu0 %v689, 20
      %v1369 = vpop.permute.xlu0 %1368
      %1370 = vrot.lane.b32.xlu0 %v690, 20
      %v1371 = vpop.permute.xlu0 %1370
      %1372 = vrot.lane.b32.xlu0 %v691, 20
      %v1373 = vpop.permute.xlu0 %1372
      %1374 = vrot.lane.b32.xlu0 %v692, 20
      %v1375 = vpop.permute.xlu0 %1374
      %1376 = vrot.lane.b32.xlu0 %v693, 20
      %v1377 = vpop.permute.xlu0 %1376
      %1378 = vrot.lane.b32.xlu0 %v694, 20
      %v1379 = vpop.permute.xlu0 %1378
      %1380 = vrot.lane.b32.xlu0 %v695, 20
      %v1381 = vpop.permute.xlu0 %1380
      %1382 = vrot.lane.b32.xlu0 %v696, 20
      %v1383 = vpop.permute.xlu0 %1382
      %1384 = vrot.lane.b32.xlu0 %v697, 20
      %v1385 = vpop.permute.xlu0 %1384
      %1386 = vrot.lane.b32.xlu0 %v698, 20
      %v1387 = vpop.permute.xlu0 %1386
      %1388 = vrot.lane.b32.xlu0 %v699, 20
      %v1389 = vpop.permute.xlu0 %1388
      %1390 = vrot.lane.b32.xlu0 %v700, 20
      %v1391 = vpop.permute.xlu0 %1390
      %1392 = vrot.lane.b32.xlu0 %v701, 20
      %v1393 = vpop.permute.xlu0 %1392
      %1394 = vrot.lane.b32.xlu0 %v702, 20
      %v1395 = vpop.permute.xlu0 %1394
      %1396 = vrot.lane.b32.xlu0 %v703, 20
      %v1397 = vpop.permute.xlu0 %1396
      %1398 = vrot.lane.b32.xlu0 %v704, 20
      %v1399 = vpop.permute.xlu0 %1398
      %1400 = vrot.lane.b32.xlu0 %v705, 20
      %v1401 = vpop.permute.xlu0 %1400
      %1402 = vrot.lane.b32.xlu0 %v706, 20
      %v1403 = vpop.permute.xlu0 %1402
      %1404 = vrot.lane.b32.xlu0 %v707, 20
      %v1405 = vpop.permute.xlu0 %1404
      %1406 = vrot.lane.b32.xlu0 %v708, 20
      %v1407 = vpop.permute.xlu0 %1406
      %1408 = vrot.lane.b32.xlu0 %v709, 20
      %v1409 = vpop.permute.xlu0 %1408
      %1410 = vrot.lane.b32.xlu0 %v710, 20
      %v1411 = vpop.permute.xlu0 %1410
      %1412 = vrot.lane.b32.xlu0 %v711, 20
      %v1413 = vpop.permute.xlu0 %1412
      %1414 = vrot.lane.b32.xlu0 %v712, 20
      %v1415 = vpop.permute.xlu0 %1414
      %1416 = vrot.lane.b32.xlu0 %v713, 20
      %v1417 = vpop.permute.xlu0 %1416
      %1418 = vrot.lane.b32.xlu0 %v714, 20
      %v1419 = vpop.permute.xlu0 %1418
      %1484 = vrot.lane.b32.xlu0 %v716, 24
      %v1485 = vpop.permute.xlu0 %1484
      %1486 = vrot.lane.b32.xlu0 %v717, 24
      %v1487 = vpop.permute.xlu0 %1486
      %1488 = vrot.lane.b32.xlu0 %v718, 24
      %v1489 = vpop.permute.xlu0 %1488
      %1490 = vrot.lane.b32.xlu0 %v719, 24
      %v1491 = vpop.permute.xlu0 %1490
      %1492 = vrot.lane.b32.xlu0 %v720, 24
      %v1493 = vpop.permute.xlu0 %1492
      %1494 = vrot.lane.b32.xlu0 %v721, 24
      %v1495 = vpop.permute.xlu0 %1494
      %1496 = vrot.lane.b32.xlu0 %v722, 24
      %v1497 = vpop.permute.xlu0 %1496
      %1498 = vrot.lane.b32.xlu0 %v723, 24
      %v1499 = vpop.permute.xlu0 %1498
      %1500 = vrot.lane.b32.xlu0 %v724, 24
      %v1501 = vpop.permute.xlu0 %1500
      %1502 = vrot.lane.b32.xlu0 %v725, 24
      %v1503 = vpop.permute.xlu0 %1502
      %1504 = vrot.lane.b32.xlu0 %v726, 24
      %v1505 = vpop.permute.xlu0 %1504
      %1506 = vrot.lane.b32.xlu0 %v727, 24
      %v1507 = vpop.permute.xlu0 %1506
      %1508 = vrot.lane.b32.xlu0 %v728, 24
      %v1509 = vpop.permute.xlu0 %1508
      %1510 = vrot.lane.b32.xlu0 %v729, 24
      %v1511 = vpop.permute.xlu0 %1510
      %1512 = vrot.lane.b32.xlu0 %v730, 24
      %v1513 = vpop.permute.xlu0 %1512
      %1514 = vrot.lane.b32.xlu0 %v731, 24
      %v1515 = vpop.permute.xlu0 %1514
      %1516 = vrot.lane.b32.xlu0 %v732, 24
      %v1517 = vpop.permute.xlu0 %1516
      %1518 = vrot.lane.b32.xlu0 %v733, 24
      %v1519 = vpop.permute.xlu0 %1518
      %1520 = vrot.lane.b32.xlu0 %v734, 24
      %v1521 = vpop.permute.xlu0 %1520
      %1522 = vrot.lane.b32.xlu0 %v735, 24
      %v1523 = vpop.permute.xlu0 %1522
      %1524 = vrot.lane.b32.xlu0 %v736, 24
      %v1525 = vpop.permute.xlu0 %1524
      %1526 = vrot.lane.b32.xlu0 %v737, 24
      %v1527 = vpop.permute.xlu0 %1526
      %1528 = vrot.lane.b32.xlu0 %v738, 24
      %v1529 = vpop.permute.xlu0 %1528
      %1530 = vrot.lane.b32.xlu0 %v739, 24
      %v1531 = vpop.permute.xlu0 %1530
      %1532 = vrot.lane.b32.xlu0 %v740, 24
      %v1533 = vpop.permute.xlu0 %1532
      %1534 = vrot.lane.b32.xlu0 %v741, 24
      %v1535 = vpop.permute.xlu0 %1534
      %1536 = vrot.lane.b32.xlu0 %v742, 24
      %v1537 = vpop.permute.xlu0 %1536
      %1538 = vrot.lane.b32.xlu0 %v743, 24
      %v1539 = vpop.permute.xlu0 %1538
      %1540 = vrot.lane.b32.xlu0 %v744, 24
      %v1541 = vpop.permute.xlu0 %1540
      %1542 = vrot.lane.b32.xlu0 %v745, 24
      %v1543 = vpop.permute.xlu0 %1542
      %1544 = vrot.lane.b32.xlu0 %v746, 24
      %v1545 = vpop.permute.xlu0 %1544
      %1546 = vrot.lane.b32.xlu0 %v747, 24
      %v1547 = vpop.permute.xlu0 %1546
      %1612 = vrot.lane.b32.xlu0 %v748, 28
      %v1613 = vpop.permute.xlu0 %1612
      %1614 = vrot.lane.b32.xlu0 %v749, 28
      %v1615 = vpop.permute.xlu0 %1614
      %1616 = vrot.lane.b32.xlu0 %v750, 28
      %v1617 = vpop.permute.xlu0 %1616
      %1618 = vrot.lane.b32.xlu0 %v751, 28
      %v1619 = vpop.permute.xlu0 %1618
      %1620 = vrot.lane.b32.xlu0 %v752, 28
      %v1621 = vpop.permute.xlu0 %1620
      %1622 = vrot.lane.b32.xlu0 %v753, 28
      %v1623 = vpop.permute.xlu0 %1622
      %1624 = vrot.lane.b32.xlu0 %v754, 28
      %v1625 = vpop.permute.xlu0 %1624
      %1626 = vrot.lane.b32.xlu0 %v755, 28
      %v1627 = vpop.permute.xlu0 %1626
      %1628 = vrot.lane.b32.xlu0 %v756, 28
      %v1629 = vpop.permute.xlu0 %1628
      %1630 = vrot.lane.b32.xlu0 %v757, 28
      %v1631 = vpop.permute.xlu0 %1630
      %1632 = vrot.lane.b32.xlu0 %v758, 28
      %v1633 = vpop.permute.xlu0 %1632
      %1634 = vrot.lane.b32.xlu0 %v759, 28
      %v1635 = vpop.permute.xlu0 %1634
      %1636 = vrot.lane.b32.xlu0 %v760, 28
      %v1637 = vpop.permute.xlu0 %1636
      %1638 = vrot.lane.b32.xlu0 %v761, 28
      %v1639 = vpop.permute.xlu0 %1638
      %1640 = vrot.lane.b32.xlu0 %v762, 28
      %v1641 = vpop.permute.xlu0 %1640
      %1642 = vrot.lane.b32.xlu0 %v763, 28
      %v1643 = vpop.permute.xlu0 %1642
      %1644 = vrot.lane.b32.xlu0 %v764, 28
      %v1645 = vpop.permute.xlu0 %1644
      %1646 = vrot.lane.b32.xlu0 %v765, 28
      %v1647 = vpop.permute.xlu0 %1646
      %1648 = vrot.lane.b32.xlu0 %v766, 28
      %v1649 = vpop.permute.xlu0 %1648
      %1650 = vrot.lane.b32.xlu0 %v767, 28
      %v1651 = vpop.permute.xlu0 %1650
      %1652 = vrot.lane.b32.xlu0 %v768, 28
      %v1653 = vpop.permute.xlu0 %1652
      %1654 = vrot.lane.b32.xlu0 %v769, 28
      %v1655 = vpop.permute.xlu0 %1654
      %1656 = vrot.lane.b32.xlu0 %v770, 28
      %v1657 = vpop.permute.xlu0 %1656
      %1658 = vrot.lane.b32.xlu0 %v771, 28
      %v1659 = vpop.permute.xlu0 %1658
      %1660 = vrot.lane.b32.xlu0 %v772, 28
      %v1661 = vpop.permute.xlu0 %1660
      %1662 = vrot.lane.b32.xlu0 %v773, 28
      %v1663 = vpop.permute.xlu0 %1662
      %1664 = vrot.lane.b32.xlu0 %v774, 28
      %v1665 = vpop.permute.xlu0 %1664
      %1666 = vrot.lane.b32.xlu0 %v775, 28
      %v1667 = vpop.permute.xlu0 %1666
      %1668 = vrot.lane.b32.xlu0 %v776, 28
      %v1669 = vpop.permute.xlu0 %1668
      %1670 = vrot.lane.b32.xlu0 %v777, 28
      %v1671 = vpop.permute.xlu0 %1670
      %1672 = vrot.lane.b32.xlu0 %v778, 28
      %v1673 = vpop.permute.xlu0 %1672
      %1674 = vrot.lane.b32.xlu0 %v779, 28
      %v1675 = vpop.permute.xlu0 %1674
      %1740 = vrot.lane.b32.xlu0 %v780, 32
      %v1741 = vpop.permute.xlu0 %1740
      %1742 = vrot.lane.b32.xlu0 %v781, 32
      %v1743 = vpop.permute.xlu0 %1742
      %1744 = vrot.lane.b32.xlu0 %v782, 32
      %v1745 = vpop.permute.xlu0 %1744
      %1746 = vrot.lane.b32.xlu0 %v783, 32
      %v1747 = vpop.permute.xlu0 %1746
      %1748 = vrot.lane.b32.xlu0 %v784, 32
      %v1749 = vpop.permute.xlu0 %1748
      %1750 = vrot.lane.b32.xlu0 %v785, 32
      %v1751 = vpop.permute.xlu0 %1750
      %1752 = vrot.lane.b32.xlu0 %v786, 32
      %v1753 = vpop.permute.xlu0 %1752
      %1754 = vrot.lane.b32.xlu0 %v787, 32
      %v1755 = vpop.permute.xlu0 %1754
      %1756 = vrot.lane.b32.xlu0 %v788, 32
      %v1757 = vpop.permute.xlu0 %1756
      %1758 = vrot.lane.b32.xlu0 %v789, 32
      %v1759 = vpop.permute.xlu0 %1758
      %1760 = vrot.lane.b32.xlu0 %v790, 32
      %v1761 = vpop.permute.xlu0 %1760
      %1762 = vrot.lane.b32.xlu0 %v791, 32
      %v1763 = vpop.permute.xlu0 %1762
      %1764 = vrot.lane.b32.xlu0 %v792, 32
      %v1765 = vpop.permute.xlu0 %1764
      %1766 = vrot.lane.b32.xlu0 %v793, 32
      %v1767 = vpop.permute.xlu0 %1766
      %1768 = vrot.lane.b32.xlu0 %v794, 32
      %v1769 = vpop.permute.xlu0 %1768
      %1770 = vrot.lane.b32.xlu0 %v795, 32
      %v1771 = vpop.permute.xlu0 %1770
      %1772 = vrot.lane.b32.xlu0 %v796, 32
      %v1773 = vpop.permute.xlu0 %1772
      %1774 = vrot.lane.b32.xlu0 %v797, 32
      %v1775 = vpop.permute.xlu0 %1774
      %1776 = vrot.lane.b32.xlu0 %v798, 32
      %v1777 = vpop.permute.xlu0 %1776
      %1778 = vrot.lane.b32.xlu0 %v799, 32
      %v1779 = vpop.permute.xlu0 %1778
      %1780 = vrot.lane.b32.xlu0 %v800, 32
      %v1781 = vpop.permute.xlu0 %1780
      %1782 = vrot.lane.b32.xlu0 %v801, 32
      %v1783 = vpop.permute.xlu0 %1782
      %1784 = vrot.lane.b32.xlu0 %v802, 32
      %v1785 = vpop.permute.xlu0 %1784
      %1786 = vrot.lane.b32.xlu0 %v803, 32
      %v1787 = vpop.permute.xlu0 %1786
      %1788 = vrot.lane.b32.xlu0 %v804, 32
      %v1789 = vpop.permute.xlu0 %1788
      %1790 = vrot.lane.b32.xlu0 %v805, 32
      %v1791 = vpop.permute.xlu0 %1790
      %1792 = vrot.lane.b32.xlu0 %v806, 32
      %v1793 = vpop.permute.xlu0 %1792
      %1794 = vrot.lane.b32.xlu0 %v807, 32
      %v1795 = vpop.permute.xlu0 %1794
      %1796 = vrot.lane.b32.xlu0 %v808, 32
      %v1797 = vpop.permute.xlu0 %1796
      %1798 = vrot.lane.b32.xlu0 %v809, 32
      %v1799 = vpop.permute.xlu0 %1798
      %1800 = vrot.lane.b32.xlu0 %v810, 32
      %v1801 = vpop.permute.xlu0 %1800
      %1802 = vrot.lane.b32.xlu0 %v811, 32
      %v1803 = vpop.permute.xlu0 %1802
      %v1836 = vsel %vm434, %v523, %v845
      %v1837 = vsel %vm434, %v524, %v847
      %v1838 = vsel %vm434, %v525, %v849
      %v1839 = vsel %vm434, %v526, %v851
      %v1840 = vsel %vm434, %v527, %v853
      %v1841 = vsel %vm434, %v528, %v855
      %v1842 = vsel %vm434, %v529, %v857
      %v1843 = vsel %vm434, %v530, %v859
      %v1844 = vsel %vm434, %v531, %v861
      %v1845 = vsel %vm434, %v532, %v863
      %v1846 = vsel %vm434, %v533, %v865
      %v1847 = vsel %vm434, %v534, %v867
      %v1848 = vsel %vm434, %v535, %v869
      %v1849 = vsel %vm434, %v536, %v871
      %v1850 = vsel %vm434, %v537, %v873
      %v1851 = vsel %vm434, %v538, %v875
      %v1852 = vsel %vm434, %v539, %v877
      %v1853 = vsel %vm434, %v540, %v879
      %v1854 = vsel %vm434, %v541, %v881
      %v1855 = vsel %vm434, %v542, %v883
      %v1856 = vsel %vm434, %v543, %v885
      %v1857 = vsel %vm434, %v544, %v887
      %v1858 = vsel %vm434, %v545, %v889
      %v1859 = vsel %vm434, %v546, %v891
      %v1860 = vsel %vm434, %v547, %v893
      %v1861 = vsel %vm434, %v548, %v895
      %v1862 = vsel %vm434, %v549, %v897
      %v1863 = vsel %vm434, %v550, %v899
      %v1864 = vsel %vm434, %v551, %v901
      %v1865 = vsel %vm434, %v552, %v903
      %v1866 = vsel %vm434, %v553, %v905
      %v1867 = vsel %vm434, %v554, %v907
      %vm1868 = vcmask 64512
      %v1869 = vsel %vm1868, %v1836, %v973
      %v1870 = vsel %vm1868, %v1837, %v975
      %v1871 = vsel %vm1868, %v1838, %v977
      %v1872 = vsel %vm1868, %v1839, %v979
      %v1873 = vsel %vm1868, %v1840, %v981
      %v1874 = vsel %vm1868, %v1841, %v983
      %v1875 = vsel %vm1868, %v1842, %v985
      %v1876 = vsel %vm1868, %v1843, %v987
      %v1877 = vsel %vm1868, %v1844, %v989
      %v1878 = vsel %vm1868, %v1845, %v991
      %v1879 = vsel %vm1868, %v1846, %v993
      %v1880 = vsel %vm1868, %v1847, %v995
      %v1881 = vsel %vm1868, %v1848, %v997
      %v1882 = vsel %vm1868, %v1849, %v999
      %v1883 = vsel %vm1868, %v1850, %v1001
      %v1884 = vsel %vm1868, %v1851, %v1003
      %v1885 = vsel %vm1868, %v1852, %v1005
      %v1886 = vsel %vm1868, %v1853, %v1007
      %v1887 = vsel %vm1868, %v1854, %v1009
      %v1888 = vsel %vm1868, %v1855, %v1011
      %v1889 = vsel %vm1868, %v1856, %v1013
      %v1890 = vsel %vm1868, %v1857, %v1015
      %v1891 = vsel %vm1868, %v1858, %v1017
      %v1892 = vsel %vm1868, %v1859, %v1019
      %v1893 = vsel %vm1868, %v1860, %v1021
      %v1894 = vsel %vm1868, %v1861, %v1023
      %v1895 = vsel %vm1868, %v1862, %v1025
      %v1896 = vsel %vm1868, %v1863, %v1027
      %v1897 = vsel %vm1868, %v1864, %v1029
      %v1898 = vsel %vm1868, %v1865, %v1031
      %v1899 = vsel %vm1868, %v1866, %v1033
      %v1900 = vsel %vm1868, %v1867, %v1035
      %vm1901 = vcmask 97280
      %v1902 = vsel %vm1901, %v1869, %v1101
      %v1903 = vsel %vm1901, %v1870, %v1103
      %v1904 = vsel %vm1901, %v1871, %v1105
      %v1905 = vsel %vm1901, %v1872, %v1107
      %v1906 = vsel %vm1901, %v1873, %v1109
      %v1907 = vsel %vm1901, %v1874, %v1111
      %v1908 = vsel %vm1901, %v1875, %v1113
      %v1909 = vsel %vm1901, %v1876, %v1115
      %v1910 = vsel %vm1901, %v1877, %v1117
      %v1911 = vsel %vm1901, %v1878, %v1119
      %v1912 = vsel %vm1901, %v1879, %v1121
      %v1913 = vsel %vm1901, %v1880, %v1123
      %v1914 = vsel %vm1901, %v1881, %v1125
      %v1915 = vsel %vm1901, %v1882, %v1127
      %v1916 = vsel %vm1901, %v1883, %v1129
      %v1917 = vsel %vm1901, %v1884, %v1131
      %v1918 = vsel %vm1901, %v1885, %v1133
      %v1919 = vsel %vm1901, %v1886, %v1135
      %v1920 = vsel %vm1901, %v1887, %v1137
      %v1921 = vsel %vm1901, %v1888, %v1139
      %v1922 = vsel %vm1901, %v1889, %v1141
      %v1923 = vsel %vm1901, %v1890, %v1143
      %v1924 = vsel %vm1901, %v1891, %v1145
      %v1925 = vsel %vm1901, %v1892, %v1147
      %v1926 = vsel %vm1901, %v1893, %v1149
      %v1927 = vsel %vm1901, %v1894, %v1151
      %v1928 = vsel %vm1901, %v1895, %v1153
      %v1929 = vsel %vm1901, %v1896, %v1155
      %v1930 = vsel %vm1901, %v1897, %v1157
      %v1931 = vsel %vm1901, %v1898, %v1159
      %v1932 = vsel %vm1901, %v1899, %v1161
      %v1933 = vsel %vm1901, %v1900, %v1163
      %vm1934 = vcmask 130048
      %v1935 = vsel %vm1934, %v1902, %v1229
      %v1936 = vsel %vm1934, %v1903, %v1231
      %v1937 = vsel %vm1934, %v1904, %v1233
      %v1938 = vsel %vm1934, %v1905, %v1235
      %v1939 = vsel %vm1934, %v1906, %v1237
      %v1940 = vsel %vm1934, %v1907, %v1239
      %v1941 = vsel %vm1934, %v1908, %v1241
      %v1942 = vsel %vm1934, %v1909, %v1243
      %v1943 = vsel %vm1934, %v1910, %v1245
      %v1944 = vsel %vm1934, %v1911, %v1247
      %v1945 = vsel %vm1934, %v1912, %v1249
      %v1946 = vsel %vm1934, %v1913, %v1251
      %v1947 = vsel %vm1934, %v1914, %v1253
      %v1948 = vsel %vm1934, %v1915, %v1255
      %v1949 = vsel %vm1934, %v1916, %v1257
      %v1950 = vsel %vm1934, %v1917, %v1259
      %v1951 = vsel %vm1934, %v1918, %v1261
      %v1952 = vsel %vm1934, %v1919, %v1263
      %v1953 = vsel %vm1934, %v1920, %v1265
      %v1954 = vsel %vm1934, %v1921, %v1267
      %v1955 = vsel %vm1934, %v1922, %v1269
      %v1956 = vsel %vm1934, %v1923, %v1271
      %v1957 = vsel %vm1934, %v1924, %v1273
      %v1958 = vsel %vm1934, %v1925, %v1275
      %v1959 = vsel %vm1934, %v1926, %v1277
      %v1960 = vsel %vm1934, %v1927, %v1279
      %v1961 = vsel %vm1934, %v1928, %v1281
      %v1962 = vsel %vm1934, %v1929, %v1283
      %v1963 = vsel %vm1934, %v1930, %v1285
      %v1964 = vsel %vm1934, %v1931, %v1287
      %v1965 = vsel %vm1934, %v1932, %v1289
      %v1966 = vsel %vm1934, %v1933, %v1291
      %vm1967 = vcmask 162816
      %v1968 = vsel %vm1967, %v1935, %v1357
      %v1969 = vsel %vm1967, %v1936, %v1359
      %v1970 = vsel %vm1967, %v1937, %v1361
      %v1971 = vsel %vm1967, %v1938, %v1363
      %v1972 = vsel %vm1967, %v1939, %v1365
      %v1973 = vsel %vm1967, %v1940, %v1367
      %v1974 = vsel %vm1967, %v1941, %v1369
      %v1975 = vsel %vm1967, %v1942, %v1371
      %v1976 = vsel %vm1967, %v1943, %v1373
      %v1977 = vsel %vm1967, %v1944, %v1375
      %v1978 = vsel %vm1967, %v1945, %v1377
      %v1979 = vsel %vm1967, %v1946, %v1379
      %v1980 = vsel %vm1967, %v1947, %v1381
      %v1981 = vsel %vm1967, %v1948, %v1383
      %v1982 = vsel %vm1967, %v1949, %v1385
      %v1983 = vsel %vm1967, %v1950, %v1387
      %v1984 = vsel %vm1967, %v1951, %v1389
      %v1985 = vsel %vm1967, %v1952, %v1391
      %v1986 = vsel %vm1967, %v1953, %v1393
      %v1987 = vsel %vm1967, %v1954, %v1395
      %v1988 = vsel %vm1967, %v1955, %v1397
      %v1989 = vsel %vm1967, %v1956, %v1399
      %v1990 = vsel %vm1967, %v1957, %v1401
      %v1991 = vsel %vm1967, %v1958, %v1403
      %v1992 = vsel %vm1967, %v1959, %v1405
      %v1993 = vsel %vm1967, %v1960, %v1407
      %v1994 = vsel %vm1967, %v1961, %v1409
      %v1995 = vsel %vm1967, %v1962, %v1411
      %v1996 = vsel %vm1967, %v1963, %v1413
      %v1997 = vsel %vm1967, %v1964, %v1415
      %v1998 = vsel %vm1967, %v1965, %v1417
      %v1999 = vsel %vm1967, %v1966, %v1419
      %vm2000 = vcmask 195584
      %v2001 = vsel %vm2000, %v1968, %v1485
      %v2002 = vsel %vm2000, %v1969, %v1487
      %v2003 = vsel %vm2000, %v1970, %v1489
      %v2004 = vsel %vm2000, %v1971, %v1491
      %v2005 = vsel %vm2000, %v1972, %v1493
      %v2006 = vsel %vm2000, %v1973, %v1495
      %v2007 = vsel %vm2000, %v1974, %v1497
      %v2008 = vsel %vm2000, %v1975, %v1499
      %v2009 = vsel %vm2000, %v1976, %v1501
      %v2010 = vsel %vm2000, %v1977, %v1503
      %v2011 = vsel %vm2000, %v1978, %v1505
      %v2012 = vsel %vm2000, %v1979, %v1507
      %v2013 = vsel %vm2000, %v1980, %v1509
      %v2014 = vsel %vm2000, %v1981, %v1511
      %v2015 = vsel %vm2000, %v1982, %v1513
      %v2016 = vsel %vm2000, %v1983, %v1515
      %v2017 = vsel %vm2000, %v1984, %v1517
      %v2018 = vsel %vm2000, %v1985, %v1519
      %v2019 = vsel %vm2000, %v1986, %v1521
      %v2020 = vsel %vm2000, %v1987, %v1523
      %v2021 = vsel %vm2000, %v1988, %v1525
      %v2022 = vsel %vm2000, %v1989, %v1527
      %v2023 = vsel %vm2000, %v1990, %v1529
      %v2024 = vsel %vm2000, %v1991, %v1531
      %v2025 = vsel %vm2000, %v1992, %v1533
      %v2026 = vsel %vm2000, %v1993, %v1535
      %v2027 = vsel %vm2000, %v1994, %v1537
      %v2028 = vsel %vm2000, %v1995, %v1539
      %v2029 = vsel %vm2000, %v1996, %v1541
      %v2030 = vsel %vm2000, %v1997, %v1543
      %v2031 = vsel %vm2000, %v1998, %v1545
      %v2032 = vsel %vm2000, %v1999, %v1547
      %vm2033 = vcmask 228352
      %v2034 = vsel %vm2033, %v2001, %v1613
      %v2035 = vsel %vm2033, %v2002, %v1615
      %v2036 = vsel %vm2033, %v2003, %v1617
      %v2037 = vsel %vm2033, %v2004, %v1619
      %v2038 = vsel %vm2033, %v2005, %v1621
      %v2039 = vsel %vm2033, %v2006, %v1623
      %v2040 = vsel %vm2033, %v2007, %v1625
      %v2041 = vsel %vm2033, %v2008, %v1627
      %v2042 = vsel %vm2033, %v2009, %v1629
      %v2043 = vsel %vm2033, %v2010, %v1631
      %v2044 = vsel %vm2033, %v2011, %v1633
      %v2045 = vsel %vm2033, %v2012, %v1635
      %v2046 = vsel %vm2033, %v2013, %v1637
      %v2047 = vsel %vm2033, %v2014, %v1639
      %v2048 = vsel %vm2033, %v2015, %v1641
      %v2049 = vsel %vm2033, %v2016, %v1643
      %v2050 = vsel %vm2033, %v2017, %v1645
      %v2051 = vsel %vm2033, %v2018, %v1647
      %v2052 = vsel %vm2033, %v2019, %v1649
      %v2053 = vsel %vm2033, %v2020, %v1651
      %v2054 = vsel %vm2033, %v2021, %v1653
      %v2055 = vsel %vm2033, %v2022, %v1655
      %v2056 = vsel %vm2033, %v2023, %v1657
      %v2057 = vsel %vm2033, %v2024, %v1659
      %v2058 = vsel %vm2033, %v2025, %v1661
      %v2059 = vsel %vm2033, %v2026, %v1663
      %v2060 = vsel %vm2033, %v2027, %v1665
      %v2061 = vsel %vm2033, %v2028, %v1667
      %v2062 = vsel %vm2033, %v2029, %v1669
      %v2063 = vsel %vm2033, %v2030, %v1671
      %v2064 = vsel %vm2033, %v2031, %v1673
      %v2065 = vsel %vm2033, %v2032, %v1675
      %vm2066 = vcmask 261120
      %v2067 = vsel %vm2066, %v2034, %v1741
      %v2068 = vsel %vm2066, %v2035, %v1743
      %v2069 = vsel %vm2066, %v2036, %v1745
      %v2070 = vsel %vm2066, %v2037, %v1747
      %v2071 = vsel %vm2066, %v2038, %v1749
      %v2072 = vsel %vm2066, %v2039, %v1751
      %v2073 = vsel %vm2066, %v2040, %v1753
      %v2074 = vsel %vm2066, %v2041, %v1755
      %v2075 = vsel %vm2066, %v2042, %v1757
      %v2076 = vsel %vm2066, %v2043, %v1759
      %v2077 = vsel %vm2066, %v2044, %v1761
      %v2078 = vsel %vm2066, %v2045, %v1763
      %v2079 = vsel %vm2066, %v2046, %v1765
      %v2080 = vsel %vm2066, %v2047, %v1767
      %v2081 = vsel %vm2066, %v2048, %v1769
      %v2082 = vsel %vm2066, %v2049, %v1771
      %v2083 = vsel %vm2066, %v2050, %v1773
      %v2084 = vsel %vm2066, %v2051, %v1775
      %v2085 = vsel %vm2066, %v2052, %v1777
      %v2086 = vsel %vm2066, %v2053, %v1779
      %v2087 = vsel %vm2066, %v2054, %v1781
      %v2088 = vsel %vm2066, %v2055, %v1783
      %v2089 = vsel %vm2066, %v2056, %v1785
      %v2090 = vsel %vm2066, %v2057, %v1787
      %v2091 = vsel %vm2066, %v2058, %v1789
      %v2092 = vsel %vm2066, %v2059, %v1791
      %v2093 = vsel %vm2066, %v2060, %v1793
      %v2094 = vsel %vm2066, %v2061, %v1795
      %v2095 = vsel %vm2066, %v2062, %v1797
      %v2096 = vsel %vm2066, %v2063, %v1799
      %v2097 = vsel %vm2066, %v2064, %v1801
      %v2098 = vsel %vm2066, %v2065, %v1803
      %v2099 = vpack.c.bf16 %v2068, %v2067
      %v2100 = vpack.c.bf16 %v2070, %v2069
      %v2101 = vpack.c.bf16 %v2072, %v2071
      %v2102 = vpack.c.bf16 %v2074, %v2073
      %v2103 = vpack.c.bf16 %v2076, %v2075
      %v2104 = vpack.c.bf16 %v2078, %v2077
      %v2105 = vpack.c.bf16 %v2080, %v2079
      %v2106 = vpack.c.bf16 %v2082, %v2081
      %v2107 = vpack.c.bf16 %v2084, %v2083
      %v2108 = vpack.c.bf16 %v2086, %v2085
      %v2109 = vpack.c.bf16 %v2088, %v2087
      %v2110 = vpack.c.bf16 %v2090, %v2089
      %v2111 = vpack.c.bf16 %v2092, %v2091
      %v2112 = vpack.c.bf16 %v2094, %v2093
      %v2113 = vpack.c.bf16 %v2096, %v2095
      %v2114 = vpack.c.bf16 %v2098, %v2097
      %v2115 = vld [vmem:[%s3] sm:$0xf]
      %v2116 = vld [vmem:[%s3 + $0x4] sm:$0xf]
      %v2117 = vld [vmem:[%s3 + $0x8] sm:$0xf]
      %v2118 = vld [vmem:[%s3 + $0xc] sm:$0xf]
      %v2119 = vld [vmem:[%s3 + $0x10] sm:$0x3]
      %v2120 = vld [vmem:[%s4] sm:$0x1]
      %v2122 = vlaneseq
      %v2123 = vshrl.u32 %v2122, 7
      %v2124 = vsub.s32 0, %v2123
      %v2125 = vrot.slane %v2120, %v2124
      %v2132 = vunpack.c.l.b16 %v2115
      %v2133 = vunpack.c.l.b16 %v2116
      %v2134 = vunpack.c.l.b16 %v2117
      %v2135 = vunpack.c.l.b16 %v2118
      %v2136 = vunpack.c.l.b16 %v2119
      %v2137 = vpack.c.b16 %v2133, %v2132
      %v2138 = vpack.c.b16 %v2135, %v2134
      %v2139 = vpack.c.b16 %v2136, %v2136
      %vm2142 = vcmask 293888
      %v2144 = vsel %vm2142, %v2099, 0
      %v2147 = vsel %vm2142, %v2100, 0
      %v2150 = vsel %vm2142, %v2101, 0
      %v2153 = vsel %vm2142, %v2102, 0
      %v2156 = vsel %vm2142, %v2103, 0
      %v2159 = vsel %vm2142, %v2104, 0
      %v2162 = vsel %vm2142, %v2105, 0
      %v2165 = vsel %vm2142, %v2106, 0
      %v2168 = vsel %vm2142, %v2107, 0
      %v2171 = vsel %vm2142, %v2108, 0
      %v2174 = vsel %vm2142, %v2109, 0
      %v2177 = vsel %vm2142, %v2110, 0
      %v2180 = vsel %vm2142, %v2111, 0
      %v2183 = vsel %vm2142, %v2112, 0
      %v2186 = vsel %vm2142, %v2113, 0
      %v2189 = vsel %vm2142, %v2114, 0
      %vm2191 = vcmask 1041408
      %v2193 = vsel %vm2191, %v2139, 0
      %2195 = vmatprep.subr.bf16.mxu0 0
      %2196 = vmatpush1.bf16.msra.mxu0 %v2137
      %2197 = vmatprep.subr.bf16.mxu0 0
      %2198 = vmatpush1.bf16.msra.mxu0 %v2138
      %2199 = vmatprep.subr.bf16.mxu0 0
      %2200 = vmatpush1.bf16.msra.mxu0 %v2193
      %2201 = vmatprep.subr.bf16.mxu0 0
      %2202 = vmatpush1.bf16.msra.mxu0 0
      %2203 = vmatprep.subr.bf16.mxu0 0
      %2204 = vmatpush1.bf16.msra.mxu0 0
      %2205 = vmatprep.subr.bf16.mxu0 0
      %2206 = vmatpush1.bf16.msra.mxu0 0
      %2207 = vmatprep.subr.bf16.mxu0 0
      %2208 = vmatpush1.bf16.msra.mxu0 0
      %2209 = vmatprep.subr.bf16.mxu0 0
      %2210 = vmatpush1.bf16.msra.mxu0 0
      %2211 = vmatprep.subr.bf16.mxu0 0
      %2212 = vmatpush1.bf16.msra.mxu0 0
      %2213 = vmatprep.subr.bf16.mxu0 0
      %2214 = vmatpush1.bf16.msra.mxu0 0
      %2215 = vmatprep.subr.bf16.mxu0 0
      %2216 = vmatpush1.bf16.msra.mxu0 0
      %2217 = vmatprep.subr.bf16.mxu0 0
      %2218 = vmatpush1.bf16.msra.mxu0 0
      %2219 = vmatprep.subr.bf16.mxu0 0
      %2220 = vmatpush1.bf16.msra.mxu0 0
      %2221 = vmatprep.subr.bf16.mxu0 0
      %2222 = vmatpush1.bf16.msra.mxu0 0
      %2223 = vmatprep.subr.bf16.mxu0 0
      %2224 = vmatpush1.bf16.msra.mxu0 0
      %2225 = vmatprep.subr.bf16.mxu0 0
      %2226 = vmatpush1.bf16.msra.mxu0 0
      %2227 = vmatprep.mubr.bf16.mxu0 0
      %2228 = vmatmul.mubr.bf16.gmra.mrb[0].mxu0 %v2144
      %v2229 = vpop.f32.mrb[0].mxu0
      %v2230 = vadd.f32 %v2125, %v2229
      %v2231 = vpop.f32.mrb[0].mxu0
      %v2232 = vpop.f32.mrb[0].mxu0
      %v2233 = vadd.f32 %v2125, %v2232
      %v2234 = vpop.f32.mrb[0].mxu0
      %2235 = vmatprep.mubr.bf16.mxu0 0
      %2236 = vmatmul.mubr.bf16.gmra.mrb[0].mxu0 %v2147
      %v2237 = vpop.f32.mrb[0].mxu0
      %v2238 = vadd.f32 %v2125, %v2237
      %v2239 = vpop.f32.mrb[0].mxu0
      %v2240 = vpop.f32.mrb[0].mxu0
      %v2241 = vadd.f32 %v2125, %v2240
      %v2242 = vpop.f32.mrb[0].mxu0
      %2243 = vmatprep.mubr.bf16.mxu0 0
      %2244 = vmatmul.mubr.bf16.gmra.mrb[0].mxu0 %v2150
      %v2245 = vpop.f32.mrb[0].mxu0
      %v2246 = vadd.f32 %v2125, %v2245
      %v2247 = vpop.f32.mrb[0].mxu0
      %v2248 = vpop.f32.mrb[0].mxu0
      %v2249 = vadd.f32 %v2125, %v2248
      %v2250 = vpop.f32.mrb[0].mxu0
      %2251 = vmatprep.mubr.bf16.mxu0 0
      %2252 = vmatmul.mubr.bf16.gmra.mrb[0].mxu0 %v2153
      %v2253 = vpop.f32.mrb[0].mxu0
      %v2254 = vadd.f32 %v2125, %v2253
      %v2255 = vpop.f32.mrb[0].mxu0
      %v2256 = vpop.f32.mrb[0].mxu0
      %v2257 = vadd.f32 %v2125, %v2256
      %v2258 = vpop.f32.mrb[0].mxu0
      %2259 = vmatprep.mubr.bf16.mxu0 0
      %2260 = vmatmul.mubr.bf16.gmra.mrb[0].mxu0 %v2156
      %v2261 = vpop.f32.mrb[0].mxu0
      %v2262 = vadd.f32 %v2125, %v2261
      %v2263 = vpop.f32.mrb[0].mxu0
      %v2264 = vpop.f32.mrb[0].mxu0
      %v2265 = vadd.f32 %v2125, %v2264
      %v2266 = vpop.f32.mrb[0].mxu0
      %2267 = vmatprep.mubr.bf16.mxu0 0
      %2268 = vmatmul.mubr.bf16.gmra.mrb[0].mxu0 %v2159
      %v2269 = vpop.f32.mrb[0].mxu0
      %v2270 = vadd.f32 %v2125, %v2269
      %v2271 = vpop.f32.mrb[0].mxu0
      %v2272 = vpop.f32.mrb[0].mxu0
      %v2273 = vadd.f32 %v2125, %v2272
      %v2274 = vpop.f32.mrb[0].mxu0
      %2275 = vmatprep.mubr.bf16.mxu0 0
      %2276 = vmatmul.mubr.bf16.gmra.mrb[0].mxu0 %v2162
      %v2277 = vpop.f32.mrb[0].mxu0
      %v2278 = vadd.f32 %v2125, %v2277
      %v2279 = vpop.f32.mrb[0].mxu0
      %v2280 = vpop.f32.mrb[0].mxu0
      %v2281 = vadd.f32 %v2125, %v2280
      %v2282 = vpop.f32.mrb[0].mxu0
      %2283 = vmatprep.mubr.bf16.mxu0 0
      %2284 = vmatmul.mubr.bf16.gmra.mrb[0].mxu0 %v2165
      %v2285 = vpop.f32.mrb[0].mxu0
      %v2286 = vadd.f32 %v2125, %v2285
      %v2287 = vpop.f32.mrb[0].mxu0
      %v2288 = vpop.f32.mrb[0].mxu0
      %v2289 = vadd.f32 %v2125, %v2288
      %v2290 = vpop.f32.mrb[0].mxu0
      %2291 = vmatprep.mubr.bf16.mxu0 0
      %2292 = vmatmul.mubr.bf16.gmra.mrb[0].mxu0 %v2168
      %v2293 = vpop.f32.mrb[0].mxu0
      %v2294 = vadd.f32 %v2125, %v2293
      %v2295 = vpop.f32.mrb[0].mxu0
      %v2296 = vpop.f32.mrb[0].mxu0
      %v2297 = vadd.f32 %v2125, %v2296
      %v2298 = vpop.f32.mrb[0].mxu0
      %2299 = vmatprep.mubr.bf16.mxu0 0
      %2300 = vmatmul.mubr.bf16.gmra.mrb[0].mxu0 %v2171
      %v2301 = vpop.f32.mrb[0].mxu0
      %v2302 = vadd.f32 %v2125, %v2301
      %v2303 = vpop.f32.mrb[0].mxu0
      %v2304 = vpop.f32.mrb[0].mxu0
      %v2305 = vadd.f32 %v2125, %v2304
      %v2306 = vpop.f32.mrb[0].mxu0
      %2307 = vmatprep.mubr.bf16.mxu0 0
      %2308 = vmatmul.mubr.bf16.gmra.mrb[0].mxu0 %v2174
      %v2309 = vpop.f32.mrb[0].mxu0
      %v2310 = vadd.f32 %v2125, %v2309
      %v2311 = vpop.f32.mrb[0].mxu0
      %v2312 = vpop.f32.mrb[0].mxu0
      %v2313 = vadd.f32 %v2125, %v2312
      %v2314 = vpop.f32.mrb[0].mxu0
      %2315 = vmatprep.mubr.bf16.mxu0 0
      %2316 = vmatmul.mubr.bf16.gmra.mrb[0].mxu0 %v2177
      %v2317 = vpop.f32.mrb[0].mxu0
      %v2318 = vadd.f32 %v2125, %v2317
      %v2319 = vpop.f32.mrb[0].mxu0
      %v2320 = vpop.f32.mrb[0].mxu0
      %v2321 = vadd.f32 %v2125, %v2320
      %v2322 = vpop.f32.mrb[0].mxu0
      %2323 = vmatprep.mubr.bf16.mxu0 0
      %2324 = vmatmul.mubr.bf16.gmra.mrb[0].mxu0 %v2180
      %v2325 = vpop.f32.mrb[0].mxu0
      %v2326 = vadd.f32 %v2125, %v2325
      %v2327 = vpop.f32.mrb[0].mxu0
      %v2328 = vpop.f32.mrb[0].mxu0
      %v2329 = vadd.f32 %v2125, %v2328
      %v2330 = vpop.f32.mrb[0].mxu0
      %2331 = vmatprep.mubr.bf16.mxu0 0
      %2332 = vmatmul.mubr.bf16.gmra.mrb[0].mxu0 %v2183
      %v2333 = vpop.f32.mrb[0].mxu0
      %v2334 = vadd.f32 %v2125, %v2333
      %v2335 = vpop.f32.mrb[0].mxu0
      %v2336 = vpop.f32.mrb[0].mxu0
      %v2337 = vadd.f32 %v2125, %v2336
      %v2338 = vpop.f32.mrb[0].mxu0
      %2339 = vmatprep.mubr.bf16.mxu0 0
      %2340 = vmatmul.mubr.bf16.gmra.mrb[0].mxu0 %v2186
      %v2341 = vpop.f32.mrb[0].mxu0
      %v2342 = vadd.f32 %v2125, %v2341
      %v2343 = vpop.f32.mrb[0].mxu0
      %v2344 = vpop.f32.mrb[0].mxu0
      %v2345 = vadd.f32 %v2125, %v2344
      %v2346 = vpop.f32.mrb[0].mxu0
      %2347 = vmatprep.mubr.bf16.mxu0 0
      %2348 = vmatmul.mubr.bf16.gmra.mrb[0].mxu0 %v2189
      %v2349 = vpop.f32.mrb[0].mxu0
      %v2350 = vadd.f32 %v2125, %v2349
      %v2351 = vpop.f32.mrb[0].mxu0
      %v2352 = vpop.f32.mrb[0].mxu0
      %v2353 = vadd.f32 %v2125, %v2352
      %v2354 = vpop.f32.mrb[0].mxu0
      %2355 = vdwg.mxu0
      %2356 = vst.msk [vmem:[%s286] sm:$0xff] %vm434, %v2230
      %2357 = vst.msk [vmem:[%s286 + $0x8] sm:$0xff] %vm434, %v2233
      %2358 = vst.msk [vmem:[%s286 + $0x10] sm:$0xff] %vm434, %v2238
      %2359 = vst.msk [vmem:[%s286 + $0x18] sm:$0xff] %vm434, %v2241
      %2360 = vst.msk [vmem:[%s286 + $0x20] sm:$0xff] %vm434, %v2246
      %2361 = vst.msk [vmem:[%s286 + $0x28] sm:$0xff] %vm434, %v2249
      %2362 = vst.msk [vmem:[%s286 + $0x30] sm:$0xff] %vm434, %v2254
      %2363 = vst.msk [vmem:[%s286 + $0x38] sm:$0xff] %vm434, %v2257
      %2364 = vst.msk [vmem:[%s286 + $0x40] sm:$0xff] %vm434, %v2262
      %2365 = vst.msk [vmem:[%s286 + $0x48] sm:$0xff] %vm434, %v2265
      %2366 = vst.msk [vmem:[%s286 + $0x50] sm:$0xff] %vm434, %v2270
      %2367 = vst.msk [vmem:[%s286 + $0x58] sm:$0xff] %vm434, %v2273
      %2368 = vst.msk [vmem:[%s286 + $0x60] sm:$0xff] %vm434, %v2278
      %2369 = vst.msk [vmem:[%s286 + $0x68] sm:$0xff] %vm434, %v2281
      %2370 = vst.msk [vmem:[%s286 + $0x70] sm:$0xff] %vm434, %v2286
      %2371 = vst.msk [vmem:[%s286 + $0x78] sm:$0xff] %vm434, %v2289
      %2372 = vst.msk [vmem:[%s286 + $0x80] sm:$0xff] %vm434, %v2294
      %2373 = vst.msk [vmem:[%s286 + $0x88] sm:$0xff] %vm434, %v2297
      %2374 = vst.msk [vmem:[%s286 + $0x90] sm:$0xff] %vm434, %v2302
      %2375 = vst.msk [vmem:[%s286 + $0x98] sm:$0xff] %vm434, %v2305
      %2376 = vst.msk [vmem:[%s286 + $0xa0] sm:$0xff] %vm434, %v2310
      %2377 = vst.msk [vmem:[%s286 + $0xa8] sm:$0xff] %vm434, %v2313
      %2378 = vst.msk [vmem:[%s286 + $0xb0] sm:$0xff] %vm434, %v2318
      %2379 = vst.msk [vmem:[%s286 + $0xb8] sm:$0xff] %vm434, %v2321
      %2380 = vst.msk [vmem:[%s286 + $0xc0] sm:$0xff] %vm434, %v2326
      %2381 = vst.msk [vmem:[%s286 + $0xc8] sm:$0xff] %vm434, %v2329
      %2382 = vst.msk [vmem:[%s286 + $0xd0] sm:$0xff] %vm434, %v2334
      %2383 = vst.msk [vmem:[%s286 + $0xd8] sm:$0xff] %vm434, %v2337
      %2384 = vst.msk [vmem:[%s286 + $0xe0] sm:$0xff] %vm434, %v2342
      %2385 = vst.msk [vmem:[%s286 + $0xe8] sm:$0xff] %vm434, %v2345
      %2386 = vst.msk [vmem:[%s286 + $0xf0] sm:$0xff] %vm434, %v2350
      %2387 = vst.msk [vmem:[%s286 + $0xf8] sm:$0xff] %vm434, %v2353
      %v2388 = vsel %vm434, %v2230, 0.0
      %v2389 = vsel %vm434, %v2233, 0.0
      %v2390 = vadd.f32 %v2388, %v2389
      %v2391 = vsel %vm434, %v2238, 0.0
      %v2392 = vadd.f32 %v2390, %v2391
      %v2393 = vsel %vm434, %v2241, 0.0
      %v2394 = vadd.f32 %v2392, %v2393
      %v2395 = vsel %vm434, %v2246, 0.0
      %v2396 = vadd.f32 %v2394, %v2395
      %v2397 = vsel %vm434, %v2249, 0.0
      %v2398 = vadd.f32 %v2396, %v2397
      %v2399 = vsel %vm434, %v2254, 0.0
      %v2400 = vadd.f32 %v2398, %v2399
      %v2401 = vsel %vm434, %v2257, 0.0
      %v2402 = vadd.f32 %v2400, %v2401
      %v2403 = vsel %vm434, %v2262, 0.0
      %v2404 = vadd.f32 %v2402, %v2403
      %v2405 = vsel %vm434, %v2265, 0.0
      %v2406 = vadd.f32 %v2404, %v2405
      %v2407 = vsel %vm434, %v2270, 0.0
      %v2408 = vadd.f32 %v2406, %v2407
      %v2409 = vsel %vm434, %v2273, 0.0
      %v2410 = vadd.f32 %v2408, %v2409
      %v2411 = vsel %vm434, %v2278, 0.0
      %v2412 = vadd.f32 %v2410, %v2411
      %v2413 = vsel %vm434, %v2281, 0.0
      %v2414 = vadd.f32 %v2412, %v2413
      %v2415 = vsel %vm434, %v2286, 0.0
      %v2416 = vadd.f32 %v2414, %v2415
      %v2417 = vsel %vm434, %v2289, 0.0
      %v2418 = vadd.f32 %v2416, %v2417
      %v2419 = vsel %vm434, %v2294, 0.0
      %v2420 = vadd.f32 %v2418, %v2419
      %v2421 = vsel %vm434, %v2297, 0.0
      %v2422 = vadd.f32 %v2420, %v2421
      %v2423 = vsel %vm434, %v2302, 0.0
      %v2424 = vadd.f32 %v2422, %v2423
      %v2425 = vsel %vm434, %v2305, 0.0
      %v2426 = vadd.f32 %v2424, %v2425
      %v2427 = vsel %vm434, %v2310, 0.0
      %v2428 = vadd.f32 %v2426, %v2427
      %v2429 = vsel %vm434, %v2313, 0.0
      %v2430 = vadd.f32 %v2428, %v2429
      %v2431 = vsel %vm434, %v2318, 0.0
      %v2432 = vadd.f32 %v2430, %v2431
      %v2433 = vsel %vm434, %v2321, 0.0
      %v2434 = vadd.f32 %v2432, %v2433
      %v2435 = vsel %vm434, %v2326, 0.0
      %v2436 = vadd.f32 %v2434, %v2435
      %v2437 = vsel %vm434, %v2329, 0.0
      %v2438 = vadd.f32 %v2436, %v2437
      %v2439 = vsel %vm434, %v2334, 0.0
      %v2440 = vadd.f32 %v2438, %v2439
      %v2441 = vsel %vm434, %v2337, 0.0
      %v2442 = vadd.f32 %v2440, %v2441
      %v2443 = vsel %vm434, %v2342, 0.0
      %v2444 = vadd.f32 %v2442, %v2443
      %v2445 = vsel %vm434, %v2345, 0.0
      %v2446 = vadd.f32 %v2444, %v2445
      %v2447 = vsel %vm434, %v2350, 0.0
      %v2448 = vadd.f32 %v2446, %v2447
      %v2449 = vsel %vm434, %v2353, 0.0
      %v2450 = vadd.f32 %v2448, %v2449
      %v2451 = vrot.slane %v2450, 4
      %v2452 = vadd.f32 %v2450, %v2451
      %v2453 = vrot.slane %v2452, 2
      %v2454 = vadd.f32 %v2452, %v2453
      %v2455 = vrot.slane %v2454, 1
      %v2456 = vadd.f32 %v2454, %v2455
      %v2457 = vmul.f32 %v2230, %v2230
      %v2458 = vmul.f32 %v2233, %v2233
      %v2459 = vmul.f32 %v2238, %v2238
      %v2460 = vmul.f32 %v2241, %v2241
      %v2461 = vmul.f32 %v2246, %v2246
      %v2462 = vmul.f32 %v2249, %v2249
      %v2463 = vmul.f32 %v2254, %v2254
      %v2464 = vmul.f32 %v2257, %v2257
      %v2465 = vmul.f32 %v2262, %v2262
      %v2466 = vmul.f32 %v2265, %v2265
      %v2467 = vmul.f32 %v2270, %v2270
      %v2468 = vmul.f32 %v2273, %v2273
      %v2469 = vmul.f32 %v2278, %v2278
      %v2470 = vmul.f32 %v2281, %v2281
      %v2471 = vmul.f32 %v2286, %v2286
      %v2472 = vmul.f32 %v2289, %v2289
      %v2473 = vmul.f32 %v2294, %v2294
      %v2474 = vmul.f32 %v2297, %v2297
      %v2475 = vmul.f32 %v2302, %v2302
      %v2476 = vmul.f32 %v2305, %v2305
      %v2477 = vmul.f32 %v2310, %v2310
      %v2478 = vmul.f32 %v2313, %v2313
      %v2479 = vmul.f32 %v2318, %v2318
      %v2480 = vmul.f32 %v2321, %v2321
      %v2481 = vmul.f32 %v2326, %v2326
      %v2482 = vmul.f32 %v2329, %v2329
      %v2483 = vmul.f32 %v2334, %v2334
      %v2484 = vmul.f32 %v2337, %v2337
      %v2485 = vmul.f32 %v2342, %v2342
      %v2486 = vmul.f32 %v2345, %v2345
      %v2487 = vmul.f32 %v2350, %v2350
      %v2488 = vmul.f32 %v2353, %v2353
      %v2489 = vsel %vm434, %v2457, 0.0
      %v2490 = vsel %vm434, %v2458, 0.0
      %v2491 = vadd.f32 %v2489, %v2490
      %v2492 = vsel %vm434, %v2459, 0.0
      %v2493 = vadd.f32 %v2491, %v2492
      %v2494 = vsel %vm434, %v2460, 0.0
      %v2495 = vadd.f32 %v2493, %v2494
      %v2496 = vsel %vm434, %v2461, 0.0
      %v2497 = vadd.f32 %v2495, %v2496
      %v2498 = vsel %vm434, %v2462, 0.0
      %v2499 = vadd.f32 %v2497, %v2498
      %v2500 = vsel %vm434, %v2463, 0.0
      %v2501 = vadd.f32 %v2499, %v2500
      %v2502 = vsel %vm434, %v2464, 0.0
      %v2503 = vadd.f32 %v2501, %v2502
      %v2504 = vsel %vm434, %v2465, 0.0
      %v2505 = vadd.f32 %v2503, %v2504
      %v2506 = vsel %vm434, %v2466, 0.0
      %v2507 = vadd.f32 %v2505, %v2506
      %v2508 = vsel %vm434, %v2467, 0.0
      %v2509 = vadd.f32 %v2507, %v2508
      %v2510 = vsel %vm434, %v2468, 0.0
      %v2511 = vadd.f32 %v2509, %v2510
      %v2512 = vsel %vm434, %v2469, 0.0
      %v2513 = vadd.f32 %v2511, %v2512
      %v2514 = vsel %vm434, %v2470, 0.0
      %v2515 = vadd.f32 %v2513, %v2514
      %v2516 = vsel %vm434, %v2471, 0.0
      %v2517 = vadd.f32 %v2515, %v2516
      %v2518 = vsel %vm434, %v2472, 0.0
      %v2519 = vadd.f32 %v2517, %v2518
      %v2520 = vsel %vm434, %v2473, 0.0
      %v2521 = vadd.f32 %v2519, %v2520
      %v2522 = vsel %vm434, %v2474, 0.0
      %v2523 = vadd.f32 %v2521, %v2522
      %v2524 = vsel %vm434, %v2475, 0.0
      %v2525 = vadd.f32 %v2523, %v2524
      %v2526 = vsel %vm434, %v2476, 0.0
      %v2527 = vadd.f32 %v2525, %v2526
      %v2528 = vsel %vm434, %v2477, 0.0
      %v2529 = vadd.f32 %v2527, %v2528
      %v2530 = vsel %vm434, %v2478, 0.0
      %v2531 = vadd.f32 %v2529, %v2530
      %v2532 = vsel %vm434, %v2479, 0.0
      %v2533 = vadd.f32 %v2531, %v2532
      %v2534 = vsel %vm434, %v2480, 0.0
      %v2535 = vadd.f32 %v2533, %v2534
      %v2536 = vsel %vm434, %v2481, 0.0
      %v2537 = vadd.f32 %v2535, %v2536
      %v2538 = vsel %vm434, %v2482, 0.0
      %v2539 = vadd.f32 %v2537, %v2538
      %v2540 = vsel %vm434, %v2483, 0.0
      %v2541 = vadd.f32 %v2539, %v2540
      %v2542 = vsel %vm434, %v2484, 0.0
      %v2543 = vadd.f32 %v2541, %v2542
      %v2544 = vsel %vm434, %v2485, 0.0
      %v2545 = vadd.f32 %v2543, %v2544
      %v2546 = vsel %vm434, %v2486, 0.0
      %v2547 = vadd.f32 %v2545, %v2546
      %v2548 = vsel %vm434, %v2487, 0.0
      %v2549 = vadd.f32 %v2547, %v2548
      %v2550 = vsel %vm434, %v2488, 0.0
      %v2551 = vadd.f32 %v2549, %v2550
      %v2552 = vrot.slane %v2551, 4
      %v2553 = vadd.f32 %v2551, %v2552
      %v2554 = vrot.slane %v2553, 2
      %v2555 = vadd.f32 %v2553, %v2554
      %v2556 = vrot.slane %v2555, 1
      %v2557 = vadd.f32 %v2555, %v2556
      %vm2558 = vcmask 1040384
      %v2559 = vsel %vm2558, %v2456, %v2557
      %2560 = vst.msk [vmem:[%s290] sm:$0x3] %vm437, %v2559
      %p2561 = scmp.lt.s32.totalorder %s18, 1
      %s2562 = scalar_select %p2561, %s18, 1
      %s2563 = smul.addr %s2562, 32
      %s2564 = smul.addr %s2563, 8
      %s2565 = scalar_lea.vmem %s5, %s2564
      %p2566 = scmp.lt.s32.totalorder %s18, 1
      %s2567 = scalar_select %p2566, %s18, 1
      %s2568 = smul.addr %s2567, 2
      %s2569 = scalar_lea.vmem %s6, %s2568
      // Predicated region
      $region41: #{gen_block_forward.4} parent=39 // pred_check
        %p2570 = pneg %p156
      $region42: #{gen_block_forward.4} parent=39 // pred_check_branch
        %2572 = sbr.rel (%p2570) target = $region44
      $region43: #{gen_block_forward.4} parent=39 // pred_region
        _
      $region44: #{gen_block_forward.4} parent=39 // pred_fallthru
        _
      // Predicated region
      $region45: #{gen_block_forward.4} parent=39 // pred_check
        %p2573 = pneg %p182
      $region46: #{gen_block_forward.4} parent=39 // pred_check_branch
        %2575 = sbr.rel (%p2573) target = $region48
      $region47: #{gen_block_forward.4} parent=39 // pred_region
        _
      $region48: #{gen_block_forward.4} parent=39 // pred_fallthru
        _
    $region40: #{gen_block_forward.4} parent=5 // pred_fallthru
      _
    %p2576 = scmp.le.s32.totalorder 2, %s13
    // Predicated region
    $region49: #{gen_block_forward.4} parent=5 // pred_check
      %p2577 = pneg %p2576
    $region50: #{gen_block_forward.4} parent=5 // pred_check_branch
      %2579 = sbr.rel (%p2577) target = $region52
    $region51: #{gen_block_forward.4} parent=5 // pred_region
      %s2580 = ssub.s32 %s13, 2
      // Predicated region
      $region53: #{gen_block_forward.4} parent=51 // pred_check
        %p2581 = pneg %p162
      $region54: #{gen_block_forward.4} parent=51 // pred_check_branch
        %2583 = sbr.rel (%p2581) target = $region56
      $region55: #{gen_block_forward.4} parent=51 // pred_region
        %p2584 = scmp.lt.s32.totalorder %s19, 1
        %s2585 = scalar_select %p2584, %s19, 1
        %s2586 = smul.addr %s2585, 32
        %s2587 = smul.addr %s2586, 8
        %s2588 = scalar_lea.vmem %s5, %s2587
      $region56: #{gen_block_forward.4} parent=51 // pred_fallthru
        _
      // Predicated region
      $region57: #{gen_block_forward.4} parent=51 // pred_check
        %p2589 = pneg %p188
      $region58: #{gen_block_forward.4} parent=51 // pred_check_branch
        %2591 = sbr.rel (%p2589) target = $region60
      $region59: #{gen_block_forward.4} parent=51 // pred_region
        %p2592 = scmp.lt.s32.totalorder %s19, 1
        %s2593 = scalar_select %p2592, %s19, 1
        %s2594 = smul.addr %s2593, 2
        %s2595 = scalar_lea.vmem %s6, %s2594
      $region60: #{gen_block_forward.4} parent=51 // pred_fallthru
        _
    $region52: #{gen_block_forward.4} parent=5 // pred_fallthru
      _
  $region6: #{gen_block_forward.4} parent=0 // loop_footer
    %s17 = sadd.s32 1, %s13
  $region7: #{gen_block_forward.4} parent=0 // loop_footer_branch
    %12 = sbr.rel target = $region3
  $region8: #{gen_block_forward.4} parent=0 // loop_exit
    _

// kernel: gen_block_forward.5
$region0: #{gen_block_forward.5}
  #allocation0 [shape = 'u32[]', space=smem, size = 0x4, offset = 0x4, fixed_abs, tag = 'smem constant byte address 0x4 - core index']
  #allocation1 [shape = 'u32[144,128]{1,0:T(1,128)}', space=vmem, size = 0x12000, scoped, tag = 'internal scratch']
  #allocation2 [shape = 'f32[1,18,18,4]{3,2,1,0:T(8,128)}', space=vmem, size = 0x36000, scoped, tag = 'scratch operand']
  %s0 = inlined_call_operand.vmem [shape: f32[2,16,16,4], index: 0, kind: input, shape index: {}]
  %s1 = inlined_call_operand.vmem [shape: f32[2,16,16,4], index: 1, kind: input, shape index: {}]
  %s2 = inlined_call_operand.vmem [shape: f32[2,1,1,4], index: 2, kind: input, shape index: {}]
  %s3 = inlined_call_operand.vmem [shape: f32[2,1,1,4], index: 3, kind: input, shape index: {}]
  %s4 = inlined_call_operand.vmem [shape: bf16[36,4], index: 4, kind: input, shape index: {}]
  %s5 = inlined_call_operand.vmem [shape: f32[1,4], index: 5, kind: input, shape index: {}]
  %s6 = inlined_call_operand.vmem [shape: bf16[4,4], index: 6, kind: input, shape index: {}]
  %s7 = inlined_call_operand.vmem [shape: f32[1,4], index: 7, kind: input, shape index: {}]
  %s8 = inlined_call_operand.vmem [shape: f32[2,16,16,4], index: 8, kind: output, shape index: {}]
  %s9 = sld [smem:[#allocation0]]
  $region65: #{gen_block_forward.5} parent=0
    _
  %s11 = ssub.s32 1, %s9
  %s12 = scalar_select 0, %s11, %s9
  loop: start=0, step=1, limit=4
  $region2: #{gen_block_forward.5} parent=0 // loop_pre_header
    _
  $region3: #{gen_block_forward.5} parent=0 // loop_header
    %s14 = sphi 0, %s18
    %p15 = scmp.ge.s32.totalorder %s14, 4
    %s24 = sphi 0, %s26
    %s27 = sphi 0, %s24
    %s28 = sphi 0, %s27
    %s44 = sphi 0, %s28
    %s50 = sphi 0, %s52
    %s53 = sphi 0, %s50
    %s54 = sphi 0, %s53
    %s70 = sphi 0, %s54
    %s76 = sphi 0, %s78
    %s79 = sphi 0, %s76
    %s80 = sphi 0, %s79
    %s96 = sphi 0, %s80
    %s102 = sphi 0, %s104
    %s105 = sphi 0, %s102
    %s106 = sphi 0, %s105
    %s122 = sphi 0, %s106
    %s126 = sphi 0, %s126
    %s128 = sphi 0, %s126
    %s129 = sphi 0, %s128
    %s143 = sphi 0, %s129
    %s147 = sphi 0, %s147
    %s149 = sphi 0, %s147
    %s150 = sphi 0, %s149
    %s164 = sphi 0, %s150
    %s168 = sphi 0, %s168
    %s170 = sphi 0, %s168
    %s171 = sphi 0, %s170
    %s185 = sphi 0, %s171
    %s189 = sphi 0, %s189
    %s191 = sphi 0, %s189
    %s192 = sphi 0, %s191
    %s206 = sphi 0, %s192
    %s212 = sphi 0, %s214
    %s215 = sphi 0, %s212
    %s216 = sphi 0, %s215
    %s232 = sphi 0, %s216
  $region4: #{gen_block_forward.5} parent=0 // loop_header_branch
    %17 = sbr.rel (%p15) target = $region8
  $region5: #{gen_block_forward.5} parent=0 // loop_body
    %s19 = ssub.s32 %s14, 1
    %s20 = ssub.s32 %s14, 2
    %s21 = sadd.s32 %s14, 1
    %s22 = ssub.s32 %s14, %s21
    %p23 = scmp.eq.s32.totalorder %s22, 0
    %s25 = sadd.s32 %s24, 1
    %s26 = scalar_select %p23, %s24, %s25
    %p29 = pneg %p23
    %p30 = scmp.eq.s32.totalorder %s14, 1
    %p31 = por %p29, %p30
    %p32 = scmp.ne.s32.totalorder %s24, %s27
    %p33 = scmp.eq.s32.totalorder %s14, 0
    %p34 = por %p32, %p33
    %p35 = scmp.ne.s32.totalorder %s24, %s27
    %p36 = scmp.eq.s32.totalorder %s19, 1
    %p37 = por %p35, %p36
    %p38 = scmp.ne.s32.totalorder %s27, %s28
    %p39 = scmp.eq.s32.totalorder %s19, 0
    %p40 = por %p38, %p39
    %p41 = scmp.ne.s32.totalorder %s27, %s28
    %p42 = scmp.eq.s32.totalorder %s20, 1
    %p43 = por %p41, %p42
    %p45 = scmp.ne.s32.totalorder %s28, %s44
    %p46 = scmp.eq.s32.totalorder %s20, 0
    %p47 = por %p45, %p46
    %s48 = ssub.s32 %s14, %s21
    %p49 = scmp.eq.s32.totalorder %s48, 0
    %s51 = sadd.s32 %s50, 1
    %s52 = scalar_select %p49, %s50, %s51
    %p55 = pneg %p49
    %p56 = scmp.eq.s32.totalorder %s14, 1
    %p57 = por %p55, %p56
    %p58 = scmp.ne.s32.totalorder %s50, %s53
    %p59 = scmp.eq.s32.totalorder %s14, 0
    %p60 = por %p58, %p59
    %p61 = scmp.ne.s32.totalorder %s50, %s53
    %p62 = scmp.eq.s32.totalorder %s19, 1
    %p63 = por %p61, %p62
    %p64 = scmp.ne.s32.totalorder %s53, %s54
    %p65 = scmp.eq.s32.totalorder %s19, 0
    %p66 = por %p64, %p65
    %p67 = scmp.ne.s32.totalorder %s53, %s54
    %p68 = scmp.eq.s32.totalorder %s20, 1
    %p69 = por %p67, %p68
    %p71 = scmp.ne.s32.totalorder %s54, %s70
    %p72 = scmp.eq.s32.totalorder %s20, 0
    %p73 = por %p71, %p72
    %s74 = ssub.s32 %s14, %s21
    %p75 = scmp.eq.s32.totalorder %s74, 0
    %s77 = sadd.s32 %s76, 1
    %s78 = scalar_select %p75, %s76, %s77
    %p81 = pneg %p75
    %p82 = scmp.eq.s32.totalorder %s14, 1
    %p83 = por %p81, %p82
    %p84 = scmp.ne.s32.totalorder %s76, %s79
    %p85 = scmp.eq.s32.totalorder %s14, 0
    %p86 = por %p84, %p85
    %p87 = scmp.ne.s32.totalorder %s76, %s79
    %p88 = scmp.eq.s32.totalorder %s19, 1
    %p89 = por %p87, %p88
    %p90 = scmp.ne.s32.totalorder %s79, %s80
    %p91 = scmp.eq.s32.totalorder %s19, 0
    %p92 = por %p90, %p91
    %p93 = scmp.ne.s32.totalorder %s79, %s80
    %p94 = scmp.eq.s32.totalorder %s20, 1
    %p95 = por %p93, %p94
    %p97 = scmp.ne.s32.totalorder %s80, %s96
    %p98 = scmp.eq.s32.totalorder %s20, 0
    %p99 = por %p97, %p98
    %s100 = ssub.s32 %s14, %s21
    %p101 = scmp.eq.s32.totalorder %s100, 0
    %s103 = sadd.s32 %s102, 1
    %s104 = scalar_select %p101, %s102, %s103
    %p107 = pneg %p101
    %p108 = scmp.eq.s32.totalorder %s14, 1
    %p109 = por %p107, %p108
    %p110 = scmp.ne.s32.totalorder %s102, %s105
    %p111 = scmp.eq.s32.totalorder %s14, 0
    %p112 = por %p110, %p111
    %p113 = scmp.ne.s32.totalorder %s102, %s105
    %p114 = scmp.eq.s32.totalorder %s19, 1
    %p115 = por %p113, %p114
    %p116 = scmp.ne.s32.totalorder %s105, %s106
    %p117 = scmp.eq.s32.totalorder %s19, 0
    %p118 = por %p116, %p117
    %p119 = scmp.ne.s32.totalorder %s105, %s106
    %p120 = scmp.eq.s32.totalorder %s20, 1
    %p121 = por %p119, %p120
    %p123 = scmp.ne.s32.totalorder %s106, %s122
    %p124 = scmp.eq.s32.totalorder %s20, 0
    %p125 = por %p123, %p124
    %s127 = sadd.s32 %s126, 1
    %p130 = scmp.eq.s32.totalorder %s14, 1
    %p131 = scmp.ne.s32.totalorder %s126, %s128
    %p132 = scmp.eq.s32.totalorder %s14, 0
    %p133 = por %p131, %p132
    %p134 = scmp.ne.s32.totalorder %s126, %s128
    %p135 = scmp.eq.s32.totalorder %s19, 1
    %p136 = por %p134, %p135
    %p137 = scmp.ne.s32.totalorder %s128, %s129
    %p138 = scmp.eq.s32.totalorder %s19, 0
    %p139 = por %p137, %p138
    %p140 = scmp.ne.s32.totalorder %s128, %s129
    %p141 = scmp.eq.s32.totalorder %s20, 1
    %p142 = por %p140, %p141
    %p144 = scmp.ne.s32.totalorder %s129, %s143
    %p145 = scmp.eq.s32.totalorder %s20, 0
    %p146 = por %p144, %p145
    %s148 = sadd.s32 %s147, 1
    %p151 = scmp.eq.s32.totalorder %s14, 1
    %p152 = scmp.ne.s32.totalorder %s147, %s149
    %p153 = scmp.eq.s32.totalorder %s14, 0
    %p154 = por %p152, %p153
    %p155 = scmp.ne.s32.totalorder %s147, %s149
    %p156 = scmp.eq.s32.totalorder %s19, 1
    %p157 = por %p155, %p156
    %p158 = scmp.ne.s32.totalorder %s149, %s150
    %p159 = scmp.eq.s32.totalorder %s19, 0
    %p160 = por %p158, %p159
    %p161 = scmp.ne.s32.totalorder %s149, %s150
    %p162 = scmp.eq.s32.totalorder %s20, 1
    %p163 = por %p161, %p162
    %p165 = scmp.ne.s32.totalorder %s150, %s164
    %p166 = scmp.eq.s32.totalorder %s20, 0
    %p167 = por %p165, %p166
    %s169 = sadd.s32 %s168, 1
    %p172 = scmp.eq.s32.totalorder %s14, 1
    %p173 = scmp.ne.s32.totalorder %s168, %s170
    %p174 = scmp.eq.s32.totalorder %s14, 0
    %p175 = por %p173, %p174
    %p176 = scmp.ne.s32.totalorder %s168, %s170
    %p177 = scmp.eq.s32.totalorder %s19, 1
    %p178 = por %p176, %p177
    %p179 = scmp.ne.s32.totalorder %s170, %s171
    %p180 = scmp.eq.s32.totalorder %s19, 0
    %p181 = por %p179, %p180
    %p182 = scmp.ne.s32.totalorder %s170, %s171
    %p183 = scmp.eq.s32.totalorder %s20, 1
    %p184 = por %p182, %p183
    %p186 = scmp.ne.s32.totalorder %s171, %s185
    %p187 = scmp.eq.s32.totalorder %s20, 0
    %p188 = por %p186, %p187
    %s190 = sadd.s32 %s189, 1
    %p193 = scmp.eq.s32.totalorder %s14, 1
    %p194 = scmp.ne.s32.totalorder %s189, %s191
    %p195 = scmp.eq.s32.totalorder %s14, 0
    %p196 = por %p194, %p195
    %p197 = scmp.ne.s32.totalorder %s189, %s191
    %p198 = scmp.eq.s32.totalorder %s19, 1
    %p199 = por %p197, %p198
    %p200 = scmp.ne.s32.totalorder %s191, %s192
    %p201 = scmp.eq.s32.totalorder %s19, 0
    %p202 = por %p200, %p201
    %p203 = scmp.ne.s32.totalorder %s191, %s192
    %p204 = scmp.eq.s32.totalorder %s20, 1
    %p205 = por %p203, %p204
    %p207 = scmp.ne.s32.totalorder %s192, %s206
    %p208 = scmp.eq.s32.totalorder %s20, 0
    %p209 = por %p207, %p208
    %s210 = ssub.s32 %s14, %s21
    %p211 = scmp.eq.s32.totalorder %s210, 0
    %s213 = sadd.s32 %s212, 1
    %s214 = scalar_select %p211, %s212, %s213
    %p217 = pneg %p211
    %p218 = scmp.eq.s32.totalorder %s14, 1
    %p219 = por %p217, %p218
    %p220 = scmp.ne.s32.totalorder %s212, %s215
    %p221 = scmp.eq.s32.totalorder %s14, 0
    %p222 = por %p220, %p221
    %p223 = scmp.ne.s32.totalorder %s212, %s215
    %p224 = scmp.eq.s32.totalorder %s19, 1
    %p225 = por %p223, %p224
    %p226 = scmp.ne.s32.totalorder %s215, %s216
    %p227 = scmp.eq.s32.totalorder %s19, 0
    %p228 = por %p226, %p227
    %p229 = scmp.ne.s32.totalorder %s215, %s216
    %p230 = scmp.eq.s32.totalorder %s20, 1
    %p231 = por %p229, %p230
    %p233 = scmp.ne.s32.totalorder %s216, %s232
    %p234 = scmp.eq.s32.totalorder %s20, 0
    %p235 = por %p233, %p234
    %p236 = scmp.le.s32.totalorder 1, %s14
    %p237 = scmp.lt.s32.totalorder %s14, 3
    %p238 = pnand %p236, %p237
    %p239 = pneg %p238
    // Predicated region
    $region9: #{gen_block_forward.5} parent=5 // pred_check
      _
    $region10: #{gen_block_forward.5} parent=5 // pred_check_branch
      %241 = sbr.rel (%p238) target = $region12
    $region11: #{gen_block_forward.5} parent=5 // pred_region
      %s242 = ssub.s32 %s14, 1
      // Predicated region
      $region13: #{gen_block_forward.5} parent=11 // pred_check
        %p243 = pneg %p139
      $region14: #{gen_block_forward.5} parent=11 // pred_check_branch
        %245 = sbr.rel (%p243) target = $region16
      $region15: #{gen_block_forward.5} parent=11 // pred_region
        _
      $region16: #{gen_block_forward.5} parent=11 // pred_fallthru
        _
      // Predicated region
      $region17: #{gen_block_forward.5} parent=11 // pred_check
        %p246 = pneg %p160
      $region18: #{gen_block_forward.5} parent=11 // pred_check_branch
        %248 = sbr.rel (%p246) target = $region20
      $region19: #{gen_block_forward.5} parent=11 // pred_region
        _
      $region20: #{gen_block_forward.5} parent=11 // pred_fallthru
        _
      // Predicated region
      $region21: #{gen_block_forward.5} parent=11 // pred_check
        %p249 = pneg %p181
      $region22: #{gen_block_forward.5} parent=11 // pred_check_branch
        %251 = sbr.rel (%p249) target = $region24
      $region23: #{gen_block_forward.5} parent=11 // pred_region
        _
      $region24: #{gen_block_forward.5} parent=11 // pred_fallthru
        _
      // Predicated region
      $region25: #{gen_block_forward.5} parent=11 // pred_check
        %p252 = pneg %p202
      $region26: #{gen_block_forward.5} parent=11 // pred_check_branch
        %254 = sbr.rel (%p252) target = $region28
      $region27: #{gen_block_forward.5} parent=11 // pred_region
        _
      $region28: #{gen_block_forward.5} parent=11 // pred_fallthru
        _
    $region12: #{gen_block_forward.5} parent=5 // pred_fallthru
      _
    %p255 = scmp.lt.s32.totalorder %s14, 2
    // Predicated region
    $region29: #{gen_block_forward.5} parent=5 // pred_check
      %p256 = pneg %p255
    $region30: #{gen_block_forward.5} parent=5 // pred_check_branch
      %258 = sbr.rel (%p256) target = $region32
    $region31: #{gen_block_forward.5} parent=5 // pred_region
      // Predicated region
      $region33: #{gen_block_forward.5} parent=31 // pred_check
        %p259 = pneg %p34
      $region34: #{gen_block_forward.5} parent=31 // pred_check_branch
        %261 = sbr.rel (%p259) target = $region36
      $region35: #{gen_block_forward.5} parent=31 // pred_region
        %p262 = scmp.lt.s32.totalorder %s14, 1
        %s263 = scalar_select %p262, %s14, 1
        %s264 = smul.addr %s263, 32
        %s265 = smul.addr %s264, 8
        %s266 = scalar_lea.vmem %s0, %s265
      $region36: #{gen_block_forward.5} parent=31 // pred_fallthru
        _
      // Predicated region
      $region37: #{gen_block_forward.5} parent=31 // pred_check
        %p267 = pneg %p60
      $region38: #{gen_block_forward.5} parent=31 // pred_check_branch
        %269 = sbr.rel (%p267) target = $region40
      $region39: #{gen_block_forward.5} parent=31 // pred_region
        %p270 = scmp.lt.s32.totalorder %s14, 1
        %s271 = scalar_select %p270, %s14, 1
        %s272 = smul.addr %s271, 32
        %s273 = smul.addr %s272, 8
        %s274 = scalar_lea.vmem %s1, %s273
      $region40: #{gen_block_forward.5} parent=31 // pred_fallthru
        _
      // Predicated region
      $region41: #{gen_block_forward.5} parent=31 // pred_check
        %p275 = pneg %p86
      $region42: #{gen_block_forward.5} parent=31 // pred_check_branch
        %277 = sbr.rel (%p275) target = $region44
      $region43: #{gen_block_forward.5} parent=31 // pred_region
        %p278 = scmp.lt.s32.totalorder %s14, 1
        %s279 = scalar_select %p278, %s14, 1
        %s280 = scalar_lea.vmem %s2, %s279
      $region44: #{gen_block_forward.5} parent=31 // pred_fallthru
        _
      // Predicated region
      $region45: #{gen_block_forward.5} parent=31 // pred_check
        %p281 = pneg %p112
      $region46: #{gen_block_forward.5} parent=31 // pred_check_branch
        %283 = sbr.rel (%p281) target = $region48
      $region47: #{gen_block_forward.5} parent=31 // pred_region
        %p284 = scmp.lt.s32.totalorder %s14, 1
        %s285 = scalar_select %p284, %s14, 1
        %s286 = scalar_lea.vmem %s3, %s285
      $region48: #{gen_block_forward.5} parent=31 // pred_fallthru
        _
    $region32: #{gen_block_forward.5} parent=5 // pred_fallthru
      _
    %p287 = scmp.le.s32.totalorder 1, %s14
    %p288 = scmp.lt.s32.totalorder %s14, 3
    %p289 = pnand %p287, %p288
    %p290 = pneg %p289
    // Predicated region
    $region49: #{gen_block_forward.5} parent=5 // pred_check
      _
    $region50: #{gen_block_forward.5} parent=5 // pred_check_branch
      %292 = sbr.rel (%p289) target = $region52
    $region51: #{gen_block_forward.5} parent=5 // pred_region
      %s293 = ssub.s32 %s14, 1
      %p294 = scmp.lt.s32.totalorder %s19, 1
      %s295 = scalar_select %p294, %s19, 1
      %s296 = smul.addr %s295, 32
      %s297 = smul.addr %s296, 8
      %s298 = scalar_lea.vmem %s0, %s297
      %p299 = pneg %p40
      %p300 = pneg %p37
      %p301 = scmp.lt.s32.totalorder %s19, 1
      %s302 = scalar_select %p301, %s19, 1
      %s303 = smul.addr %s302, 32
      %s304 = smul.addr %s303, 8
      %s305 = scalar_lea.vmem %s1, %s304
      %p306 = pneg %p66
      %p307 = pneg %p63
      %p308 = scmp.lt.s32.totalorder %s19, 1
      %s309 = scalar_select %p308, %s19, 1
      %s310 = scalar_lea.vmem %s2, %s309
      %p311 = pneg %p92
      %p312 = pneg %p89
      %p313 = scmp.lt.s32.totalorder %s19, 1
      %s314 = scalar_select %p313, %s19, 1
      %s315 = scalar_lea.vmem %s3, %s314
      %p316 = pneg %p118
      %p317 = pneg %p115
      %p318 = pneg %p139
      %p319 = pneg %p136
      %p320 = pneg %p160
      %p321 = pneg %p157
      %p322 = pneg %p181
      %p323 = pneg %p178
      %p324 = pneg %p202
      %p325 = pneg %p199
      %p326 = pneg %p228
      %p327 = pneg %p225
      %p328 = scmp.lt.s32.totalorder %s19, 1
      %s329 = scalar_select %p328, %s19, 1
      %s330 = smul.addr %s329, 32
      %s331 = smul.addr %s330, 8
      %s332 = scalar_lea.vmem %s8, %s331
      %p333 = scmp.lt.s32.totalorder %s19, 1
      %s334 = scalar_select %p333, %s19, 1
      %s335 = smul.addr %s334, 32
      %s336 = smul.addr %s335, 8
      %s337 = scalar_lea.vmem %s0, %s336
      %p338 = scmp.lt.s32.totalorder %s19, 1
      %s339 = scalar_select %p338, %s19, 1
      %s340 = smul.addr %s339, 32
      %s341 = smul.addr %s340, 8
      %s342 = scalar_lea.vmem %s1, %s341
      %p343 = scmp.lt.s32.totalorder %s19, 1
      %s344 = scalar_select %p343, %s19, 1
      %s345 = scalar_lea.vmem %s2, %s344
      %p346 = scmp.lt.s32.totalorder %s19, 1
      %s347 = scalar_select %p346, %s19, 1
      %s348 = scalar_lea.vmem %s3, %s347
      %p349 = scmp.lt.s32.totalorder %s19, 1
      %s350 = scalar_select %p349, %s19, 1
      %s351 = smul.addr %s350, 32
      %s352 = smul.addr %s351, 8
      %s353 = scalar_lea.vmem %s8, %s352
      %v355 = vld [vmem:[%s337] sm:$0xff]
      %v356 = vld [vmem:[%s337 + $0x8] sm:$0xff]
      %v357 = vld [vmem:[%s337 + $0x10] sm:$0xff]
      %v358 = vld [vmem:[%s337 + $0x18] sm:$0xff]
      %v359 = vld [vmem:[%s337 + $0x20] sm:$0xff]
      %v360 = vld [vmem:[%s337 + $0x28] sm:$0xff]
      %v361 = vld [vmem:[%s337 + $0x30] sm:$0xff]
      %v362 = vld [vmem:[%s337 + $0x38] sm:$0xff]
      %v363 = vld [vmem:[%s337 + $0x40] sm:$0xff]
      %v364 = vld [vmem:[%s337 + $0x48] sm:$0xff]
      %v365 = vld [vmem:[%s337 + $0x50] sm:$0xff]
      %v366 = vld [vmem:[%s337 + $0x58] sm:$0xff]
      %v367 = vld [vmem:[%s337 + $0x60] sm:$0xff]
      %v368 = vld [vmem:[%s337 + $0x68] sm:$0xff]
      %v369 = vld [vmem:[%s337 + $0x70] sm:$0xff]
      %v370 = vld [vmem:[%s337 + $0x78] sm:$0xff]
      %v371 = vld [vmem:[%s337 + $0x80] sm:$0xff]
      %v372 = vld [vmem:[%s337 + $0x88] sm:$0xff]
      %v373 = vld [vmem:[%s337 + $0x90] sm:$0xff]
      %v374 = vld [vmem:[%s337 + $0x98] sm:$0xff]
      %v375 = vld [vmem:[%s337 + $0xa0] sm:$0xff]
      %v376 = vld [vmem:[%s337 + $0xa8] sm:$0xff]
      %v377 = vld [vmem:[%s337 + $0xb0] sm:$0xff]
      %v378 = vld [vmem:[%s337 + $0xb8] sm:$0xff]
      %v379 = vld [vmem:[%s337 + $0xc0] sm:$0xff]
      %v380 = vld [vmem:[%s337 + $0xc8] sm:$0xff]
      %v381 = vld [vmem:[%s337 + $0xd0] sm:$0xff]
      %v382 = vld [vmem:[%s337 + $0xd8] sm:$0xff]
      %v383 = vld [vmem:[%s337 + $0xe0] sm:$0xff]
      %v384 = vld [vmem:[%s337 + $0xe8] sm:$0xff]
      %v385 = vld [vmem:[%s337 + $0xf0] sm:$0xff]
      %v386 = vld [vmem:[%s337 + $0xf8] sm:$0xff]
      %v387 = vld [vmem:[%s345] sm:$0x1]
      %v389 = vlaneseq
      %v390 = vshrl.u32 %v389, 7
      %v391 = vsub.s32 0, %v390
      %v392 = vrot.slane %v387, %v391
      %v394 = vmul.f32 %v355, %v392
      %v395 = vmul.f32 %v356, %v392
      %v396 = vmul.f32 %v357, %v392
      %v397 = vmul.f32 %v358, %v392
      %v398 = vmul.f32 %v359, %v392
      %v399 = vmul.f32 %v360, %v392
      %v400 = vmul.f32 %v361, %v392
      %v401 = vmul.f32 %v362, %v392
      %v402 = vmul.f32 %v363, %v392
      %v403 = vmul.f32 %v364, %v392
      %v404 = vmul.f32 %v365, %v392
      %v405 = vmul.f32 %v366, %v392
      %v406 = vmul.f32 %v367, %v392
      %v407 = vmul.f32 %v368, %v392
      %v408 = vmul.f32 %v369, %v392
      %v409 = vmul.f32 %v370, %v392
      %v410 = vmul.f32 %v371, %v392
      %v411 = vmul.f32 %v372, %v392
      %v412 = vmul.f32 %v373, %v392
      %v413 = vmul.f32 %v374, %v392
      %v414 = vmul.f32 %v375, %v392
      %v415 = vmul.f32 %v376, %v392
      %v416 = vmul.f32 %v377, %v392
      %v417 = vmul.f32 %v378, %v392
      %v418 = vmul.f32 %v379, %v392
      %v419 = vmul.f32 %v380, %v392
      %v420 = vmul.f32 %v381, %v392
      %v421 = vmul.f32 %v382, %v392
      %v422 = vmul.f32 %v383, %v392
      %v423 = vmul.f32 %v384, %v392
      %v424 = vmul.f32 %v385, %v392
      %v425 = vmul.f32 %v386, %v392
      %v426 = vld [vmem:[%s348] sm:$0x1]
      %v428 = vlaneseq
      %v429 = vshrl.u32 %v428, 7
      %v430 = vsub.s32 0, %v429
      %v431 = vrot.slane %v426, %v430
      %v433 = vadd.f32 %v394, %v431
      %v434 = vadd.f32 %v395, %v431
      %v435 = vadd.f32 %v396, %v431
      %v436 = vadd.f32 %v397, %v431
      %v437 = vadd.f32 %v398, %v431
      %v438 = vadd.f32 %v399, %v431
      %v439 = vadd.f32 %v400, %v431
      %v440 = vadd.f32 %v401, %v431
      %v441 = vadd.f32 %v402, %v431
      %v442 = vadd.f32 %v403, %v431
      %v443 = vadd.f32 %v404, %v431
      %v444 = vadd.f32 %v405, %v431
      %v445 = vadd.f32 %v406, %v431
      %v446 = vadd.f32 %v407, %v431
      %v447 = vadd.f32 %v408, %v431
      %v448 = vadd.f32 %v409, %v431
      %v449 = vadd.f32 %v410, %v431
      %v450 = vadd.f32 %v411, %v431
      %v451 = vadd.f32 %v412, %v431
      %v452 = vadd.f32 %v413, %v431
      %v453 = vadd.f32 %v414, %v431
      %v454 = vadd.f32 %v415, %v431
      %v455 = vadd.f32 %v416, %v431
      %v456 = vadd.f32 %v417, %v431
      %v457 = vadd.f32 %v418, %v431
      %v458 = vadd.f32 %v419, %v431
      %v459 = vadd.f32 %v420, %v431
      %v460 = vadd.f32 %v421, %v431
      %v461 = vadd.f32 %v422, %v431
      %v462 = vadd.f32 %v423, %v431
      %v463 = vadd.f32 %v424, %v431
      %v464 = vadd.f32 %v425, %v431
      %v465 = vmax.f32 %v433, 0.0
      %v466 = vmax.f32 %v434, 0.0
      %v467 = vmax.f32 %v435, 0.0
      %v468 = vmax.f32 %v436, 0.0
      %v469 = vmax.f32 %v437, 0.0
      %v470 = vmax.f32 %v438, 0.0
      %v471 = vmax.f32 %v439, 0.0
      %v472 = vmax.f32 %v440, 0.0
      %v473 = vmax.f32 %v441, 0.0
      %v474 = vmax.f32 %v442, 0.0
      %v475 = vmax.f32 %v443, 0.0
      %v476 = vmax.f32 %v444, 0.0
      %v477 = vmax.f32 %v445, 0.0
      %v478 = vmax.f32 %v446, 0.0
      %v479 = vmax.f32 %v447, 0.0
      %v480 = vmax.f32 %v448, 0.0
      %v481 = vmax.f32 %v449, 0.0
      %v482 = vmax.f32 %v450, 0.0
      %v483 = vmax.f32 %v451, 0.0
      %v484 = vmax.f32 %v452, 0.0
      %v485 = vmax.f32 %v453, 0.0
      %v486 = vmax.f32 %v454, 0.0
      %v487 = vmax.f32 %v455, 0.0
      %v488 = vmax.f32 %v456, 0.0
      %v489 = vmax.f32 %v457, 0.0
      %v490 = vmax.f32 %v458, 0.0
      %v491 = vmax.f32 %v459, 0.0
      %v492 = vmax.f32 %v460, 0.0
      %v493 = vmax.f32 %v461, 0.0
      %v494 = vmax.f32 %v462, 0.0
      %v495 = vmax.f32 %v463, 0.0
      %v496 = vmax.f32 %v464, 0.0
      %vm497 = vcmask 31744
      %498 = vst.msk [vmem:[#allocation2] sm:$0xff] %vm497, 0.0
      %499 = vst.msk [vmem:[#allocation2 + $0x8] sm:$0xff] %vm497, 0.0
      %vm500 = vcmask 25600
      %501 = vst.msk [vmem:[#allocation2 + $0x10] sm:$0x3] %vm500, 0.0
      %502 = vst.msk [vmem:[#allocation2 + $0x18] sm:$0xff] %vm497, 0.0
      %503 = vst.msk [vmem:[#allocation2 + $0x20] sm:$0xff] %vm497, 0.0
      %504 = vst.msk [vmem:[#allocation2 + $0x28] sm:$0x3] %vm500, 0.0
      %505 = vst.msk [vmem:[#allocation2 + $0x30] sm:$0xff] %vm497, 0.0
      %506 = vst.msk [vmem:[#allocation2 + $0x38] sm:$0xff] %vm497, 0.0
      %507 = vst.msk [vmem:[#allocation2 + $0x40] sm:$0x3] %vm500, 0.0
      %508 = vst.msk [vmem:[#allocation2 + $0x48] sm:$0xff] %vm497, 0.0
      %509 = vst.msk [vmem:[#allocation2 + $0x50] sm:$0xff] %vm497, 0.0
      %510 = vst.msk [vmem:[#allocation2 + $0x58] sm:$0x3] %vm500, 0.0
      %511 = vst.msk [vmem:[#allocation2 + $0x60] sm:$0xff] %vm497, 0.0
      %512 = vst.msk [vmem:[#allocation2 + $0x68] sm:$0xff] %vm497, 0.0
      %513 = vst.msk [vmem:[#allocation2 + $0x70] sm:$0x3] %vm500, 0.0
      %514 = vst.msk [vmem:[#allocation2 + $0x78] sm:$0xff] %vm497, 0.0
      %515 = vst.msk [vmem:[#allocation2 + $0x80] sm:$0xff] %vm497, 0.0
      %516 = vst.msk [vmem:[#allocation2 + $0x88] sm:$0x3] %vm500, 0.0
      %517 = vst.msk [vmem:[#allocation2 + $0x90] sm:$0xff] %vm497, 0.0
      %518 = vst.msk [vmem:[#allocation2 + $0x98] sm:$0xff] %vm497, 0.0
      %519 = vst.msk [vmem:[#allocation2 + $0xa0] sm:$0x3] %vm500, 0.0
      %520 = vst.msk [vmem:[#allocation2 + $0xa8] sm:$0xff] %vm497, 0.0
      %521 = vst.msk [vmem:[#allocation2 + $0xb0] sm:$0xff] %vm497, 0.0
      %522 = vst.msk [vmem:[#allocation2 + $0xb8] sm:$0x3] %vm500, 0.0
      %523 = vst.msk [vmem:[#allocation2 + $0xc0] sm:$0xff] %vm497, 0.0
      %524 = vst.msk [vmem:[#allocation2 + $0xc8] sm:$0xff] %vm497, 0.0
      %525 = vst.msk [vmem:[#allocation2 + $0xd0] sm:$0x3] %vm500, 0.0
      %526 = vst.msk [vmem:[#allocation2 + $0xd8] sm:$0xff] %vm497, 0.0
      %527 = vst.msk [vmem:[#allocation2 + $0xe0] sm:$0xff] %vm497, 0.0
      %528 = vst.msk [vmem:[#allocation2 + $0xe8] sm:$0x3] %vm500, 0.0
      %529 = vst.msk [vmem:[#allocation2 + $0xf0] sm:$0xff] %vm497, 0.0
      %530 = vst.msk [vmem:[#allocation2 + $0xf8] sm:$0xff] %vm497, 0.0
      %531 = vst.msk [vmem:[#allocation2 + $0x100] sm:$0x3] %vm500, 0.0
      %532 = vst.msk [vmem:[#allocation2 + $0x108] sm:$0xff] %vm497, 0.0
      %533 = vst.msk [vmem:[#allocation2 + $0x110] sm:$0xff] %vm497, 0.0
      %534 = vst.msk [vmem:[#allocation2 + $0x118] sm:$0x3] %vm500, 0.0
      %535 = vst.msk [vmem:[#allocation2 + $0x120] sm:$0xff] %vm497, 0.0
      %536 = vst.msk [vmem:[#allocation2 + $0x128] sm:$0xff] %vm497, 0.0
      %537 = vst.msk [vmem:[#allocation2 + $0x130] sm:$0x3] %vm500, 0.0
      %538 = vst.msk [vmem:[#allocation2 + $0x138] sm:$0xff] %vm497, 0.0
      %539 = vst.msk [vmem:[#allocation2 + $0x140] sm:$0xff] %vm497, 0.0
      %540 = vst.msk [vmem:[#allocation2 + $0x148] sm:$0x3] %vm500, 0.0
      %541 = vst.msk [vmem:[#allocation2 + $0x150] sm:$0xff] %vm497, 0.0
      %542 = vst.msk [vmem:[#allocation2 + $0x158] sm:$0xff] %vm497, 0.0
      %543 = vst.msk [vmem:[#allocation2 + $0x160] sm:$0x3] %vm500, 0.0
      %544 = vst.msk [vmem:[#allocation2 + $0x168] sm:$0xff] %vm497, 0.0
      %545 = vst.msk [vmem:[#allocation2 + $0x170] sm:$0xff] %vm497, 0.0
      %546 = vst.msk [vmem:[#allocation2 + $0x178] sm:$0x3] %vm500, 0.0
      %547 = vst.msk [vmem:[#allocation2 + $0x180] sm:$0xff] %vm497, 0.0
      %548 = vst.msk [vmem:[#allocation2 + $0x188] sm:$0xff] %vm497, 0.0
      %549 = vst.msk [vmem:[#allocation2 + $0x190] sm:$0x3] %vm500, 0.0
      %550 = vst.msk [vmem:[#allocation2 + $0x198] sm:$0xff] %vm497, 0.0
      %551 = vst.msk [vmem:[#allocation2 + $0x1a0] sm:$0xff] %vm497, 0.0
      %552 = vst.msk [vmem:[#allocation2 + $0x1a8] sm:$0x3] %vm500, 0.0
      %s553 = scalar_lea.vmem [#allocation2], 24
      %554 = vst.msk [vmem:[%s553 + $0x1] sm:$0xff] %vm497, %v465
      %555 = vst.msk [vmem:[%s553 + $0x9] sm:$0xff] %vm497, %v466
      %556 = vst.msk [vmem:[%s553 + $0x19] sm:$0xff] %vm497, %v467
      %557 = vst.msk [vmem:[%s553 + $0x21] sm:$0xff] %vm497, %v468
      %558 = vst.msk [vmem:[%s553 + $0x31] sm:$0xff] %vm497, %v469
      %559 = vst.msk [vmem:[%s553 + $0x39] sm:$0xff] %vm497, %v470
      %560 = vst.msk [vmem:[%s553 + $0x49] sm:$0xff] %vm497, %v471
      %561 = vst.msk [vmem:[%s553 + $0x51] sm:$0xff] %vm497, %v472
      %562 = vst.msk [vmem:[%s553 + $0x61] sm:$0xff] %vm497, %v473
      %563 = vst.msk [vmem:[%s553 + $0x69] sm:$0xff] %vm497, %v474
      %564 = vst.msk [vmem:[%s553 + $0x79] sm:$0xff] %vm497, %v475
      %565 = vst.msk [vmem:[%s553 + $0x81] sm:$0xff] %vm497, %v476
      %566 = vst.msk [vmem:[%s553 + $0x91] sm:$0xff] %vm497, %v477
      %567 = vst.msk [vmem:[%s553 + $0x99] sm:$0xff] %vm497, %v478
      %568 = vst.msk [vmem:[%s553 + $0xa9] sm:$0xff] %vm497, %v479
      %569 = vst.msk [vmem:[%s553 + $0xb1] sm:$0xff] %vm497, %v480
      %570 = vst.msk [vmem:[%s553 + $0xc1] sm:$0xff] %vm497, %v481
      %571 = vst.msk [vmem:[%s553 + $0xc9] sm:$0xff] %vm497, %v482
      %572 = vst.msk [vmem:[%s553 + $0xd9] sm:$0xff] %vm497, %v483
      %573 = vst.msk [vmem:[%s553 + $0xe1] sm:$0xff] %vm497, %v484
      %574 = vst.msk [vmem:[%s553 + $0xf1] sm:$0xff] %vm497, %v485
      %575 = vst.msk [vmem:[%s553 + $0xf9] sm:$0xff] %vm497, %v486
      %576 = vst.msk [vmem:[%s553 + $0x109] sm:$0xff] %vm497, %v487
      %577 = vst.msk [vmem:[%s553 + $0x111] sm:$0xff] %vm497, %v488
      %578 = vst.msk [vmem:[%s553 + $0x121] sm:$0xff] %vm497, %v489
      %579 = vst.msk [vmem:[%s553 + $0x129] sm:$0xff] %vm497, %v490
      %580 = vst.msk [vmem:[%s553 + $0x139] sm:$0xff] %vm497, %v491
      %581 = vst.msk [vmem:[%s553 + $0x141] sm:$0xff] %vm497, %v492
      %582 = vst.msk [vmem:[%s553 + $0x151] sm:$0xff] %vm497, %v493
      %583 = vst.msk [vmem:[%s553 + $0x159] sm:$0xff] %vm497, %v494
      %584 = vst.msk [vmem:[%s553 + $0x169] sm:$0xff] %vm497, %v495
      %585 = vst.msk [vmem:[%s553 + $0x171] sm:$0xff] %vm497, %v496
      %v586 = vld [vmem:[#allocation2] sm:$0xff]
      %v587 = vld [vmem:[#allocation2 + $0x8] sm:$0xff]
      %v588 = vld [vmem:[#allocation2 + $0x18] sm:$0xff]
      %v589 = vld [vmem:[#allocation2 + $0x20] sm:$0xff]
      %v590 = vld [vmem:[#allocation2 + $0x30] sm:$0xff]
      %v591 = vld [vmem:[#allocation2 + $0x38] sm:$0xff]
      %v592 = vld [vmem:[#allocation2 + $0x48] sm:$0xff]
      %v593 = vld [vmem:[#allocation2 + $0x50] sm:$0xff]
      %v594 = vld [vmem:[#allocation2 + $0x60] sm:$0xff]
      %v595 = vld [vmem:[#allocation2 + $0x68] sm:$0xff]
      %v596 = vld [vmem:[#allocation2 + $0x78] sm:$0xff]
      %v597 = vld [vmem:[#allocation2 + $0x80] sm:$0xff]
      %v598 = vld [vmem:[#allocation2 + $0x90] sm:$0xff]
      %v599 = vld [vmem:[#allocation2 + $0x98] sm:$0xff]
      %v600 = vld [vmem:[#allocation2 + $0xa8] sm:$0xff]
      %v601 = vld [vmem:[#allocation2 + $0xb0] sm:$0xff]
      %v602 = vld [vmem:[#allocation2 + $0xc0] sm:$0xff]
      %v603 = vld [vmem:[#allocation2 + $0xc8] sm:$0xff]
      %v604 = vld [vmem:[#allocation2 + $0xd8] sm:$0xff]
      %v605 = vld [vmem:[#allocation2 + $0xe0] sm:$0xff]
      %v606 = vld [vmem:[#allocation2 + $0xf0] sm:$0xff]
      %v607 = vld [vmem:[#allocation2 + $0xf8] sm:$0xff]
      %v608 = vld [vmem:[#allocation2 + $0x108] sm:$0xff]
      %v609 = vld [vmem:[#allocation2 + $0x110] sm:$0xff]
      %v610 = vld [vmem:[#allocation2 + $0x120] sm:$0xff]
      %v611 = vld [vmem:[#allocation2 + $0x128] sm:$0xff]
      %v612 = vld [vmem:[#allocation2 + $0x138] sm:$0xff]
      %v613 = vld [vmem:[#allocation2 + $0x140] sm:$0xff]
      %v614 = vld [vmem:[#allocation2 + $0x150] sm:$0xff]
      %v615 = vld [vmem:[#allocation2 + $0x158] sm:$0xff]
      %v616 = vld [vmem:[#allocation2 + $0x168] sm:$0xff]
      %v617 = vld [vmem:[#allocation2 + $0x170] sm:$0xff]
      %v618 = vld [vmem:[#allocation2 + $0x1] sm:$0xff]
      %v619 = vld [vmem:[#allocation2 + $0x9] sm:$0xff]
      %v620 = vld [vmem:[#allocation2 + $0x19] sm:$0xff]
      %v621 = vld [vmem:[#allocation2 + $0x21] sm:$0xff]
      %v622 = vld [vmem:[#allocation2 + $0x31] sm:$0xff]
      %v623 = vld [vmem:[#allocation2 + $0x39] sm:$0xff]
      %v624 = vld [vmem:[#allocation2 + $0x49] sm:$0xff]
      %v625 = vld [vmem:[#allocation2 + $0x51] sm:$0xff]
      %v626 = vld [vmem:[#allocation2 + $0x61] sm:$0xff]
      %v627 = vld [vmem:[#allocation2 + $0x69] sm:$0xff]
      %v628 = vld [vmem:[#allocation2 + $0x79] sm:$0xff]
      %v629 = vld [vmem:[#allocation2 + $0x81] sm:$0xff]
      %v630 = vld [vmem:[#allocation2 + $0x91] sm:$0xff]
      %v631 = vld [vmem:[#allocation2 + $0x99] sm:$0xff]
      %v632 = vld [vmem:[#allocation2 + $0xa9] sm:$0xff]
      %v633 = vld [vmem:[#allocation2 + $0xb1] sm:$0xff]
      %v634 = vld [vmem:[#allocation2 + $0xc1] sm:$0xff]
      %v635 = vld [vmem:[#allocation2 + $0xc9] sm:$0xff]
      %v636 = vld [vmem:[#allocation2 + $0xd9] sm:$0xff]
      %v637 = vld [vmem:[#allocation2 + $0xe1] sm:$0xff]
      %v638 = vld [vmem:[#allocation2 + $0xf1] sm:$0xff]
      %v639 = vld [vmem:[#allocation2 + $0xf9] sm:$0xff]
      %v640 = vld [vmem:[#allocation2 + $0x109] sm:$0xff]
      %v641 = vld [vmem:[#allocation2 + $0x111] sm:$0xff]
      %v642 = vld [vmem:[#allocation2 + $0x121] sm:$0xff]
      %v643 = vld [vmem:[#allocation2 + $0x129] sm:$0xff]
      %v644 = vld [vmem:[#allocation2 + $0x139] sm:$0xff]
      %v645 = vld [vmem:[#allocation2 + $0x141] sm:$0xff]
      %v646 = vld [vmem:[#allocation2 + $0x151] sm:$0xff]
      %v647 = vld [vmem:[#allocation2 + $0x159] sm:$0xff]
      %v648 = vld [vmem:[#allocation2 + $0x169] sm:$0xff]
      %v649 = vld [vmem:[#allocation2 + $0x171] sm:$0xff]
      %v650 = vld [vmem:[#allocation2 + $0x2] sm:$0xff]
      %v651 = vld [vmem:[#allocation2 + $0xa] sm:$0xff]
      %v652 = vld [vmem:[#allocation2 + $0x1a] sm:$0xff]
      %v653 = vld [vmem:[#allocation2 + $0x22] sm:$0xff]
      %v654 = vld [vmem:[#allocation2 + $0x32] sm:$0xff]
      %v655 = vld [vmem:[#allocation2 + $0x3a] sm:$0xff]
      %v656 = vld [vmem:[#allocation2 + $0x4a] sm:$0xff]
      %v657 = vld [vmem:[#allocation2 + $0x52] sm:$0xff]
      %v658 = vld [vmem:[#allocation2 + $0x62] sm:$0xff]
      %v659 = vld [vmem:[#allocation2 + $0x6a] sm:$0xff]
      %v660 = vld [vmem:[#allocation2 + $0x7a] sm:$0xff]
      %v661 = vld [vmem:[#allocation2 + $0x82] sm:$0xff]
      %v662 = vld [vmem:[#allocation2 + $0x92] sm:$0xff]
      %v663 = vld [vmem:[#allocation2 + $0x9a] sm:$0xff]
      %v664 = vld [vmem:[#allocation2 + $0xaa] sm:$0xff]
      %v665 = vld [vmem:[#allocation2 + $0xb2] sm:$0xff]
      %v666 = vld [vmem:[#allocation2 + $0xc2] sm:$0xff]
      %v667 = vld [vmem:[#allocation2 + $0xca] sm:$0xff]
      %v668 = vld [vmem:[#allocation2 + $0xda] sm:$0xff]
      %v669 = vld [vmem:[#allocation2 + $0xe2] sm:$0xff]
      %v670 = vld [vmem:[#allocation2 + $0xf2] sm:$0xff]
      %v671 = vld [vmem:[#allocation2 + $0xfa] sm:$0xff]
      %v672 = vld [vmem:[#allocation2 + $0x10a] sm:$0xff]
      %v673 = vld [vmem:[#allocation2 + $0x112] sm:$0xff]
      %v674 = vld [vmem:[#allocation2 + $0x122] sm:$0xff]
      %v675 = vld [vmem:[#allocation2 + $0x12a] sm:$0xff]
      %v676 = vld [vmem:[#allocation2 + $0x13a] sm:$0xff]
      %v677 = vld [vmem:[#allocation2 + $0x142] sm:$0xff]
      %v678 = vld [vmem:[#allocation2 + $0x152] sm:$0xff]
      %v679 = vld [vmem:[#allocation2 + $0x15a] sm:$0xff]
      %v680 = vld [vmem:[#allocation2 + $0x16a] sm:$0xff]
      %v681 = vld [vmem:[#allocation2 + $0x172] sm:$0xff]
      %v682 = vld [vmem:[%s553] sm:$0xff]
      %v683 = vld [vmem:[%s553 + $0x8] sm:$0xff]
      %v684 = vld [vmem:[%s553 + $0x18] sm:$0xff]
      %v685 = vld [vmem:[%s553 + $0x20] sm:$0xff]
      %v686 = vld [vmem:[%s553 + $0x30] sm:$0xff]
      %v687 = vld [vmem:[%s553 + $0x38] sm:$0xff]
      %v688 = vld [vmem:[%s553 + $0x48] sm:$0xff]
      %v689 = vld [vmem:[%s553 + $0x50] sm:$0xff]
      %v690 = vld [vmem:[%s553 + $0x60] sm:$0xff]
      %v691 = vld [vmem:[%s553 + $0x68] sm:$0xff]
      %v692 = vld [vmem:[%s553 + $0x78] sm:$0xff]
      %v693 = vld [vmem:[%s553 + $0x80] sm:$0xff]
      %v694 = vld [vmem:[%s553 + $0x90] sm:$0xff]
      %v695 = vld [vmem:[%s553 + $0x98] sm:$0xff]
      %v696 = vld [vmem:[%s553 + $0xa8] sm:$0xff]
      %v697 = vld [vmem:[%s553 + $0xb0] sm:$0xff]
      %v698 = vld [vmem:[%s553 + $0xc0] sm:$0xff]
      %v699 = vld [vmem:[%s553 + $0xc8] sm:$0xff]
      %v700 = vld [vmem:[%s553 + $0xd8] sm:$0xff]
      %v701 = vld [vmem:[%s553 + $0xe0] sm:$0xff]
      %v702 = vld [vmem:[%s553 + $0xf0] sm:$0xff]
      %v703 = vld [vmem:[%s553 + $0xf8] sm:$0xff]
      %v704 = vld [vmem:[%s553 + $0x108] sm:$0xff]
      %v705 = vld [vmem:[%s553 + $0x110] sm:$0xff]
      %v706 = vld [vmem:[%s553 + $0x120] sm:$0xff]
      %v707 = vld [vmem:[%s553 + $0x128] sm:$0xff]
      %v708 = vld [vmem:[%s553 + $0x138] sm:$0xff]
      %v709 = vld [vmem:[%s553 + $0x140] sm:$0xff]
      %v710 = vld [vmem:[%s553 + $0x150] sm:$0xff]
      %v711 = vld [vmem:[%s553 + $0x158] sm:$0xff]
      %v712 = vld [vmem:[%s553 + $0x168] sm:$0xff]
      %v713 = vld [vmem:[%s553 + $0x170] sm:$0xff]
      %v714 = vld [vmem:[%s553 + $0x1] sm:$0xff]
      %v715 = vld [vmem:[%s553 + $0x9] sm:$0xff]
      %v716 = vld [vmem:[%s553 + $0x19] sm:$0xff]
      %v717 = vld [vmem:[%s553 + $0x21] sm:$0xff]
      %v718 = vld [vmem:[%s553 + $0x31] sm:$0xff]
      %v719 = vld [vmem:[%s553 + $0x39] sm:$0xff]
      %v720 = vld [vmem:[%s553 + $0x49] sm:$0xff]
      %v721 = vld [vmem:[%s553 + $0x51] sm:$0xff]
      %v722 = vld [vmem:[%s553 + $0x61] sm:$0xff]
      %v723 = vld [vmem:[%s553 + $0x69] sm:$0xff]
      %v724 = vld [vmem:[%s553 + $0x79] sm:$0xff]
      %v725 = vld [vmem:[%s553 + $0x81] sm:$0xff]
      %v726 = vld [vmem:[%s553 + $0x91] sm:$0xff]
      %v727 = vld [vmem:[%s553 + $0x99] sm:$0xff]
      %v728 = vld [vmem:[%s553 + $0xa9] sm:$0xff]
      %v729 = vld [vmem:[%s553 + $0xb1] sm:$0xff]
      %v730 = vld [vmem:[%s553 + $0xc1] sm:$0xff]
      %v731 = vld [vmem:[%s553 + $0xc9] sm:$0xff]
      %v732 = vld [vmem:[%s553 + $0xd9] sm:$0xff]
      %v733 = vld [vmem:[%s553 + $0xe1] sm:$0xff]
      %v734 = vld [vmem:[%s553 + $0xf1] sm:$0xff]
      %v735 = vld [vmem:[%s553 + $0xf9] sm:$0xff]
      %v736 = vld [vmem:[%s553 + $0x109] sm:$0xff]
      %v737 = vld [vmem:[%s553 + $0x111] sm:$0xff]
      %v738 = vld [vmem:[%s553 + $0x121] sm:$0xff]
      %v739 = vld [vmem:[%s553 + $0x129] sm:$0xff]
      %v740 = vld [vmem:[%s553 + $0x139] sm:$0xff]
      %v741 = vld [vmem:[%s553 + $0x141] sm:$0xff]
      %v742 = vld [vmem:[%s553 + $0x151] sm:$0xff]
      %v743 = vld [vmem:[%s553 + $0x159] sm:$0xff]
      %v744 = vld [vmem:[%s553 + $0x169] sm:$0xff]
      %v745 = vld [vmem:[%s553 + $0x171] sm:$0xff]
      %v746 = vld [vmem:[%s553 + $0x2] sm:$0xff]
      %v747 = vld [vmem:[%s553 + $0xa] sm:$0xff]
      %v748 = vld [vmem:[%s553 + $0x1a] sm:$0xff]
      %v749 = vld [vmem:[%s553 + $0x22] sm:$0xff]
      %v750 = vld [vmem:[%s553 + $0x32] sm:$0xff]
      %v751 = vld [vmem:[%s553 + $0x3a] sm:$0xff]
      %v752 = vld [vmem:[%s553 + $0x4a] sm:$0xff]
      %v753 = vld [vmem:[%s553 + $0x52] sm:$0xff]
      %v754 = vld [vmem:[%s553 + $0x62] sm:$0xff]
      %v755 = vld [vmem:[%s553 + $0x6a] sm:$0xff]
      %v756 = vld [vmem:[%s553 + $0x7a] sm:$0xff]
      %v757 = vld [vmem:[%s553 + $0x82] sm:$0xff]
      %v758 = vld [vmem:[%s553 + $0x92] sm:$0xff]
      %v759 = vld [vmem:[%s553 + $0x9a] sm:$0xff]
      %v760 = vld [vmem:[%s553 + $0xaa] sm:$0xff]
      %v761 = vld [vmem:[%s553 + $0xb2] sm:$0xff]
      %v762 = vld [vmem:[%s553 + $0xc2] sm:$0xff]
      %v763 = vld [vmem:[%s553 + $0xca] sm:$0xff]
      %v764 = vld [vmem:[%s553 + $0xda] sm:$0xff]
      %v765 = vld [vmem:[%s553 + $0xe2] sm:$0xff]
      %v766 = vld [vmem:[%s553 + $0xf2] sm:$0xff]
      %v767 = vld [vmem:[%s553 + $0xfa] sm:$0xff]
      %v768 = vld [vmem:[%s553 + $0x10a] sm:$0xff]
      %v769 = vld [vmem:[%s553 + $0x112] sm:$0xff]
      %v770 = vld [vmem:[%s553 + $0x122] sm:$0xff]
      %v771 = vld [vmem:[%s553 + $0x12a] sm:$0xff]
      %v772 = vld [vmem:[%s553 + $0x13a] sm:$0xff]
      %v773 = vld [vmem:[%s553 + $0x142] sm:$0xff]
      %v774 = vld [vmem:[%s553 + $0x152] sm:$0xff]
      %v775 = vld [vmem:[%s553 + $0x15a] sm:$0xff]
      %v776 = vld [vmem:[%s553 + $0x16a] sm:$0xff]
      %v777 = vld [vmem:[%s553 + $0x172] sm:$0xff]
      %s778 = scalar_lea.vmem [#allocation2], 48
      %v779 = vld [vmem:[%s778] sm:$0xff]
      %v780 = vld [vmem:[%s778 + $0x8] sm:$0xff]
      %v781 = vld [vmem:[%s778 + $0x18] sm:$0xff]
      %v782 = vld [vmem:[%s778 + $0x20] sm:$0xff]
      %v783 = vld [vmem:[%s778 + $0x30] sm:$0xff]
      %v784 = vld [vmem:[%s778 + $0x38] sm:$0xff]
      %v785 = vld [vmem:[%s778 + $0x48] sm:$0xff]
      %v786 = vld [vmem:[%s778 + $0x50] sm:$0xff]
      %v787 = vld [vmem:[%s778 + $0x60] sm:$0xff]
      %v788 = vld [vmem:[%s778 + $0x68] sm:$0xff]
      %v789 = vld [vmem:[%s778 + $0x78] sm:$0xff]
      %v790 = vld [vmem:[%s778 + $0x80] sm:$0xff]
      %v791 = vld [vmem:[%s778 + $0x90] sm:$0xff]
      %v792 = vld [vmem:[%s778 + $0x98] sm:$0xff]
      %v793 = vld [vmem:[%s778 + $0xa8] sm:$0xff]
      %v794 = vld [vmem:[%s778 + $0xb0] sm:$0xff]
      %v795 = vld [vmem:[%s778 + $0xc0] sm:$0xff]
      %v796 = vld [vmem:[%s778 + $0xc8] sm:$0xff]
      %v797 = vld [vmem:[%s778 + $0xd8] sm:$0xff]
      %v798 = vld [vmem:[%s778 + $0xe0] sm:$0xff]
      %v799 = vld [vmem:[%s778 + $0xf0] sm:$0xff]
      %v800 = vld [vmem:[%s778 + $0xf8] sm:$0xff]
      %v801 = vld [vmem:[%s778 + $0x108] sm:$0xff]
      %v802 = vld [vmem:[%s778 + $0x110] sm:$0xff]
      %v803 = vld [vmem:[%s778 + $0x120] sm:$0xff]
      %v804 = vld [vmem:[%s778 + $0x128] sm:$0xff]
      %v805 = vld [vmem:[%s778 + $0x138] sm:$0xff]
      %v806 = vld [vmem:[%s778 + $0x140] sm:$0xff]
      %v807 = vld [vmem:[%s778 + $0x150] sm:$0xff]
      %v808 = vld [vmem:[%s778 + $0x158] sm:$0xff]
      %v809 = vld [vmem:[%s778 + $0x168] sm:$0xff]
      %v810 = vld [vmem:[%s778 + $0x170] sm:$0xff]
      %v811 = vld [vmem:[%s778 + $0x1] sm:$0xff]
      %v812 = vld [vmem:[%s778 + $0x9] sm:$0xff]
      %v813 = vld [vmem:[%s778 + $0x19] sm:$0xff]
      %v814 = vld [vmem:[%s778 + $0x21] sm:$0xff]
      %v815 = vld [vmem:[%s778 + $0x31] sm:$0xff]
      %v816 = vld [vmem:[%s778 + $0x39] sm:$0xff]
      %v817 = vld [vmem:[%s778 + $0x49] sm:$0xff]
      %v818 = vld [vmem:[%s778 + $0x51] sm:$0xff]
      %v819 = vld [vmem:[%s778 + $0x61] sm:$0xff]
      %v820 = vld [vmem:[%s778 + $0x69] sm:$0xff]
      %v821 = vld [vmem:[%s778 + $0x79] sm:$0xff]
      %v822 = vld [vmem:[%s778 + $0x81] sm:$0xff]
      %v823 = vld [vmem:[%s778 + $0x91] sm:$0xff]
      %v824 = vld [vmem:[%s778 + $0x99] sm:$0xff]
      %v825 = vld [vmem:[%s778 + $0xa9] sm:$0xff]
      %v826 = vld [vmem:[%s778 + $0xb1] sm:$0xff]
      %v827 = vld [vmem:[%s778 + $0xc1] sm:$0xff]
      %v828 = vld [vmem:[%s778 + $0xc9] sm:$0xff]
      %v829 = vld [vmem:[%s778 + $0xd9] sm:$0xff]
      %v830 = vld [vmem:[%s778 + $0xe1] sm:$0xff]
      %v831 = vld [vmem:[%s778 + $0xf1] sm:$0xff]
      %v832 = vld [vmem:[%s778 + $0xf9] sm:$0xff]
      %v833 = vld [vmem:[%s778 + $0x109] sm:$0xff]
      %v834 = vld [vmem:[%s778 + $0x111] sm:$0xff]
      %v835 = vld [vmem:[%s778 + $0x121] sm:$0xff]
      %v836 = vld [vmem:[%s778 + $0x129] sm:$0xff]
      %v837 = vld [vmem:[%s778 + $0x139] sm:$0xff]
      %v838 = vld [vmem:[%s778 + $0x141] sm:$0xff]
      %v839 = vld [vmem:[%s778 + $0x151] sm:$0xff]
      %v840 = vld [vmem:[%s778 + $0x159] sm:$0xff]
      %v841 = vld [vmem:[%s778 + $0x169] sm:$0xff]
      %v842 = vld [vmem:[%s778 + $0x171] sm:$0xff]
      %v843 = vld [vmem:[%s778 + $0x2] sm:$0xff]
      %v844 = vld [vmem:[%s778 + $0xa] sm:$0xff]
      %v845 = vld [vmem:[%s778 + $0x1a] sm:$0xff]
      %v846 = vld [vmem:[%s778 + $0x22] sm:$0xff]
      %v847 = vld [vmem:[%s778 + $0x32] sm:$0xff]
      %v848 = vld [vmem:[%s778 + $0x3a] sm:$0xff]
      %v849 = vld [vmem:[%s778 + $0x4a] sm:$0xff]
      %v850 = vld [vmem:[%s778 + $0x52] sm:$0xff]
      %v851 = vld [vmem:[%s778 + $0x62] sm:$0xff]
      %v852 = vld [vmem:[%s778 + $0x6a] sm:$0xff]
      %v853 = vld [vmem:[%s778 + $0x7a] sm:$0xff]
      %v854 = vld [vmem:[%s778 + $0x82] sm:$0xff]
      %v855 = vld [vmem:[%s778 + $0x92] sm:$0xff]
      %v856 = vld [vmem:[%s778 + $0x9a] sm:$0xff]
      %v857 = vld [vmem:[%s778 + $0xaa] sm:$0xff]
      %v858 = vld [vmem:[%s778 + $0xb2] sm:$0xff]
      %v859 = vld [vmem:[%s778 + $0xc2] sm:$0xff]
      %v860 = vld [vmem:[%s778 + $0xca] sm:$0xff]
      %v861 = vld [vmem:[%s778 + $0xda] sm:$0xff]
      %v862 = vld [vmem:[%s778 + $0xe2] sm:$0xff]
      %v863 = vld [vmem:[%s778 + $0xf2] sm:$0xff]
      %v864 = vld [vmem:[%s778 + $0xfa] sm:$0xff]
      %v865 = vld [vmem:[%s778 + $0x10a] sm:$0xff]
      %v866 = vld [vmem:[%s778 + $0x112] sm:$0xff]
      %v867 = vld [vmem:[%s778 + $0x122] sm:$0xff]
      %v868 = vld [vmem:[%s778 + $0x12a] sm:$0xff]
      %v869 = vld [vmem:[%s778 + $0x13a] sm:$0xff]
      %v870 = vld [vmem:[%s778 + $0x142] sm:$0xff]
      %v871 = vld [vmem:[%s778 + $0x152] sm:$0xff]
      %v872 = vld [vmem:[%s778 + $0x15a] sm:$0xff]
      %v873 = vld [vmem:[%s778 + $0x16a] sm:$0xff]
      %v874 = vld [vmem:[%s778 + $0x172] sm:$0xff]
      %907 = vrot.lane.b32.xlu0 %v618, 4
      %v908 = vpop.permute.xlu0 %907
      %909 = vrot.lane.b32.xlu0 %v619, 4
      %v910 = vpop.permute.xlu0 %909
      %911 = vrot.lane.b32.xlu0 %v620, 4
      %v912 = vpop.permute.xlu0 %911
      %913 = vrot.lane.b32.xlu0 %v621, 4
      %v914 = vpop.permute.xlu0 %913
      %915 = vrot.lane.b32.xlu0 %v622, 4
      %v916 = vpop.permute.xlu0 %915
      %917 = vrot.lane.b32.xlu0 %v623, 4
      %v918 = vpop.permute.xlu0 %917
      %919 = vrot.lane.b32.xlu0 %v624, 4
      %v920 = vpop.permute.xlu0 %919
      %921 = vrot.lane.b32.xlu0 %v625, 4
      %v922 = vpop.permute.xlu0 %921
      %923 = vrot.lane.b32.xlu0 %v626, 4
      %v924 = vpop.permute.xlu0 %923
      %925 = vrot.lane.b32.xlu0 %v627, 4
      %v926 = vpop.permute.xlu0 %925
      %927 = vrot.lane.b32.xlu0 %v628, 4
      %v928 = vpop.permute.xlu0 %927
      %929 = vrot.lane.b32.xlu0 %v629, 4
      %v930 = vpop.permute.xlu0 %929
      %931 = vrot.lane.b32.xlu0 %v630, 4
      %v932 = vpop.permute.xlu0 %931
      %933 = vrot.lane.b32.xlu0 %v631, 4
      %v934 = vpop.permute.xlu0 %933
      %935 = vrot.lane.b32.xlu0 %v632, 4
      %v936 = vpop.permute.xlu0 %935
      %937 = vrot.lane.b32.xlu0 %v633, 4
      %v938 = vpop.permute.xlu0 %937
      %939 = vrot.lane.b32.xlu0 %v634, 4
      %v940 = vpop.permute.xlu0 %939
      %941 = vrot.lane.b32.xlu0 %v635, 4
      %v942 = vpop.permute.xlu0 %941
      %943 = vrot.lane.b32.xlu0 %v636, 4
      %v944 = vpop.permute.xlu0 %943
      %945 = vrot.lane.b32.xlu0 %v637, 4
      %v946 = vpop.permute.xlu0 %945
      %947 = vrot.lane.b32.xlu0 %v638, 4
      %v948 = vpop.permute.xlu0 %947
      %949 = vrot.lane.b32.xlu0 %v639, 4
      %v950 = vpop.permute.xlu0 %949
      %951 = vrot.lane.b32.xlu0 %v640, 4
      %v952 = vpop.permute.xlu0 %951
      %953 = vrot.lane.b32.xlu0 %v641, 4
      %v954 = vpop.permute.xlu0 %953
      %955 = vrot.lane.b32.xlu0 %v642, 4
      %v956 = vpop.permute.xlu0 %955
      %957 = vrot.lane.b32.xlu0 %v643, 4
      %v958 = vpop.permute.xlu0 %957
      %959 = vrot.lane.b32.xlu0 %v644, 4
      %v960 = vpop.permute.xlu0 %959
      %961 = vrot.lane.b32.xlu0 %v645, 4
      %v962 = vpop.permute.xlu0 %961
      %963 = vrot.lane.b32.xlu0 %v646, 4
      %v964 = vpop.permute.xlu0 %963
      %965 = vrot.lane.b32.xlu0 %v647, 4
      %v966 = vpop.permute.xlu0 %965
      %967 = vrot.lane.b32.xlu0 %v648, 4
      %v968 = vpop.permute.xlu0 %967
      %969 = vrot.lane.b32.xlu0 %v649, 4
      %v970 = vpop.permute.xlu0 %969
      %1035 = vrot.lane.b32.xlu0 %v650, 8
      %v1036 = vpop.permute.xlu0 %1035
      %1037 = vrot.lane.b32.xlu0 %v651, 8
      %v1038 = vpop.permute.xlu0 %1037
      %1039 = vrot.lane.b32.xlu0 %v652, 8
      %v1040 = vpop.permute.xlu0 %1039
      %1041 = vrot.lane.b32.xlu0 %v653, 8
      %v1042 = vpop.permute.xlu0 %1041
      %1043 = vrot.lane.b32.xlu0 %v654, 8
      %v1044 = vpop.permute.xlu0 %1043
      %1045 = vrot.lane.b32.xlu0 %v655, 8
      %v1046 = vpop.permute.xlu0 %1045
      %1047 = vrot.lane.b32.xlu0 %v656, 8
      %v1048 = vpop.permute.xlu0 %1047
      %1049 = vrot.lane.b32.xlu0 %v657, 8
      %v1050 = vpop.permute.xlu0 %1049
      %1051 = vrot.lane.b32.xlu0 %v658, 8
      %v1052 = vpop.permute.xlu0 %1051
      %1053 = vrot.lane.b32.xlu0 %v659, 8
      %v1054 = vpop.permute.xlu0 %1053
      %1055 = vrot.lane.b32.xlu0 %v660, 8
      %v1056 = vpop.permute.xlu0 %1055
      %1057 = vrot.lane.b32.xlu0 %v661, 8
      %v1058 = vpop.permute.xlu0 %1057
      %1059 = vrot.lane.b32.xlu0 %v662, 8
      %v1060 = vpop.permute.xlu0 %1059
      %1061 = vrot.lane.b32.xlu0 %v663, 8
      %v1062 = vpop.permute.xlu0 %1061
      %1063 = vrot.lane.b32.xlu0 %v664, 8
      %v1064 = vpop.permute.xlu0 %1063
      %1065 = vrot.lane.b32.xlu0 %v665, 8
      %v1066 = vpop.permute.xlu0 %1065
      %1067 = vrot.lane.b32.xlu0 %v666, 8
      %v1068 = vpop.permute.xlu0 %1067
      %1069 = vrot.lane.b32.xlu0 %v667, 8
      %v1070 = vpop.permute.xlu0 %1069
      %1071 = vrot.lane.b32.xlu0 %v668, 8
      %v1072 = vpop.permute.xlu0 %1071
      %1073 = vrot.lane.b32.xlu0 %v669, 8
      %v1074 = vpop.permute.xlu0 %1073
      %1075 = vrot.lane.b32.xlu0 %v670, 8
      %v1076 = vpop.permute.xlu0 %1075
      %1077 = vrot.lane.b32.xlu0 %v671, 8
      %v1078 = vpop.permute.xlu0 %1077
      %1079 = vrot.lane.b32.xlu0 %v672, 8
      %v1080 = vpop.permute.xlu0 %1079
      %1081 = vrot.lane.b32.xlu0 %v673, 8
      %v1082 = vpop.permute.xlu0 %1081
      %1083 = vrot.lane.b32.xlu0 %v674, 8
      %v1084 = vpop.permute.xlu0 %1083
      %1085 = vrot.lane.b32.xlu0 %v675, 8
      %v1086 = vpop.permute.xlu0 %1085
      %1087 = vrot.lane.b32.xlu0 %v676, 8
      %v1088 = vpop.permute.xlu0 %1087
      %1089 = vrot.lane.b32.xlu0 %v677, 8
      %v1090 = vpop.permute.xlu0 %1089
      %1091 = vrot.lane.b32.xlu0 %v678, 8
      %v1092 = vpop.permute.xlu0 %1091
      %1093 = vrot.lane.b32.xlu0 %v679, 8
      %v1094 = vpop.permute.xlu0 %1093
      %1095 = vrot.lane.b32.xlu0 %v680, 8
      %v1096 = vpop.permute.xlu0 %1095
      %1097 = vrot.lane.b32.xlu0 %v681, 8
      %v1098 = vpop.permute.xlu0 %1097
      %1163 = vrot.lane.b32.xlu0 %v682, 12
      %v1164 = vpop.permute.xlu0 %1163
      %1165 = vrot.lane.b32.xlu0 %v683, 12
      %v1166 = vpop.permute.xlu0 %1165
      %1167 = vrot.lane.b32.xlu0 %v684, 12
      %v1168 = vpop.permute.xlu0 %1167
      %1169 = vrot.lane.b32.xlu0 %v685, 12
      %v1170 = vpop.permute.xlu0 %1169
      %1171 = vrot.lane.b32.xlu0 %v686, 12
      %v1172 = vpop.permute.xlu0 %1171
      %1173 = vrot.lane.b32.xlu0 %v687, 12
      %v1174 = vpop.permute.xlu0 %1173
      %1175 = vrot.lane.b32.xlu0 %v688, 12
      %v1176 = vpop.permute.xlu0 %1175
      %1177 = vrot.lane.b32.xlu0 %v689, 12
      %v1178 = vpop.permute.xlu0 %1177
      %1179 = vrot.lane.b32.xlu0 %v690, 12
      %v1180 = vpop.permute.xlu0 %1179
      %1181 = vrot.lane.b32.xlu0 %v691, 12
      %v1182 = vpop.permute.xlu0 %1181
      %1183 = vrot.lane.b32.xlu0 %v692, 12
      %v1184 = vpop.permute.xlu0 %1183
      %1185 = vrot.lane.b32.xlu0 %v693, 12
      %v1186 = vpop.permute.xlu0 %1185
      %1187 = vrot.lane.b32.xlu0 %v694, 12
      %v1188 = vpop.permute.xlu0 %1187
      %1189 = vrot.lane.b32.xlu0 %v695, 12
      %v1190 = vpop.permute.xlu0 %1189
      %1191 = vrot.lane.b32.xlu0 %v696, 12
      %v1192 = vpop.permute.xlu0 %1191
      %1193 = vrot.lane.b32.xlu0 %v697, 12
      %v1194 = vpop.permute.xlu0 %1193
      %1195 = vrot.lane.b32.xlu0 %v698, 12
      %v1196 = vpop.permute.xlu0 %1195
      %1197 = vrot.lane.b32.xlu0 %v699, 12
      %v1198 = vpop.permute.xlu0 %1197
      %1199 = vrot.lane.b32.xlu0 %v700, 12
      %v1200 = vpop.permute.xlu0 %1199
      %1201 = vrot.lane.b32.xlu0 %v701, 12
      %v1202 = vpop.permute.xlu0 %1201
      %1203 = vrot.lane.b32.xlu0 %v702, 12
      %v1204 = vpop.permute.xlu0 %1203
      %1205 = vrot.lane.b32.xlu0 %v703, 12
      %v1206 = vpop.permute.xlu0 %1205
      %1207 = vrot.lane.b32.xlu0 %v704, 12
      %v1208 = vpop.permute.xlu0 %1207
      %1209 = vrot.lane.b32.xlu0 %v705, 12
      %v1210 = vpop.permute.xlu0 %1209
      %1211 = vrot.lane.b32.xlu0 %v706, 12
      %v1212 = vpop.permute.xlu0 %1211
      %1213 = vrot.lane.b32.xlu0 %v707, 12
      %v1214 = vpop.permute.xlu0 %1213
      %1215 = vrot.lane.b32.xlu0 %v708, 12
      %v1216 = vpop.permute.xlu0 %1215
      %1217 = vrot.lane.b32.xlu0 %v709, 12
      %v1218 = vpop.permute.xlu0 %1217
      %1219 = vrot.lane.b32.xlu0 %v710, 12
      %v1220 = vpop.permute.xlu0 %1219
      %1221 = vrot.lane.b32.xlu0 %v711, 12
      %v1222 = vpop.permute.xlu0 %1221
      %1223 = vrot.lane.b32.xlu0 %v712, 12
      %v1224 = vpop.permute.xlu0 %1223
      %1225 = vrot.lane.b32.xlu0 %v713, 12
      %v1226 = vpop.permute.xlu0 %1225
      %1291 = vrot.lane.b32.xlu0 %v714, 16
      %v1292 = vpop.permute.xlu0 %1291
      %1293 = vrot.lane.b32.xlu0 %v715, 16
      %v1294 = vpop.permute.xlu0 %1293
      %1295 = vrot.lane.b32.xlu0 %v716, 16
      %v1296 = vpop.permute.xlu0 %1295
      %1297 = vrot.lane.b32.xlu0 %v717, 16
      %v1298 = vpop.permute.xlu0 %1297
      %1299 = vrot.lane.b32.xlu0 %v718, 16
      %v1300 = vpop.permute.xlu0 %1299
      %1301 = vrot.lane.b32.xlu0 %v719, 16
      %v1302 = vpop.permute.xlu0 %1301
      %1303 = vrot.lane.b32.xlu0 %v720, 16
      %v1304 = vpop.permute.xlu0 %1303
      %1305 = vrot.lane.b32.xlu0 %v721, 16
      %v1306 = vpop.permute.xlu0 %1305
      %1307 = vrot.lane.b32.xlu0 %v722, 16
      %v1308 = vpop.permute.xlu0 %1307
      %1309 = vrot.lane.b32.xlu0 %v723, 16
      %v1310 = vpop.permute.xlu0 %1309
      %1311 = vrot.lane.b32.xlu0 %v724, 16
      %v1312 = vpop.permute.xlu0 %1311
      %1313 = vrot.lane.b32.xlu0 %v725, 16
      %v1314 = vpop.permute.xlu0 %1313
      %1315 = vrot.lane.b32.xlu0 %v726, 16
      %v1316 = vpop.permute.xlu0 %1315
      %1317 = vrot.lane.b32.xlu0 %v727, 16
      %v1318 = vpop.permute.xlu0 %1317
      %1319 = vrot.lane.b32.xlu0 %v728, 16
      %v1320 = vpop.permute.xlu0 %1319
      %1321 = vrot.lane.b32.xlu0 %v729, 16
      %v1322 = vpop.permute.xlu0 %1321
      %1323 = vrot.lane.b32.xlu0 %v730, 16
      %v1324 = vpop.permute.xlu0 %1323
      %1325 = vrot.lane.b32.xlu0 %v731, 16
      %v1326 = vpop.permute.xlu0 %1325
      %1327 = vrot.lane.b32.xlu0 %v732, 16
      %v1328 = vpop.permute.xlu0 %1327
      %1329 = vrot.lane.b32.xlu0 %v733, 16
      %v1330 = vpop.permute.xlu0 %1329
      %1331 = vrot.lane.b32.xlu0 %v734, 16
      %v1332 = vpop.permute.xlu0 %1331
      %1333 = vrot.lane.b32.xlu0 %v735, 16
      %v1334 = vpop.permute.xlu0 %1333
      %1335 = vrot.lane.b32.xlu0 %v736, 16
      %v1336 = vpop.permute.xlu0 %1335
      %1337 = vrot.lane.b32.xlu0 %v737, 16
      %v1338 = vpop.permute.xlu0 %1337
      %1339 = vrot.lane.b32.xlu0 %v738, 16
      %v1340 = vpop.permute.xlu0 %1339
      %1341 = vrot.lane.b32.xlu0 %v739, 16
      %v1342 = vpop.permute.xlu0 %1341
      %1343 = vrot.lane.b32.xlu0 %v740, 16
      %v1344 = vpop.permute.xlu0 %1343
      %1345 = vrot.lane.b32.xlu0 %v741, 16
      %v1346 = vpop.permute.xlu0 %1345
      %1347 = vrot.lane.b32.xlu0 %v742, 16
      %v1348 = vpop.permute.xlu0 %1347
      %1349 = vrot.lane.b32.xlu0 %v743, 16
      %v1350 = vpop.permute.xlu0 %1349
      %1351 = vrot.lane.b32.xlu0 %v744, 16
      %v1352 = vpop.permute.xlu0 %1351
      %1353 = vrot.lane.b32.xlu0 %v745, 16
      %v1354 = vpop.permute.xlu0 %1353
      %1419 = vrot.lane.b32.xlu0 %v746, 20
      %v1420 = vpop.permute.xlu0 %1419
      %1421 = vrot.lane.b32.xlu0 %v747, 20
      %v1422 = vpop.permute.xlu0 %1421
      %1423 = vrot.lane.b32.xlu0 %v748, 20
      %v1424 = vpop.permute.xlu0 %1423
      %1425 = vrot.lane.b32.xlu0 %v749, 20
      %v1426 = vpop.permute.xlu0 %1425
      %1427 = vrot.lane.b32.xlu0 %v750, 20
      %v1428 = vpop.permute.xlu0 %1427
      %1429 = vrot.lane.b32.xlu0 %v751, 20
      %v1430 = vpop.permute.xlu0 %1429
      %1431 = vrot.lane.b32.xlu0 %v752, 20
      %v1432 = vpop.permute.xlu0 %1431
      %1433 = vrot.lane.b32.xlu0 %v753, 20
      %v1434 = vpop.permute.xlu0 %1433
      %1435 = vrot.lane.b32.xlu0 %v754, 20
      %v1436 = vpop.permute.xlu0 %1435
      %1437 = vrot.lane.b32.xlu0 %v755, 20
      %v1438 = vpop.permute.xlu0 %1437
      %1439 = vrot.lane.b32.xlu0 %v756, 20
      %v1440 = vpop.permute.xlu0 %1439
      %1441 = vrot.lane.b32.xlu0 %v757, 20
      %v1442 = vpop.permute.xlu0 %1441
      %1443 = vrot.lane.b32.xlu0 %v758, 20
      %v1444 = vpop.permute.xlu0 %1443
      %1445 = vrot.lane.b32.xlu0 %v759, 20
      %v1446 = vpop.permute.xlu0 %1445
      %1447 = vrot.lane.b32.xlu0 %v760, 20
      %v1448 = vpop.permute.xlu0 %1447
      %1449 = vrot.lane.b32.xlu0 %v761, 20
      %v1450 = vpop.permute.xlu0 %1449
      %1451 = vrot.lane.b32.xlu0 %v762, 20
      %v1452 = vpop.permute.xlu0 %1451
      %1453 = vrot.lane.b32.xlu0 %v763, 20
      %v1454 = vpop.permute.xlu0 %1453
      %1455 = vrot.lane.b32.xlu0 %v764, 20
      %v1456 = vpop.permute.xlu0 %1455
      %1457 = vrot.lane.b32.xlu0 %v765, 20
      %v1458 = vpop.permute.xlu0 %1457
      %1459 = vrot.lane.b32.xlu0 %v766, 20
      %v1460 = vpop.permute.xlu0 %1459
      %1461 = vrot.lane.b32.xlu0 %v767, 20
      %v1462 = vpop.permute.xlu0 %1461
      %1463 = vrot.lane.b32.xlu0 %v768, 20
      %v1464 = vpop.permute.xlu0 %1463
      %1465 = vrot.lane.b32.xlu0 %v769, 20
      %v1466 = vpop.permute.xlu0 %1465
      %1467 = vrot.lane.b32.xlu0 %v770, 20
      %v1468 = vpop.permute.xlu0 %1467
      %1469 = vrot.lane.b32.xlu0 %v771, 20
      %v1470 = vpop.permute.xlu0 %1469
      %1471 = vrot.lane.b32.xlu0 %v772, 20
      %v1472 = vpop.permute.xlu0 %1471
      %1473 = vrot.lane.b32.xlu0 %v773, 20
      %v1474 = vpop.permute.xlu0 %1473
      %1475 = vrot.lane.b32.xlu0 %v774, 20
      %v1476 = vpop.permute.xlu0 %1475
      %1477 = vrot.lane.b32.xlu0 %v775, 20
      %v1478 = vpop.permute.xlu0 %1477
      %1479 = vrot.lane.b32.xlu0 %v776, 20
      %v1480 = vpop.permute.xlu0 %1479
      %1481 = vrot.lane.b32.xlu0 %v777, 20
      %v1482 = vpop.permute.xlu0 %1481
      %1547 = vrot.lane.b32.xlu0 %v779, 24
      %v1548 = vpop.permute.xlu0 %1547
      %1549 = vrot.lane.b32.xlu0 %v780, 24
      %v1550 = vpop.permute.xlu0 %1549
      %1551 = vrot.lane.b32.xlu0 %v781, 24
      %v1552 = vpop.permute.xlu0 %1551
      %1553 = vrot.lane.b32.xlu0 %v782, 24
      %v1554 = vpop.permute.xlu0 %1553
      %1555 = vrot.lane.b32.xlu0 %v783, 24
      %v1556 = vpop.permute.xlu0 %1555
      %1557 = vrot.lane.b32.xlu0 %v784, 24
      %v1558 = vpop.permute.xlu0 %1557
      %1559 = vrot.lane.b32.xlu0 %v785, 24
      %v1560 = vpop.permute.xlu0 %1559
      %1561 = vrot.lane.b32.xlu0 %v786, 24
      %v1562 = vpop.permute.xlu0 %1561
      %1563 = vrot.lane.b32.xlu0 %v787, 24
      %v1564 = vpop.permute.xlu0 %1563
      %1565 = vrot.lane.b32.xlu0 %v788, 24
      %v1566 = vpop.permute.xlu0 %1565
      %1567 = vrot.lane.b32.xlu0 %v789, 24
      %v1568 = vpop.permute.xlu0 %1567
      %1569 = vrot.lane.b32.xlu0 %v790, 24
      %v1570 = vpop.permute.xlu0 %1569
      %1571 = vrot.lane.b32.xlu0 %v791, 24
      %v1572 = vpop.permute.xlu0 %1571
      %1573 = vrot.lane.b32.xlu0 %v792, 24
      %v1574 = vpop.permute.xlu0 %1573
      %1575 = vrot.lane.b32.xlu0 %v793, 24
      %v1576 = vpop.permute.xlu0 %1575
      %1577 = vrot.lane.b32.xlu0 %v794, 24
      %v1578 = vpop.permute.xlu0 %1577
      %1579 = vrot.lane.b32.xlu0 %v795, 24
      %v1580 = vpop.permute.xlu0 %1579
      %1581 = vrot.lane.b32.xlu0 %v796, 24
      %v1582 = vpop.permute.xlu0 %1581
      %1583 = vrot.lane.b32.xlu0 %v797, 24
      %v1584 = vpop.permute.xlu0 %1583
      %1585 = vrot.lane.b32.xlu0 %v798, 24
      %v1586 = vpop.permute.xlu0 %1585
      %1587 = vrot.lane.b32.xlu0 %v799, 24
      %v1588 = vpop.permute.xlu0 %1587
      %1589 = vrot.lane.b32.xlu0 %v800, 24
      %v1590 = vpop.permute.xlu0 %1589
      %1591 = vrot.lane.b32.xlu0 %v801, 24
      %v1592 = vpop.permute.xlu0 %1591
      %1593 = vrot.lane.b32.xlu0 %v802, 24
      %v1594 = vpop.permute.xlu0 %1593
      %1595 = vrot.lane.b32.xlu0 %v803, 24
      %v1596 = vpop.permute.xlu0 %1595
      %1597 = vrot.lane.b32.xlu0 %v804, 24
      %v1598 = vpop.permute.xlu0 %1597
      %1599 = vrot.lane.b32.xlu0 %v805, 24
      %v1600 = vpop.permute.xlu0 %1599
      %1601 = vrot.lane.b32.xlu0 %v806, 24
      %v1602 = vpop.permute.xlu0 %1601
      %1603 = vrot.lane.b32.xlu0 %v807, 24
      %v1604 = vpop.permute.xlu0 %1603
      %1605 = vrot.lane.b32.xlu0 %v808, 24
      %v1606 = vpop.permute.xlu0 %1605
      %1607 = vrot.lane.b32.xlu0 %v809, 24
      %v1608 = vpop.permute.xlu0 %1607
      %1609 = vrot.lane.b32.xlu0 %v810, 24
      %v1610 = vpop.permute.xlu0 %1609
      %1675 = vrot.lane.b32.xlu0 %v811, 28
      %v1676 = vpop.permute.xlu0 %1675
      %1677 = vrot.lane.b32.xlu0 %v812, 28
      %v1678 = vpop.permute.xlu0 %1677
      %1679 = vrot.lane.b32.xlu0 %v813, 28
      %v1680 = vpop.permute.xlu0 %1679
      %1681 = vrot.lane.b32.xlu0 %v814, 28
      %v1682 = vpop.permute.xlu0 %1681
      %1683 = vrot.lane.b32.xlu0 %v815, 28
      %v1684 = vpop.permute.xlu0 %1683
      %1685 = vrot.lane.b32.xlu0 %v816, 28
      %v1686 = vpop.permute.xlu0 %1685
      %1687 = vrot.lane.b32.xlu0 %v817, 28
      %v1688 = vpop.permute.xlu0 %1687
      %1689 = vrot.lane.b32.xlu0 %v818, 28
      %v1690 = vpop.permute.xlu0 %1689
      %1691 = vrot.lane.b32.xlu0 %v819, 28
      %v1692 = vpop.permute.xlu0 %1691
      %1693 = vrot.lane.b32.xlu0 %v820, 28
      %v1694 = vpop.permute.xlu0 %1693
      %1695 = vrot.lane.b32.xlu0 %v821, 28
      %v1696 = vpop.permute.xlu0 %1695
      %1697 = vrot.lane.b32.xlu0 %v822, 28
      %v1698 = vpop.permute.xlu0 %1697
      %1699 = vrot.lane.b32.xlu0 %v823, 28
      %v1700 = vpop.permute.xlu0 %1699
      %1701 = vrot.lane.b32.xlu0 %v824, 28
      %v1702 = vpop.permute.xlu0 %1701
      %1703 = vrot.lane.b32.xlu0 %v825, 28
      %v1704 = vpop.permute.xlu0 %1703
      %1705 = vrot.lane.b32.xlu0 %v826, 28
      %v1706 = vpop.permute.xlu0 %1705
      %1707 = vrot.lane.b32.xlu0 %v827, 28
      %v1708 = vpop.permute.xlu0 %1707
      %1709 = vrot.lane.b32.xlu0 %v828, 28
      %v1710 = vpop.permute.xlu0 %1709
      %1711 = vrot.lane.b32.xlu0 %v829, 28
      %v1712 = vpop.permute.xlu0 %1711
      %1713 = vrot.lane.b32.xlu0 %v830, 28
      %v1714 = vpop.permute.xlu0 %1713
      %1715 = vrot.lane.b32.xlu0 %v831, 28
      %v1716 = vpop.permute.xlu0 %1715
      %1717 = vrot.lane.b32.xlu0 %v832, 28
      %v1718 = vpop.permute.xlu0 %1717
      %1719 = vrot.lane.b32.xlu0 %v833, 28
      %v1720 = vpop.permute.xlu0 %1719
      %1721 = vrot.lane.b32.xlu0 %v834, 28
      %v1722 = vpop.permute.xlu0 %1721
      %1723 = vrot.lane.b32.xlu0 %v835, 28
      %v1724 = vpop.permute.xlu0 %1723
      %1725 = vrot.lane.b32.xlu0 %v836, 28
      %v1726 = vpop.permute.xlu0 %1725
      %1727 = vrot.lane.b32.xlu0 %v837, 28
      %v1728 = vpop.permute.xlu0 %1727
      %1729 = vrot.lane.b32.xlu0 %v838, 28
      %v1730 = vpop.permute.xlu0 %1729
      %1731 = vrot.lane.b32.xlu0 %v839, 28
      %v1732 = vpop.permute.xlu0 %1731
      %1733 = vrot.lane.b32.xlu0 %v840, 28
      %v1734 = vpop.permute.xlu0 %1733
      %1735 = vrot.lane.b32.xlu0 %v841, 28
      %v1736 = vpop.permute.xlu0 %1735
      %1737 = vrot.lane.b32.xlu0 %v842, 28
      %v1738 = vpop.permute.xlu0 %1737
      %1803 = vrot.lane.b32.xlu0 %v843, 32
      %v1804 = vpop.permute.xlu0 %1803
      %1805 = vrot.lane.b32.xlu0 %v844, 32
      %v1806 = vpop.permute.xlu0 %1805
      %1807 = vrot.lane.b32.xlu0 %v845, 32
      %v1808 = vpop.permute.xlu0 %1807
      %1809 = vrot.lane.b32.xlu0 %v846, 32
      %v1810 = vpop.permute.xlu0 %1809
      %1811 = vrot.lane.b32.xlu0 %v847, 32
      %v1812 = vpop.permute.xlu0 %1811
      %1813 = vrot.lane.b32.xlu0 %v848, 32
      %v1814 = vpop.permute.xlu0 %1813
      %1815 = vrot.lane.b32.xlu0 %v849, 32
      %v1816 = vpop.permute.xlu0 %1815
      %1817 = vrot.lane.b32.xlu0 %v850, 32
      %v1818 = vpop.permute.xlu0 %1817
      %1819 = vrot.lane.b32.xlu0 %v851, 32
      %v1820 = vpop.permute.xlu0 %1819
      %1821 = vrot.lane.b32.xlu0 %v852, 32
      %v1822 = vpop.permute.xlu0 %1821
      %1823 = vrot.lane.b32.xlu0 %v853, 32
      %v1824 = vpop.permute.xlu0 %1823
      %1825 = vrot.lane.b32.xlu0 %v854, 32
      %v1826 = vpop.permute.xlu0 %1825
      %1827 = vrot.lane.b32.xlu0 %v855, 32
      %v1828 = vpop.permute.xlu0 %1827
      %1829 = vrot.lane.b32.xlu0 %v856, 32
      %v1830 = vpop.permute.xlu0 %1829
      %1831 = vrot.lane.b32.xlu0 %v857, 32
      %v1832 = vpop.permute.xlu0 %1831
      %1833 = vrot.lane.b32.xlu0 %v858, 32
      %v1834 = vpop.permute.xlu0 %1833
      %1835 = vrot.lane.b32.xlu0 %v859, 32
      %v1836 = vpop.permute.xlu0 %1835
      %1837 = vrot.lane.b32.xlu0 %v860, 32
      %v1838 = vpop.permute.xlu0 %1837
      %1839 = vrot.lane.b32.xlu0 %v861, 32
      %v1840 = vpop.permute.xlu0 %1839
      %1841 = vrot.lane.b32.xlu0 %v862, 32
      %v1842 = vpop.permute.xlu0 %1841
      %1843 = vrot.lane.b32.xlu0 %v863, 32
      %v1844 = vpop.permute.xlu0 %1843
      %1845 = vrot.lane.b32.xlu0 %v864, 32
      %v1846 = vpop.permute.xlu0 %1845
      %1847 = vrot.lane.b32.xlu0 %v865, 32
      %v1848 = vpop.permute.xlu0 %1847
      %1849 = vrot.lane.b32.xlu0 %v866, 32
      %v1850 = vpop.permute.xlu0 %1849
      %1851 = vrot.lane.b32.xlu0 %v867, 32
      %v1852 = vpop.permute.xlu0 %1851
      %1853 = vrot.lane.b32.xlu0 %v868, 32
      %v1854 = vpop.permute.xlu0 %1853
      %1855 = vrot.lane.b32.xlu0 %v869, 32
      %v1856 = vpop.permute.xlu0 %1855
      %1857 = vrot.lane.b32.xlu0 %v870, 32
      %v1858 = vpop.permute.xlu0 %1857
      %1859 = vrot.lane.b32.xlu0 %v871, 32
      %v1860 = vpop.permute.xlu0 %1859
      %1861 = vrot.lane.b32.xlu0 %v872, 32
      %v1862 = vpop.permute.xlu0 %1861
      %1863 = vrot.lane.b32.xlu0 %v873, 32
      %v1864 = vpop.permute.xlu0 %1863
      %1865 = vrot.lane.b32.xlu0 %v874, 32
      %v1866 = vpop.permute.xlu0 %1865
      %v1899 = vsel %vm497, %v586, %v908
      %v1900 = vsel %vm497, %v587, %v910
      %v1901 = vsel %vm497, %v588, %v912
      %v1902 = vsel %vm497, %v589, %v914
      %v1903 = vsel %vm497, %v590, %v916
      %v1904 = vsel %vm497, %v591, %v918
      %v1905 = vsel %vm497, %v592, %v920
      %v1906 = vsel %vm497, %v593, %v922
      %v1907 = vsel %vm497, %v594, %v924
      %v1908 = vsel %vm497, %v595, %v926
      %v1909 = vsel %vm497, %v596, %v928
      %v1910 = vsel %vm497, %v597, %v930
      %v1911 = vsel %vm497, %v598, %v932
      %v1912 = vsel %vm497, %v599, %v934
      %v1913 = vsel %vm497, %v600, %v936
      %v1914 = vsel %vm497, %v601, %v938
      %v1915 = vsel %vm497, %v602, %v940
      %v1916 = vsel %vm497, %v603, %v942
      %v1917 = vsel %vm497, %v604, %v944
      %v1918 = vsel %vm497, %v605, %v946
      %v1919 = vsel %vm497, %v606, %v948
      %v1920 = vsel %vm497, %v607, %v950
      %v1921 = vsel %vm497, %v608, %v952
      %v1922 = vsel %vm497, %v609, %v954
      %v1923 = vsel %vm497, %v610, %v956
      %v1924 = vsel %vm497, %v611, %v958
      %v1925 = vsel %vm497, %v612, %v960
      %v1926 = vsel %vm497, %v613, %v962
      %v1927 = vsel %vm497, %v614, %v964
      %v1928 = vsel %vm497, %v615, %v966
      %v1929 = vsel %vm497, %v616, %v968
      %v1930 = vsel %vm497, %v617, %v970
      %vm1931 = vcmask 64512
      %v1932 = vsel %vm1931, %v1899, %v1036
      %v1933 = vsel %vm1931, %v1900, %v1038
      %v1934 = vsel %vm1931, %v1901, %v1040
      %v1935 = vsel %vm1931, %v1902, %v1042
      %v1936 = vsel %vm1931, %v1903, %v1044
      %v1937 = vsel %vm1931, %v1904, %v1046
      %v1938 = vsel %vm1931, %v1905, %v1048
      %v1939 = vsel %vm1931, %v1906, %v1050
      %v1940 = vsel %vm1931, %v1907, %v1052
      %v1941 = vsel %vm1931, %v1908, %v1054
      %v1942 = vsel %vm1931, %v1909, %v1056
      %v1943 = vsel %vm1931, %v1910, %v1058
      %v1944 = vsel %vm1931, %v1911, %v1060
      %v1945 = vsel %vm1931, %v1912, %v1062
      %v1946 = vsel %vm1931, %v1913, %v1064
      %v1947 = vsel %vm1931, %v1914, %v1066
      %v1948 = vsel %vm1931, %v1915, %v1068
      %v1949 = vsel %vm1931, %v1916, %v1070
      %v1950 = vsel %vm1931, %v1917, %v1072
      %v1951 = vsel %vm1931, %v1918, %v1074
      %v1952 = vsel %vm1931, %v1919, %v1076
      %v1953 = vsel %vm1931, %v1920, %v1078
      %v1954 = vsel %vm1931, %v1921, %v1080
      %v1955 = vsel %vm1931, %v1922, %v1082
      %v1956 = vsel %vm1931, %v1923, %v1084
      %v1957 = vsel %vm1931, %v1924, %v1086
      %v1958 = vsel %vm1931, %v1925, %v1088
      %v1959 = vsel %vm1931, %v1926, %v1090
      %v1960 = vsel %vm1931, %v1927, %v1092
      %v1961 = vsel %vm1931, %v1928, %v1094
      %v1962 = vsel %vm1931, %v1929, %v1096
      %v1963 = vsel %vm1931, %v1930, %v1098
      %vm1964 = vcmask 97280
      %v1965 = vsel %vm1964, %v1932, %v1164
      %v1966 = vsel %vm1964, %v1933, %v1166
      %v1967 = vsel %vm1964, %v1934, %v1168
      %v1968 = vsel %vm1964, %v1935, %v1170
      %v1969 = vsel %vm1964, %v1936, %v1172
      %v1970 = vsel %vm1964, %v1937, %v1174
      %v1971 = vsel %vm1964, %v1938, %v1176
      %v1972 = vsel %vm1964, %v1939, %v1178
      %v1973 = vsel %vm1964, %v1940, %v1180
      %v1974 = vsel %vm1964, %v1941, %v1182
      %v1975 = vsel %vm1964, %v1942, %v1184
      %v1976 = vsel %vm1964, %v1943, %v1186
      %v1977 = vsel %vm1964, %v1944, %v1188
      %v1978 = vsel %vm1964, %v1945, %v1190
      %v1979 = vsel %vm1964, %v1946, %v1192
      %v1980 = vsel %vm1964, %v1947, %v1194
      %v1981 = vsel %vm1964, %v1948, %v1196
      %v1982 = vsel %vm1964, %v1949, %v1198
      %v1983 = vsel %vm1964, %v1950, %v1200
      %v1984 = vsel %vm1964, %v1951, %v1202
      %v1985 = vsel %vm1964, %v1952, %v1204
      %v1986 = vsel %vm1964, %v1953, %v1206
      %v1987 = vsel %vm1964, %v1954, %v1208
      %v1988 = vsel %vm1964, %v1955, %v1210
      %v1989 = vsel %vm1964, %v1956, %v1212
      %v1990 = vsel %vm1964, %v1957, %v1214
      %v1991 = vsel %vm1964, %v1958, %v1216
      %v1992 = vsel %vm1964, %v1959, %v1218
      %v1993 = vsel %vm1964, %v1960, %v1220
      %v1994 = vsel %vm1964, %v1961, %v1222
      %v1995 = vsel %vm1964, %v1962, %v1224
      %v1996 = vsel %vm1964, %v1963, %v1226
      %vm1997 = vcmask 130048
      %v1998 = vsel %vm1997, %v1965, %v1292
      %v1999 = vsel %vm1997, %v1966, %v1294
      %v2000 = vsel %vm1997, %v1967, %v1296
      %v2001 = vsel %vm1997, %v1968, %v1298
      %v2002 = vsel %vm1997, %v1969, %v1300
      %v2003 = vsel %vm1997, %v1970, %v1302
      %v2004 = vsel %vm1997, %v1971, %v1304
      %v2005 = vsel %vm1997, %v1972, %v1306
      %v2006 = vsel %vm1997, %v1973, %v1308
      %v2007 = vsel %vm1997, %v1974, %v1310
      %v2008 = vsel %vm1997, %v1975, %v1312
      %v2009 = vsel %vm1997, %v1976, %v1314
      %v2010 = vsel %vm1997, %v1977, %v1316
      %v2011 = vsel %vm1997, %v1978, %v1318
      %v2012 = vsel %vm1997, %v1979, %v1320
      %v2013 = vsel %vm1997, %v1980, %v1322
      %v2014 = vsel %vm1997, %v1981, %v1324
      %v2015 = vsel %vm1997, %v1982, %v1326
      %v2016 = vsel %vm1997, %v1983, %v1328
      %v2017 = vsel %vm1997, %v1984, %v1330
      %v2018 = vsel %vm1997, %v1985, %v1332
      %v2019 = vsel %vm1997, %v1986, %v1334
      %v2020 = vsel %vm1997, %v1987, %v1336
      %v2021 = vsel %vm1997, %v1988, %v1338
      %v2022 = vsel %vm1997, %v1989, %v1340
      %v2023 = vsel %vm1997, %v1990, %v1342
      %v2024 = vsel %vm1997, %v1991, %v1344
      %v2025 = vsel %vm1997, %v1992, %v1346
      %v2026 = vsel %vm1997, %v1993, %v1348
      %v2027 = vsel %vm1997, %v1994, %v1350
      %v2028 = vsel %vm1997, %v1995, %v1352
      %v2029 = vsel %vm1997, %v1996, %v1354
      %vm2030 = vcmask 162816
      %v2031 = vsel %vm2030, %v1998, %v1420
      %v2032 = vsel %vm2030, %v1999, %v1422
      %v2033 = vsel %vm2030, %v2000, %v1424
      %v2034 = vsel %vm2030, %v2001, %v1426
      %v2035 = vsel %vm2030, %v2002, %v1428
      %v2036 = vsel %vm2030, %v2003, %v1430
      %v2037 = vsel %vm2030, %v2004, %v1432
      %v2038 = vsel %vm2030, %v2005, %v1434
      %v2039 = vsel %vm2030, %v2006, %v1436
      %v2040 = vsel %vm2030, %v2007, %v1438
      %v2041 = vsel %vm2030, %v2008, %v1440
      %v2042 = vsel %vm2030, %v2009, %v1442
      %v2043 = vsel %vm2030, %v2010, %v1444
      %v2044 = vsel %vm2030, %v2011, %v1446
      %v2045 = vsel %vm2030, %v2012, %v1448
      %v2046 = vsel %vm2030, %v2013, %v1450
      %v2047 = vsel %vm2030, %v2014, %v1452
      %v2048 = vsel %vm2030, %v2015, %v1454
      %v2049 = vsel %vm2030, %v2016, %v1456
      %v2050 = vsel %vm2030, %v2017, %v1458
      %v2051 = vsel %vm2030, %v2018, %v1460
      %v2052 = vsel %vm2030, %v2019, %v1462
      %v2053 = vsel %vm2030, %v2020, %v1464
      %v2054 = vsel %vm2030, %v2021, %v1466
      %v2055 = vsel %vm2030, %v2022, %v1468
      %v2056 = vsel %vm2030, %v2023, %v1470
      %v2057 = vsel %vm2030, %v2024, %v1472
      %v2058 = vsel %vm2030, %v2025, %v1474
      %v2059 = vsel %vm2030, %v2026, %v1476
      %v2060 = vsel %vm2030, %v2027, %v1478
      %v2061 = vsel %vm2030, %v2028, %v1480
      %v2062 = vsel %vm2030, %v2029, %v1482
      %vm2063 = vcmask 195584
      %v2064 = vsel %vm2063, %v2031, %v1548
      %v2065 = vsel %vm2063, %v2032, %v1550
      %v2066 = vsel %vm2063, %v2033, %v1552
      %v2067 = vsel %vm2063, %v2034, %v1554
      %v2068 = vsel %vm2063, %v2035, %v1556
      %v2069 = vsel %vm2063, %v2036, %v1558
      %v2070 = vsel %vm2063, %v2037, %v1560
      %v2071 = vsel %vm2063, %v2038, %v1562
      %v2072 = vsel %vm2063, %v2039, %v1564
      %v2073 = vsel %vm2063, %v2040, %v1566
      %v2074 = vsel %vm2063, %v2041, %v1568
      %v2075 = vsel %vm2063, %v2042, %v1570
      %v2076 = vsel %vm2063, %v2043, %v1572
      %v2077 = vsel %vm2063, %v2044, %v1574
      %v2078 = vsel %vm2063, %v2045, %v1576
      %v2079 = vsel %vm2063, %v2046, %v1578
      %v2080 = vsel %vm2063, %v2047, %v1580
      %v2081 = vsel %vm2063, %v2048, %v1582
      %v2082 = vsel %vm2063, %v2049, %v1584
      %v2083 = vsel %vm2063, %v2050, %v1586
      %v2084 = vsel %vm2063, %v2051, %v1588
      %v2085 = vsel %vm2063, %v2052, %v1590
      %v2086 = vsel %vm2063, %v2053, %v1592
      %v2087 = vsel %vm2063, %v2054, %v1594
      %v2088 = vsel %vm2063, %v2055, %v1596
      %v2089 = vsel %vm2063, %v2056, %v1598
      %v2090 = vsel %vm2063, %v2057, %v1600
      %v2091 = vsel %vm2063, %v2058, %v1602
      %v2092 = vsel %vm2063, %v2059, %v1604
      %v2093 = vsel %vm2063, %v2060, %v1606
      %v2094 = vsel %vm2063, %v2061, %v1608
      %v2095 = vsel %vm2063, %v2062, %v1610
      %vm2096 = vcmask 228352
      %v2097 = vsel %vm2096, %v2064, %v1676
      %v2098 = vsel %vm2096, %v2065, %v1678
      %v2099 = vsel %vm2096, %v2066, %v1680
      %v2100 = vsel %vm2096, %v2067, %v1682
      %v2101 = vsel %vm2096, %v2068, %v1684
      %v2102 = vsel %vm2096, %v2069, %v1686
      %v2103 = vsel %vm2096, %v2070, %v1688
      %v2104 = vsel %vm2096, %v2071, %v1690
      %v2105 = vsel %vm2096, %v2072, %v1692
      %v2106 = vsel %vm2096, %v2073, %v1694
      %v2107 = vsel %vm2096, %v2074, %v1696
      %v2108 = vsel %vm2096, %v2075, %v1698
      %v2109 = vsel %vm2096, %v2076, %v1700
      %v2110 = vsel %vm2096, %v2077, %v1702
      %v2111 = vsel %vm2096, %v2078, %v1704
      %v2112 = vsel %vm2096, %v2079, %v1706
      %v2113 = vsel %vm2096, %v2080, %v1708
      %v2114 = vsel %vm2096, %v2081, %v1710
      %v2115 = vsel %vm2096, %v2082, %v1712
      %v2116 = vsel %vm2096, %v2083, %v1714
      %v2117 = vsel %vm2096, %v2084, %v1716
      %v2118 = vsel %vm2096, %v2085, %v1718
      %v2119 = vsel %vm2096, %v2086, %v1720
      %v2120 = vsel %vm2096, %v2087, %v1722
      %v2121 = vsel %vm2096, %v2088, %v1724
      %v2122 = vsel %vm2096, %v2089, %v1726
      %v2123 = vsel %vm2096, %v2090, %v1728
      %v2124 = vsel %vm2096, %v2091, %v1730
      %v2125 = vsel %vm2096, %v2092, %v1732
      %v2126 = vsel %vm2096, %v2093, %v1734
      %v2127 = vsel %vm2096, %v2094, %v1736
      %v2128 = vsel %vm2096, %v2095, %v1738
      %vm2129 = vcmask 261120
      %v2130 = vsel %vm2129, %v2097, %v1804
      %v2131 = vsel %vm2129, %v2098, %v1806
      %v2132 = vsel %vm2129, %v2099, %v1808
      %v2133 = vsel %vm2129, %v2100, %v1810
      %v2134 = vsel %vm2129, %v2101, %v1812
      %v2135 = vsel %vm2129, %v2102, %v1814
      %v2136 = vsel %vm2129, %v2103, %v1816
      %v2137 = vsel %vm2129, %v2104, %v1818
      %v2138 = vsel %vm2129, %v2105, %v1820
      %v2139 = vsel %vm2129, %v2106, %v1822
      %v2140 = vsel %vm2129, %v2107, %v1824
      %v2141 = vsel %vm2129, %v2108, %v1826
      %v2142 = vsel %vm2129, %v2109, %v1828
      %v2143 = vsel %vm2129, %v2110, %v1830
      %v2144 = vsel %vm2129, %v2111, %v1832
      %v2145 = vsel %vm2129, %v2112, %v1834
      %v2146 = vsel %vm2129, %v2113, %v1836
      %v2147 = vsel %vm2129, %v2114, %v1838
      %v2148 = vsel %vm2129, %v2115, %v1840
      %v2149 = vsel %vm2129, %v2116, %v1842
      %v2150 = vsel %vm2129, %v2117, %v1844
      %v2151 = vsel %vm2129, %v2118, %v1846
      %v2152 = vsel %vm2129, %v2119, %v1848
      %v2153 = vsel %vm2129, %v2120, %v1850
      %v2154 = vsel %vm2129, %v2121, %v1852
      %v2155 = vsel %vm2129, %v2122, %v1854
      %v2156 = vsel %vm2129, %v2123, %v1856
      %v2157 = vsel %vm2129, %v2124, %v1858
      %v2158 = vsel %vm2129, %v2125, %v1860
      %v2159 = vsel %vm2129, %v2126, %v1862
      %v2160 = vsel %vm2129, %v2127, %v1864
      %v2161 = vsel %vm2129, %v2128, %v1866
      %v2162 = vpack.c.bf16 %v2131, %v2130
      %v2163 = vpack.c.bf16 %v2133, %v2132
      %v2164 = vpack.c.bf16 %v2135, %v2134
      %v2165 = vpack.c.bf16 %v2137, %v2136
      %v2166 = vpack.c.bf16 %v2139, %v2138
      %v2167 = vpack.c.bf16 %v2141, %v2140
      %v2168 = vpack.c.bf16 %v2143, %v2142
      %v2169 = vpack.c.bf16 %v2145, %v2144
      %v2170 = vpack.c.bf16 %v2147, %v2146
      %v2171 = vpack.c.bf16 %v2149, %v2148
      %v2172 = vpack.c.bf16 %v2151, %v2150
      %v2173 = vpack.c.bf16 %v2153, %v2152
      %v2174 = vpack.c.bf16 %v2155, %v2154
      %v2175 = vpack.c.bf16 %v2157, %v2156
      %v2176 = vpack.c.bf16 %v2159, %v2158
      %v2177 = vpack.c.bf16 %v2161, %v2160
      %v2178 = vld [vmem:[%s4] sm:$0xf]
      %v2179 = vld [vmem:[%s4 + $0x4] sm:$0xf]
      %v2180 = vld [vmem:[%s4 + $0x8] sm:$0xf]
      %v2181 = vld [vmem:[%s4 + $0xc] sm:$0xf]
      %v2182 = vld [vmem:[%s4 + $0x10] sm:$0x3]
      %v2183 = vld [vmem:[%s5] sm:$0x1]
      %v2185 = vlaneseq
      %v2186 = vshrl.u32 %v2185, 7
      %v2187 = vsub.s32 0, %v2186
      %v2188 = vrot.slane %v2183, %v2187
      %v2195 = vunpack.c.l.b16 %v2178
      %v2196 = vunpack.c.l.b16 %v2179
      %v2197 = vunpack.c.l.b16 %v2180
      %v2198 = vunpack.c.l.b16 %v2181
      %v2199 = vunpack.c.l.b16 %v2182
      %v2200 = vpack.c.b16 %v2196, %v2195
      %v2201 = vpack.c.b16 %v2198, %v2197
      %v2202 = vpack.c.b16 %v2199, %v2199
      %vm2205 = vcmask 293888
      %v2207 = vsel %vm2205, %v2162, 0
      %v2210 = vsel %vm2205, %v2163, 0
      %v2213 = vsel %vm2205, %v2164, 0
      %v2216 = vsel %vm2205, %v2165, 0
      %v2219 = vsel %vm2205, %v2166, 0
      %v2222 = vsel %vm2205, %v2167, 0
      %v2225 = vsel %vm2205, %v2168, 0
      %v2228 = vsel %vm2205, %v2169, 0
      %v2231 = vsel %vm2205, %v2170, 0
      %v2234 = vsel %vm2205, %v2171, 0
      %v2237 = vsel %vm2205, %v2172, 0
      %v2240 = vsel %vm2205, %v2173, 0
      %v2243 = vsel %vm2205, %v2174, 0
      %v2246 = vsel %vm2205, %v2175, 0
      %v2249 = vsel %vm2205, %v2176, 0
      %v2252 = vsel %vm2205, %v2177, 0
      %vm2254 = vcmask 1041408
      %v2256 = vsel %vm2254, %v2202, 0
      %2258 = vmatprep.subr.bf16.mxu0 0
      %2259 = vmatpush1.bf16.msra.mxu0 %v2200
      %2260 = vmatprep.subr.bf16.mxu0 0
      %2261 = vmatpush1.bf16.msra.mxu0 %v2201
      %2262 = vmatprep.subr.bf16.mxu0 0
      %2263 = vmatpush1.bf16.msra.mxu0 %v2256
      %2264 = vmatprep.subr.bf16.mxu0 0
      %2265 = vmatpush1.bf16.msra.mxu0 0
      %2266 = vmatprep.subr.bf16.mxu0 0
      %2267 = vmatpush1.bf16.msra.mxu0 0
      %2268 = vmatprep.subr.bf16.mxu0 0
      %2269 = vmatpush1.bf16.msra.mxu0 0
      %2270 = vmatprep.subr.bf16.mxu0 0
      %2271 = vmatpush1.bf16.msra.mxu0 0
      %2272 = vmatprep.subr.bf16.mxu0 0
      %2273 = vmatpush1.bf16.msra.mxu0 0
      %2274 = vmatprep.subr.bf16.mxu0 0
      %2275 = vmatpush1.bf16.msra.mxu0 0
      %2276 = vmatprep.subr.bf16.mxu0 0
      %2277 = vmatpush1.bf16.msra.mxu0 0
      %2278 = vmatprep.subr.bf16.mxu0 0
      %2279 = vmatpush1.bf16.msra.mxu0 0
      %2280 = vmatprep.subr.bf16.mxu0 0
      %2281 = vmatpush1.bf16.msra.mxu0 0
      %2282 = vmatprep.subr.bf16.mxu0 0
      %2283 = vmatpush1.bf16.msra.mxu0 0
      %2284 = vmatprep.subr.bf16.mxu0 0
      %2285 = vmatpush1.bf16.msra.mxu0 0
      %2286 = vmatprep.subr.bf16.mxu0 0
      %2287 = vmatpush1.bf16.msra.mxu0 0
      %2288 = vmatprep.subr.bf16.mxu0 0
      %2289 = vmatpush1.bf16.msra.mxu0 0
      %2290 = vmatprep.mubr.bf16.mxu0 0
      %2291 = vmatmul.mubr.bf16.gmra.mrb[0].mxu0 %v2207
      %v2292 = vpop.f32.mrb[0].mxu0
      %v2293 = vadd.f32 %v2188, %v2292
      %v2294 = vpop.f32.mrb[0].mxu0
      %v2295 = vpop.f32.mrb[0].mxu0
      %v2296 = vadd.f32 %v2188, %v2295
      %v2297 = vpop.f32.mrb[0].mxu0
      %2298 = vmatprep.mubr.bf16.mxu0 0
      %2299 = vmatmul.mubr.bf16.gmra.mrb[0].mxu0 %v2210
      %v2300 = vpop.f32.mrb[0].mxu0
      %v2301 = vadd.f32 %v2188, %v2300
      %v2302 = vpop.f32.mrb[0].mxu0
      %v2303 = vpop.f32.mrb[0].mxu0
      %v2304 = vadd.f32 %v2188, %v2303
      %v2305 = vpop.f32.mrb[0].mxu0
      %2306 = vmatprep.mubr.bf16.mxu0 0
      %2307 = vmatmul.mubr.bf16.gmra.mrb[0].mxu0 %v2213
      %v2308 = vpop.f32.mrb[0].mxu0
      %v2309 = vadd.f32 %v2188, %v2308
      %v2310 = vpop.f32.mrb[0].mxu0
      %v2311 = vpop.f32.mrb[0].mxu0
      %v2312 = vadd.f32 %v2188, %v2311
      %v2313 = vpop.f32.mrb[0].mxu0
      %2314 = vmatprep.mubr.bf16.mxu0 0
      %2315 = vmatmul.mubr.bf16.gmra.mrb[0].mxu0 %v2216
      %v2316 = vpop.f32.mrb[0].mxu0
      %v2317 = vadd.f32 %v2188, %v2316
      %v2318 = vpop.f32.mrb[0].mxu0
      %v2319 = vpop.f32.mrb[0].mxu0
      %v2320 = vadd.f32 %v2188, %v2319
      %v2321 = vpop.f32.mrb[0].mxu0
      %2322 = vmatprep.mubr.bf16.mxu0 0
      %2323 = vmatmul.mubr.bf16.gmra.mrb[0].mxu0 %v2219
      %v2324 = vpop.f32.mrb[0].mxu0
      %v2325 = vadd.f32 %v2188, %v2324
      %v2326 = vpop.f32.mrb[0].mxu0
      %v2327 = vpop.f32.mrb[0].mxu0
      %v2328 = vadd.f32 %v2188, %v2327
      %v2329 = vpop.f32.mrb[0].mxu0
      %2330 = vmatprep.mubr.bf16.mxu0 0
      %2331 = vmatmul.mubr.bf16.gmra.mrb[0].mxu0 %v2222
      %v2332 = vpop.f32.mrb[0].mxu0
      %v2333 = vadd.f32 %v2188, %v2332
      %v2334 = vpop.f32.mrb[0].mxu0
      %v2335 = vpop.f32.mrb[0].mxu0
      %v2336 = vadd.f32 %v2188, %v2335
      %v2337 = vpop.f32.mrb[0].mxu0
      %2338 = vmatprep.mubr.bf16.mxu0 0
      %2339 = vmatmul.mubr.bf16.gmra.mrb[0].mxu0 %v2225
      %v2340 = vpop.f32.mrb[0].mxu0
      %v2341 = vadd.f32 %v2188, %v2340
      %v2342 = vpop.f32.mrb[0].mxu0
      %v2343 = vpop.f32.mrb[0].mxu0
      %v2344 = vadd.f32 %v2188, %v2343
      %v2345 = vpop.f32.mrb[0].mxu0
      %2346 = vmatprep.mubr.bf16.mxu0 0
      %2347 = vmatmul.mubr.bf16.gmra.mrb[0].mxu0 %v2228
      %v2348 = vpop.f32.mrb[0].mxu0
      %v2349 = vadd.f32 %v2188, %v2348
      %v2350 = vpop.f32.mrb[0].mxu0
      %v2351 = vpop.f32.mrb[0].mxu0
      %v2352 = vadd.f32 %v2188, %v2351
      %v2353 = vpop.f32.mrb[0].mxu0
      %2354 = vmatprep.mubr.bf16.mxu0 0
      %2355 = vmatmul.mubr.bf16.gmra.mrb[0].mxu0 %v2231
      %v2356 = vpop.f32.mrb[0].mxu0
      %v2357 = vadd.f32 %v2188, %v2356
      %v2358 = vpop.f32.mrb[0].mxu0
      %v2359 = vpop.f32.mrb[0].mxu0
      %v2360 = vadd.f32 %v2188, %v2359
      %v2361 = vpop.f32.mrb[0].mxu0
      %2362 = vmatprep.mubr.bf16.mxu0 0
      %2363 = vmatmul.mubr.bf16.gmra.mrb[0].mxu0 %v2234
      %v2364 = vpop.f32.mrb[0].mxu0
      %v2365 = vadd.f32 %v2188, %v2364
      %v2366 = vpop.f32.mrb[0].mxu0
      %v2367 = vpop.f32.mrb[0].mxu0
      %v2368 = vadd.f32 %v2188, %v2367
      %v2369 = vpop.f32.mrb[0].mxu0
      %2370 = vmatprep.mubr.bf16.mxu0 0
      %2371 = vmatmul.mubr.bf16.gmra.mrb[0].mxu0 %v2237
      %v2372 = vpop.f32.mrb[0].mxu0
      %v2373 = vadd.f32 %v2188, %v2372
      %v2374 = vpop.f32.mrb[0].mxu0
      %v2375 = vpop.f32.mrb[0].mxu0
      %v2376 = vadd.f32 %v2188, %v2375
      %v2377 = vpop.f32.mrb[0].mxu0
      %2378 = vmatprep.mubr.bf16.mxu0 0
      %2379 = vmatmul.mubr.bf16.gmra.mrb[0].mxu0 %v2240
      %v2380 = vpop.f32.mrb[0].mxu0
      %v2381 = vadd.f32 %v2188, %v2380
      %v2382 = vpop.f32.mrb[0].mxu0
      %v2383 = vpop.f32.mrb[0].mxu0
      %v2384 = vadd.f32 %v2188, %v2383
      %v2385 = vpop.f32.mrb[0].mxu0
      %2386 = vmatprep.mubr.bf16.mxu0 0
      %2387 = vmatmul.mubr.bf16.gmra.mrb[0].mxu0 %v2243
      %v2388 = vpop.f32.mrb[0].mxu0
      %v2389 = vadd.f32 %v2188, %v2388
      %v2390 = vpop.f32.mrb[0].mxu0
      %v2391 = vpop.f32.mrb[0].mxu0
      %v2392 = vadd.f32 %v2188, %v2391
      %v2393 = vpop.f32.mrb[0].mxu0
      %2394 = vmatprep.mubr.bf16.mxu0 0
      %2395 = vmatmul.mubr.bf16.gmra.mrb[0].mxu0 %v2246
      %v2396 = vpop.f32.mrb[0].mxu0
      %v2397 = vadd.f32 %v2188, %v2396
      %v2398 = vpop.f32.mrb[0].mxu0
      %v2399 = vpop.f32.mrb[0].mxu0
      %v2400 = vadd.f32 %v2188, %v2399
      %v2401 = vpop.f32.mrb[0].mxu0
      %2402 = vmatprep.mubr.bf16.mxu0 0
      %2403 = vmatmul.mubr.bf16.gmra.mrb[0].mxu0 %v2249
      %v2404 = vpop.f32.mrb[0].mxu0
      %v2405 = vadd.f32 %v2188, %v2404
      %v2406 = vpop.f32.mrb[0].mxu0
      %v2407 = vpop.f32.mrb[0].mxu0
      %v2408 = vadd.f32 %v2188, %v2407
      %v2409 = vpop.f32.mrb[0].mxu0
      %2410 = vmatprep.mubr.bf16.mxu0 0
      %2411 = vmatmul.mubr.bf16.gmra.mrb[0].mxu0 %v2252
      %v2412 = vpop.f32.mrb[0].mxu0
      %v2413 = vadd.f32 %v2188, %v2412
      %v2414 = vpop.f32.mrb[0].mxu0
      %v2415 = vpop.f32.mrb[0].mxu0
      %v2416 = vadd.f32 %v2188, %v2415
      %v2417 = vpop.f32.mrb[0].mxu0
      %2418 = vdwg.mxu0
      %v2419 = vld [vmem:[%s342] sm:$0xff]
      %v2420 = vld [vmem:[%s342 + $0x8] sm:$0xff]
      %v2421 = vld [vmem:[%s342 + $0x10] sm:$0xff]
      %v2422 = vld [vmem:[%s342 + $0x18] sm:$0xff]
      %v2423 = vld [vmem:[%s342 + $0x20] sm:$0xff]
      %v2424 = vld [vmem:[%s342 + $0x28] sm:$0xff]
      %v2425 = vld [vmem:[%s342 + $0x30] sm:$0xff]
      %v2426 = vld [vmem:[%s342 + $0x38] sm:$0xff]
      %v2427 = vld [vmem:[%s342 + $0x40] sm:$0xff]
      %v2428 = vld [vmem:[%s342 + $0x48] sm:$0xff]
      %v2429 = vld [vmem:[%s342 + $0x50] sm:$0xff]
      %v2430 = vld [vmem:[%s342 + $0x58] sm:$0xff]
      %v2431 = vld [vmem:[%s342 + $0x60] sm:$0xff]
      %v2432 = vld [vmem:[%s342 + $0x68] sm:$0xff]
      %v2433 = vld [vmem:[%s342 + $0x70] sm:$0xff]
      %v2434 = vld [vmem:[%s342 + $0x78] sm:$0xff]
      %v2435 = vld [vmem:[%s342 + $0x80] sm:$0xff]
      %v2436 = vld [vmem:[%s342 + $0x88] sm:$0xff]
      %v2437 = vld [vmem:[%s342 + $0x90] sm:$0xff]
      %v2438 = vld [vmem:[%s342 + $0x98] sm:$0xff]
      %v2439 = vld [vmem:[%s342 + $0xa0] sm:$0xff]
      %v2440 = vld [vmem:[%s342 + $0xa8] sm:$0xff]
      %v2441 = vld [vmem:[%s342 + $0xb0] sm:$0xff]
      %v2442 = vld [vmem:[%s342 + $0xb8] sm:$0xff]
      %v2443 = vld [vmem:[%s342 + $0xc0] sm:$0xff]
      %v2444 = vld [vmem:[%s342 + $0xc8] sm:$0xff]
      %v2445 = vld [vmem:[%s342 + $0xd0] sm:$0xff]
      %v2446 = vld [vmem:[%s342 + $0xd8] sm:$0xff]
      %v2447 = vld [vmem:[%s342 + $0xe0] sm:$0xff]
      %v2448 = vld [vmem:[%s342 + $0xe8] sm:$0xff]
      %v2449 = vld [vmem:[%s342 + $0xf0] sm:$0xff]
      %v2450 = vld [vmem:[%s342 + $0xf8] sm:$0xff]
      %v2451 = vpack.c.bf16 %v2420, %v2419
      %v2452 = vpack.c.bf16 %v2422, %v2421
      %v2453 = vpack.c.bf16 %v2424, %v2423
      %v2454 = vpack.c.bf16 %v2426, %v2425
      %v2455 = vpack.c.bf16 %v2428, %v2427
      %v2456 = vpack.c.bf16 %v2430, %v2429
      %v2457 = vpack.c.bf16 %v2432, %v2431
      %v2458 = vpack.c.bf16 %v2434, %v2433
      %v2459 = vpack.c.bf16 %v2436, %v2435
      %v2460 = vpack.c.bf16 %v2438, %v2437
      %v2461 = vpack.c.bf16 %v2440, %v2439
      %v2462 = vpack.c.bf16 %v2442, %v2441
      %v2463 = vpack.c.bf16 %v2444, %v2443
      %v2464 = vpack.c.bf16 %v2446, %v2445
      %v2465 = vpack.c.bf16 %v2448, %v2447
      %v2466 = vpack.c.bf16 %v2450, %v2449
      %v2467 = vld [vmem:[%s6] sm:$0x3]
      %v2468 = vld [vmem:[%s7] sm:$0x1]
      %v2470 = vlaneseq
      %v2471 = vshrl.u32 %v2470, 7
      %v2472 = vsub.s32 0, %v2471
      %v2473 = vrot.slane %v2468, %v2472
      %v2476 = vsel %vm497, %v2451, 0
      %v2479 = vsel %vm497, %v2452, 0
      %v2482 = vsel %vm497, %v2453, 0
      %v2485 = vsel %vm497, %v2454, 0
      %v2488 = vsel %vm497, %v2455, 0
      %v2491 = vsel %vm497, %v2456, 0
      %v2494 = vsel %vm497, %v2457, 0
      %v2497 = vsel %vm497, %v2458, 0
      %v2500 = vsel %vm497, %v2459, 0
      %v2503 = vsel %vm497, %v2460, 0
      %v2506 = vsel %vm497, %v2461, 0
      %v2509 = vsel %vm497, %v2462, 0
      %v2512 = vsel %vm497, %v2463, 0
      %v2515 = vsel %vm497, %v2464, 0
      %v2518 = vsel %vm497, %v2465, 0
      %v2521 = vsel %vm497, %v2466, 0
      %v2524 = vsel %vm2254, %v2467, 0
      %2526 = vmatprep.subr.bf16.mxu0 0
      %2527 = vmatpush1.bf16.msra.mxu0 %v2524
      %2528 = vmatprep.subr.bf16.mxu0 0
      %2529 = vmatpush1.bf16.msra.mxu0 0
      %2530 = vmatprep.subr.bf16.mxu0 0
      %2531 = vmatpush1.bf16.msra.mxu0 0
      %2532 = vmatprep.subr.bf16.mxu0 0
      %2533 = vmatpush1.bf16.msra.mxu0 0
      %2534 = vmatprep.subr.bf16.mxu0 0
      %2535 = vmatpush1.bf16.msra.mxu0 0
      %2536 = vmatprep.subr.bf16.mxu0 0
      %2537 = vmatpush1.bf16.msra.mxu0 0
      %2538 = vmatprep.subr.bf16.mxu0 0
      %2539 = vmatpush1.bf16.msra.mxu0 0
      %2540 = vmatprep.subr.bf16.mxu0 0
      %2541 = vmatpush1.bf16.msra.mxu0 0
      %2542 = vmatprep.subr.bf16.mxu0 0
      %2543 = vmatpush1.bf16.msra.mxu0 0
      %2544 = vmatprep.subr.bf16.mxu0 0
      %2545 = vmatpush1.bf16.msra.mxu0 0
      %2546 = vmatprep.subr.bf16.mxu0 0
      %2547 = vmatpush1.bf16.msra.mxu0 0
      %2548 = vmatprep.subr.bf16.mxu0 0
      %2549 = vmatpush1.bf16.msra.mxu0 0
      %2550 = vmatprep.subr.bf16.mxu0 0
      %2551 = vmatpush1.bf16.msra.mxu0 0
      %2552 = vmatprep.subr.bf16.mxu0 0
      %2553 = vmatpush1.bf16.msra.mxu0 0
      %2554 = vmatprep.subr.bf16.mxu0 0
      %2555 = vmatpush1.bf16.msra.mxu0 0
      %2556 = vmatprep.subr.bf16.mxu0 0
      %2557 = vmatpush1.bf16.msra.mxu0 0
      %2558 = vmatprep.mubr.bf16.mxu0 0
      %2559 = vmatmul.mubr.bf16.gmra.mrb[0].mxu0 %v2476
      %v2560 = vpop.f32.mrb[0].mxu0
      %v2561 = vadd.f32 %v2473, %v2560
      %v2562 = vpop.f32.mrb[0].mxu0
      %v2563 = vpop.f32.mrb[0].mxu0
      %v2564 = vadd.f32 %v2473, %v2563
      %v2565 = vpop.f32.mrb[0].mxu0
      %2566 = vmatprep.mubr.bf16.mxu0 0
      %2567 = vmatmul.mubr.bf16.gmra.mrb[0].mxu0 %v2479
      %v2568 = vpop.f32.mrb[0].mxu0
      %v2569 = vadd.f32 %v2473, %v2568
      %v2570 = vpop.f32.mrb[0].mxu0
      %v2571 = vpop.f32.mrb[0].mxu0
      %v2572 = vadd.f32 %v2473, %v2571
      %v2573 = vpop.f32.mrb[0].mxu0
      %2574 = vmatprep.mubr.bf16.mxu0 0
      %2575 = vmatmul.mubr.bf16.gmra.mrb[0].mxu0 %v2482
      %v2576 = vpop.f32.mrb[0].mxu0
      %v2577 = vadd.f32 %v2473, %v2576
      %v2578 = vpop.f32.mrb[0].mxu0
      %v2579 = vpop.f32.mrb[0].mxu0
      %v2580 = vadd.f32 %v2473, %v2579
      %v2581 = vpop.f32.mrb[0].mxu0
      %2582 = vmatprep.mubr.bf16.mxu0 0
      %2583 = vmatmul.mubr.bf16.gmra.mrb[0].mxu0 %v2485
      %v2584 = vpop.f32.mrb[0].mxu0
      %v2585 = vadd.f32 %v2473, %v2584
      %v2586 = vpop.f32.mrb[0].mxu0
      %v2587 = vpop.f32.mrb[0].mxu0
      %v2588 = vadd.f32 %v2473, %v2587
      %v2589 = vpop.f32.mrb[0].mxu0
      %2590 = vmatprep.mubr.bf16.mxu0 0
      %2591 = vmatmul.mubr.bf16.gmra.mrb[0].mxu0 %v2488
      %v2592 = vpop.f32.mrb[0].mxu0
      %v2593 = vadd.f32 %v2473, %v2592
      %v2594 = vpop.f32.mrb[0].mxu0
      %v2595 = vpop.f32.mrb[0].mxu0
      %v2596 = vadd.f32 %v2473, %v2595
      %v2597 = vpop.f32.mrb[0].mxu0
      %2598 = vmatprep.mubr.bf16.mxu0 0
      %2599 = vmatmul.mubr.bf16.gmra.mrb[0].mxu0 %v2491
      %v2600 = vpop.f32.mrb[0].mxu0
      %v2601 = vadd.f32 %v2473, %v2600
      %v2602 = vpop.f32.mrb[0].mxu0
      %v2603 = vpop.f32.mrb[0].mxu0
      %v2604 = vadd.f32 %v2473, %v2603
      %v2605 = vpop.f32.mrb[0].mxu0
      %2606 = vmatprep.mubr.bf16.mxu0 0
      %2607 = vmatmul.mubr.bf16.gmra.mrb[0].mxu0 %v2494
      %v2608 = vpop.f32.mrb[0].mxu0
      %v2609 = vadd.f32 %v2473, %v2608
      %v2610 = vpop.f32.mrb[0].mxu0
      %v2611 = vpop.f32.mrb[0].mxu0
      %v2612 = vadd.f32 %v2473, %v2611
      %v2613 = vpop.f32.mrb[0].mxu0
      %2614 = vmatprep.mubr.bf16.mxu0 0
      %2615 = vmatmul.mubr.bf16.gmra.mrb[0].mxu0 %v2497
      %v2616 = vpop.f32.mrb[0].mxu0
      %v2617 = vadd.f32 %v2473, %v2616
      %v2618 = vpop.f32.mrb[0].mxu0
      %v2619 = vpop.f32.mrb[0].mxu0
      %v2620 = vadd.f32 %v2473, %v2619
      %v2621 = vpop.f32.mrb[0].mxu0
      %2622 = vmatprep.mubr.bf16.mxu0 0
      %2623 = vmatmul.mubr.bf16.gmra.mrb[0].mxu0 %v2500
      %v2624 = vpop.f32.mrb[0].mxu0
      %v2625 = vadd.f32 %v2473, %v2624
      %v2626 = vpop.f32.mrb[0].mxu0
      %v2627 = vpop.f32.mrb[0].mxu0
      %v2628 = vadd.f32 %v2473, %v2627
      %v2629 = vpop.f32.mrb[0].mxu0
      %2630 = vmatprep.mubr.bf16.mxu0 0
      %2631 = vmatmul.mubr.bf16.gmra.mrb[0].mxu0 %v2503
      %v2632 = vpop.f32.mrb[0].mxu0
      %v2633 = vadd.f32 %v2473, %v2632
      %v2634 = vpop.f32.mrb[0].mxu0
      %v2635 = vpop.f32.mrb[0].mxu0
      %v2636 = vadd.f32 %v2473, %v2635
      %v2637 = vpop.f32.mrb[0].mxu0
      %2638 = vmatprep.mubr.bf16.mxu0 0
      %2639 = vmatmul.mubr.bf16.gmra.mrb[0].mxu0 %v2506
      %v2640 = vpop.f32.mrb[0].mxu0
      %v2641 = vadd.f32 %v2473, %v2640
      %v2642 = vpop.f32.mrb[0].mxu0
      %v2643 = vpop.f32.mrb[0].mxu0
      %v2644 = vadd.f32 %v2473, %v2643
      %v2645 = vpop.f32.mrb[0].mxu0
      %2646 = vmatprep.mubr.bf16.mxu0 0
      %2647 = vmatmul.mubr.bf16.gmra.mrb[0].mxu0 %v2509
      %v2648 = vpop.f32.mrb[0].mxu0
      %v2649 = vadd.f32 %v2473, %v2648
      %v2650 = vpop.f32.mrb[0].mxu0
      %v2651 = vpop.f32.mrb[0].mxu0
      %v2652 = vadd.f32 %v2473, %v2651
      %v2653 = vpop.f32.mrb[0].mxu0
      %2654 = vmatprep.mubr.bf16.mxu0 0
      %2655 = vmatmul.mubr.bf16.gmra.mrb[0].mxu0 %v2512
      %v2656 = vpop.f32.mrb[0].mxu0
      %v2657 = vadd.f32 %v2473, %v2656
      %v2658 = vpop.f32.mrb[0].mxu0
      %v2659 = vpop.f32.mrb[0].mxu0
      %v2660 = vadd.f32 %v2473, %v2659
      %v2661 = vpop.f32.mrb[0].mxu0
      %2662 = vmatprep.mubr.bf16.mxu0 0
      %2663 = vmatmul.mubr.bf16.gmra.mrb[0].mxu0 %v2515
      %v2664 = vpop.f32.mrb[0].mxu0
      %v2665 = vadd.f32 %v2473, %v2664
      %v2666 = vpop.f32.mrb[0].mxu0
      %v2667 = vpop.f32.mrb[0].mxu0
      %v2668 = vadd.f32 %v2473, %v2667
      %v2669 = vpop.f32.mrb[0].mxu0
      %2670 = vmatprep.mubr.bf16.mxu0 0
      %2671 = vmatmul.mubr.bf16.gmra.mrb[0].mxu0 %v2518
      %v2672 = vpop.f32.mrb[0].mxu0
      %v2673 = vadd.f32 %v2473, %v2672
      %v2674 = vpop.f32.mrb[0].mxu0
      %v2675 = vpop.f32.mrb[0].mxu0
      %v2676 = vadd.f32 %v2473, %v2675
      %v2677 = vpop.f32.mrb[0].mxu0
      %2678 = vmatprep.mubr.bf16.mxu0 0
      %2679 = vmatmul.mubr.bf16.gmra.mrb[0].mxu0 %v2521
      %v2680 = vpop.f32.mrb[0].mxu0
      %v2681 = vadd.f32 %v2473, %v2680
      %v2682 = vpop.f32.mrb[0].mxu0
      %v2683 = vpop.f32.mrb[0].mxu0
      %v2684 = vadd.f32 %v2473, %v2683
      %v2685 = vpop.f32.mrb[0].mxu0
      %2686 = vdwg.mxu0
      %v2687 = vadd.f32 %v2293, %v2561
      %v2688 = vadd.f32 %v2296, %v2564
      %v2689 = vadd.f32 %v2301, %v2569
      %v2690 = vadd.f32 %v2304, %v2572
      %v2691 = vadd.f32 %v2309, %v2577
      %v2692 = vadd.f32 %v2312, %v2580
      %v2693 = vadd.f32 %v2317, %v2585
      %v2694 = vadd.f32 %v2320, %v2588
      %v2695 = vadd.f32 %v2325, %v2593
      %v2696 = vadd.f32 %v2328, %v2596
      %v2697 = vadd.f32 %v2333, %v2601
      %v2698 = vadd.f32 %v2336, %v2604
      %v2699 = vadd.f32 %v2341, %v2609
      %v2700 = vadd.f32 %v2344, %v2612
      %v2701 = vadd.f32 %v2349, %v2617
      %v2702 = vadd.f32 %v2352, %v2620
      %v2703 = vadd.f32 %v2357, %v2625
      %v2704 = vadd.f32 %v2360, %v2628
      %v2705 = vadd.f32 %v2365, %v2633
      %v2706 = vadd.f32 %v2368, %v2636
      %v2707 = vadd.f32 %v2373, %v2641
      %v2708 = vadd.f32 %v2376, %v2644
      %v2709 = vadd.f32 %v2381, %v2649
      %v2710 = vadd.f32 %v2384, %v2652
      %v2711 = vadd.f32 %v2389, %v2657
      %v2712 = vadd.f32 %v2392, %v2660
      %v2713 = vadd.f32 %v2397, %v2665
      %v2714 = vadd.f32 %v2400, %v2668
      %v2715 = vadd.f32 %v2405, %v2673
      %v2716 = vadd.f32 %v2408, %v2676
      %v2717 = vadd.f32 %v2413, %v2681
      %v2718 = vadd.f32 %v2416, %v2684
      %2719 = vst.msk [vmem:[%s353] sm:$0xff] %vm497, %v2687
      %2720 = vst.msk [vmem:[%s353 + $0x8] sm:$0xff] %vm497, %v2688
      %2721 = vst.msk [vmem:[%s353 + $0x10] sm:$0xff] %vm497, %v2689
      %2722 = vst.msk [vmem:[%s353 + $0x18] sm:$0xff] %vm497, %v2690
      %2723 = vst.msk [vmem:[%s353 + $0x20] sm:$0xff] %vm497, %v2691
      %2724 = vst.msk [vmem:[%s353 + $0x28] sm:$0xff] %vm497, %v2692
      %2725 = vst.msk [vmem:[%s353 + $0x30] sm:$0xff] %vm497, %v2693
      %2726 = vst.msk [vmem:[%s353 + $0x38] sm:$0xff] %vm497, %v2694
      %2727 = vst.msk [vmem:[%s353 + $0x40] sm:$0xff] %vm497, %v2695
      %2728 = vst.msk [vmem:[%s353 + $0x48] sm:$0xff] %vm497, %v2696
      %2729 = vst.msk [vmem:[%s353 + $0x50] sm:$0xff] %vm497, %v2697
      %2730 = vst.msk [vmem:[%s353 + $0x58] sm:$0xff] %vm497, %v2698
      %2731 = vst.msk [vmem:[%s353 + $0x60] sm:$0xff] %vm497, %v2699
      %2732 = vst.msk [vmem:[%s353 + $0x68] sm:$0xff] %vm497, %v2700
      %2733 = vst.msk [vmem:[%s353 + $0x70] sm:$0xff] %vm497, %v2701
      %2734 = vst.msk [vmem:[%s353 + $0x78] sm:$0xff] %vm497, %v2702
      %2735 = vst.msk [vmem:[%s353 + $0x80] sm:$0xff] %vm497, %v2703
      %2736 = vst.msk [vmem:[%s353 + $0x88] sm:$0xff] %vm497, %v2704
      %2737 = vst.msk [vmem:[%s353 + $0x90] sm:$0xff] %vm497, %v2705
      %2738 = vst.msk [vmem:[%s353 + $0x98] sm:$0xff] %vm497, %v2706
      %2739 = vst.msk [vmem:[%s353 + $0xa0] sm:$0xff] %vm497, %v2707
      %2740 = vst.msk [vmem:[%s353 + $0xa8] sm:$0xff] %vm497, %v2708
      %2741 = vst.msk [vmem:[%s353 + $0xb0] sm:$0xff] %vm497, %v2709
      %2742 = vst.msk [vmem:[%s353 + $0xb8] sm:$0xff] %vm497, %v2710
      %2743 = vst.msk [vmem:[%s353 + $0xc0] sm:$0xff] %vm497, %v2711
      %2744 = vst.msk [vmem:[%s353 + $0xc8] sm:$0xff] %vm497, %v2712
      %2745 = vst.msk [vmem:[%s353 + $0xd0] sm:$0xff] %vm497, %v2713
      %2746 = vst.msk [vmem:[%s353 + $0xd8] sm:$0xff] %vm497, %v2714
      %2747 = vst.msk [vmem:[%s353 + $0xe0] sm:$0xff] %vm497, %v2715
      %2748 = vst.msk [vmem:[%s353 + $0xe8] sm:$0xff] %vm497, %v2716
      %2749 = vst.msk [vmem:[%s353 + $0xf0] sm:$0xff] %vm497, %v2717
      %2750 = vst.msk [vmem:[%s353 + $0xf8] sm:$0xff] %vm497, %v2718
      %p2751 = scmp.lt.s32.totalorder %s19, 1
      %s2752 = scalar_select %p2751, %s19, 1
      %s2753 = smul.addr %s2752, 32
      %s2754 = smul.addr %s2753, 8
      %s2755 = scalar_lea.vmem %s8, %s2754
      // Predicated region
      $region53: #{gen_block_forward.5} parent=51 // pred_check
        %p2756 = pneg %p225
      $region54: #{gen_block_forward.5} parent=51 // pred_check_branch
        %2758 = sbr.rel (%p2756) target = $region56
      $region55: #{gen_block_forward.5} parent=51 // pred_region
        _
      $region56: #{gen_block_forward.5} parent=51 // pred_fallthru
        _
    $region52: #{gen_block_forward.5} parent=5 // pred_fallthru
      _
    %p2759 = scmp.le.s32.totalorder 2, %s14
    // Predicated region
    $region57: #{gen_block_forward.5} parent=5 // pred_check
      %p2760 = pneg %p2759
    $region58: #{gen_block_forward.5} parent=5 // pred_check_branch
      %2762 = sbr.rel (%p2760) target = $region60
    $region59: #{gen_block_forward.5} parent=5 // pred_region
      %s2763 = ssub.s32 %s14, 2
      // Predicated region
      $region61: #{gen_block_forward.5} parent=59 // pred_check
        %p2764 = pneg %p231
      $region62: #{gen_block_forward.5} parent=59 // pred_check_branch
        %2766 = sbr.rel (%p2764) target = $region64
      $region63: #{gen_block_forward.5} parent=59 // pred_region
        %p2767 = scmp.lt.s32.totalorder %s20, 1
        %s2768 = scalar_select %p2767, %s20, 1
        %s2769 = smul.addr %s2768, 32
        %s2770 = smul.addr %s2769, 8
        %s2771 = scalar_lea.vmem %s8, %s2770
      $region64: #{gen_block_forward.5} parent=59 // pred_fallthru
        _
    $region60: #{gen_block_forward.5} parent=5 // pred_fallthru
      _
  $region6: #{gen_block_forward.5} parent=0 // loop_footer
    %s18 = sadd.s32 1, %s14
  $region7: #{gen_block_forward.5} parent=0 // loop_footer_branch
    %13 = sbr.rel target = $region3
  $region8: #{gen_block_forward.5} parent=0 // loop_exit
    _

</llo_original>
